<compile_context>
chip_gen: v7x
topology: tpu7x:2x2x1
jax: 0.10.0
libtpu: 0.0.40
codegen_flags: <defaults>
</compile_context>

<pallas_src>
import functools

import jax
import jax.numpy as jnp
from jax.experimental import pallas as pl
from jax.experimental.pallas import tpu as pltpu


NEG_SLOPE = 0.01  # PyTorch nn.LeakyReLU default


def _leaky(h):
    return jnp.where(h > 0, h, NEG_SLOPE * h)


# ------------------------------- kernel -------------------------------------

def _gnn_kernel(x_ref, p_ref, out_ref, a_ref, *, offs, n_blk, S, D):
    """One block of n_blk graphs per grid step.

    x_ref:   (n_blk, S, D) VMEM block of the (N, S, D) input
    p_ref:   packed parameter slab (all weights / biases, BN folded)
    out_ref: (n_blk, S, D) block of the output features
    a_ref:   (n_blk, S, S) block of the adjacency / attention matrix
    """

    def param(name):
        r0, nr, nc = offs[name]
        return p_ref[r0:r0 + nr, 0:nc]          # static, sublane-aligned slice

    x = x_ref[...].astype(jnp.float32)                          # (n_blk, S, D)

    # phi[n, i, j, :] = |x[n, i] - x[n, j]|  (broadcast, no unrolled slices).
    phi = jnp.abs(x[:, :, None, :] - x[:, None, :, :])          # (n_blk, S, S, D)
    h = phi.reshape(n_blk * S * S, D)                           # rows = (n, i, j)

    # 1x1-conv stack == channel MLP over D (BatchNorm already folded in).
    h = _leaky(jnp.dot(h, param('w1'), preferred_element_type=jnp.float32) + param('b1'))
    h = _leaky(jnp.dot(h, param('w2'), preferred_element_type=jnp.float32) + param('b2'))
    h = _leaky(jnp.dot(h, param('w3'), preferred_element_type=jnp.float32) + param('b3'))
    h = _leaky(jnp.dot(h, param('w4'), preferred_element_type=jnp.float32) + param('b4'))

    # Final 1-output-channel 1x1 conv as a lane reduction (no 1-column MXU pass):
    # L[n, i, j] = sum_d h[n, i, j, d] * w5[d] + b5, produced directly as (S, S).
    c_last = offs['w5'][2]
    h4 = h.reshape(n_blk, S, S, c_last)
    L = jnp.sum(h4 * param('w5'), axis=-1) + param('b5')        # (n_blk, S, S)

    # softmax over j (the second node axis), matching F.softmax(A, 2).
    m = jnp.max(L, axis=-1, keepdims=True)
    e = jnp.exp(L - m)
    denom = jnp.sum(e, axis=-1, keepdims=True)
    A = e * pl.reciprocal(denom, approx=True)                   # divide on the EUP
    a_ref[...] = A.astype(a_ref.dtype)

    # Graph_conv_block: out = (A @ x) @ W_lin^T + b_lin   (use_bn=False)
    agg = jnp.einsum('nij,njd->nid', A, x,
                     preferred_element_type=jnp.float32)        # (n_blk, S, D)
    out = jnp.dot(agg.reshape(n_blk * S, D), param('wg'),
                  preferred_element_type=jnp.float32) + param('bg')
    out_ref[...] = out.reshape(n_blk, S, D).astype(out_ref.dtype)


# --------------------------- parameter packing -------------------------------

def _pack_params(params):
    """Pack the 12 small parameter arrays into one (8,128)-aligned f32 slab.

    Every entry is padded to an 8-row boundary and 128 lanes, so all in-kernel
    static slices are tile-aligned.  Returns (slab, offs) where
    offs[name] = (row_start, n_rows, n_cols) of the un-padded data.
    """
    (w1, b1, w2, b2, w3, b3, w4, b4, w5, b5, wg, bg) = params
    entries = [('w1', w1), ('w2', w2), ('w3', w3), ('w4', w4),
               ('wg', wg), ('w5', w5.T),        # w5 stored as a (1, C) row
               ('b1', b1), ('b2', b2), ('b3', b3), ('b4', b4),
               ('b5', b5), ('bg', bg)]
    width = 128
    offs, rows, r = {}, [], 0
    for name, a in entries:
        a = jnp.asarray(a, jnp.float32)
        nr, nc = int(a.shape[0]), int(a.shape[1])
        assert nc <= width
        nr_pad = -(-nr // 8) * 8
        offs[name] = (r, nr, nc)
        rows.append(jnp.pad(a, ((0, nr_pad - nr), (0, width - nc))))
        r += nr_pad
    slab = jnp.concatenate(rows, axis=0)
    return slab, offs


# ----------------------------- pallas wrapper --------------------------------

def _pallas_gnn(xg, params, n_blk=None):
    """xg: (N, S, D) float32; params: 12 small 2-D arrays (weights transposed)."""
    N, S, D = xg.shape
    if n_blk is None:
        # Coarse grid: many graphs per step (kills ~0.35 us/step pipeline
        # overhead and fattens the matmuls), but keep >= 2 grid steps so both
        # TensorCores get work on the "parallel" axis.
        n_blk = N // 2 if (N >= 2 and N % 2 == 0) else N
    assert N % n_blk == 0, (N, n_blk)
    slab, offs = _pack_params(params)

    kernel = functools.partial(_gnn_kernel, offs=offs, n_blk=n_blk, S=S, D=D)
    in_specs = [pl.BlockSpec((n_blk, S, D), lambda g: (g, 0, 0)),
                pl.BlockSpec(slab.shape, lambda g: (0, 0))]
    out_specs = (pl.BlockSpec((n_blk, S, D), lambda g: (g, 0, 0)),
                 pl.BlockSpec((n_blk, S, S), lambda g: (g, 0, 0)))
    out_shape = (jax.ShapeDtypeStruct((N, S, D), jnp.float32),
                 jax.ShapeDtypeStruct((N, S, S), jnp.float32))
    fn = pl.pallas_call(
        kernel,
        out_shape=out_shape,
        grid_spec=pltpu.PrefetchScalarGridSpec(
            num_scalar_prefetch=0,
            grid=(N // n_blk,),
            in_specs=in_specs,
            out_specs=out_specs),
        compiler_params=pltpu.CompilerParams(
            dimension_semantics=("parallel",)),
    )
    return fn(xg, slab)


# ----------------------- torch reshape glue (not hot path) -------------------

def _reshape_like_torch(x, nhead):
    """Replicates GNN_v2's permute/view/permute glue (plain JAX)."""
    S_in, B, E = x.shape
    head_dim = E // nhead
    xp = jnp.transpose(x, (1, 0, 2))                       # (B, S_in, E), contiguous
    xr = jnp.reshape(xp, (-1, B * nhead, head_dim))        # torch .view on contiguous
    xg = jnp.transpose(xr, (1, 0, 2))                      # (B*nhead, S_in, head_dim)
    return xg


def _reshape_back_like_torch(out, bsz, d_model):
    """Exact inverse of _reshape_like_torch (reshape is flat-buffer relabeling)."""
    N, S, hd = out.shape
    y = jnp.transpose(out, (1, 0, 2))                      # (S, B*nhead, hd)
    y = jnp.reshape(y, (bsz, S, d_model))                  # undo the .view
    return jnp.transpose(y, (1, 0, 2))                     # (S, bsz, d_model)


def gnn_v2_forward(x, params, nhead):
    """x: (seq, bsz, d_model).  Returns (out, A, None) like the PyTorch module."""
    xg = _reshape_like_torch(x, nhead)
    out, A = _pallas_gnn(xg, params)
    return out, A, None


def re_transformer_encoder_forward(src, layer_params, nhead):
    """Mirrors RETransformerEncoder.forward: output flows through the layer stack."""
    S, B, E = src.shape
    output, A = src, None
    for params in layer_params:
        out, A, _ = gnn_v2_forward(output, params, nhead)
        output = _reshape_back_like_torch(out, B, E)
    return output, A


# ----------------------------- parameters ------------------------------------

def make_params(key, head_dim):
    """Deterministic synthetic parameters; eval-mode BN folded into 1x1 convs."""
    D = head_dim
    ratio = [2, 2, 1, 1]
    dims = [D] + [D * r for r in ratio]        # e.g. [8, 16, 16, 8, 8]
    eps = 1e-5
    keys = iter(jax.random.split(key, 40))
    folded = []
    for i in range(len(ratio)):
        cin, cout = dims[i], dims[i + 1]
        W = jax.random.normal(next(keys), (cout, cin), jnp.float32) / jnp.sqrt(cin)
        b = 0.1 * jax.random.normal(next(keys), (cout,), jnp.float32)
        gamma = 1.0 + 0.1 * jax.random.normal(next(keys), (cout,), jnp.float32)
        beta = 0.1 * jax.random.normal(next(keys), (cout,), jnp.float32)
        rmean = 0.1 * jax.random.normal(next(keys), (cout,), jnp.float32)
        rvar = 0.5 + jnp.abs(jax.random.normal(next(keys), (cout,), jnp.float32)) * 0.5
        scale = gamma / jnp.sqrt(rvar + eps)
        shift = beta - rmean * scale
        folded.append(W.T * scale[None, :])            # (cin, cout)
        folded.append((b * scale + shift)[None, :])    # (1, cout)
    # final 1x1 conv: dims[-1] -> 1 (no BN after it)
    W5 = jax.random.normal(next(keys), (1, dims[-1]), jnp.float32) / jnp.sqrt(dims[-1])
    b5 = 0.1 * jax.random.normal(next(keys), (1,), jnp.float32)
    folded.append(W5.T)                # (dims[-1], 1)
    folded.append(b5[None, :])         # (1, 1)
    # Graph_conv_block linear D -> D
    Wg = jax.random.normal(next(keys), (D, D), jnp.float32) / jnp.sqrt(D)
    bg = 0.1 * jax.random.normal(next(keys), (D,), jnp.float32)
    folded.append(Wg.T)                # (D, D)  (pre-transposed: kernel does x @ Wg.T)
    folded.append(bg[None, :])         # (1, D)
    return folded


# ----------------------------- pure-JAX references ---------------------------

def reference_forward(x, params, nhead):
    (w1, b1, w2, b2, w3, b3, w4, b4, w5, b5, wg, bg) = params
    xg = _reshape_like_torch(x, nhead)                      # (N, S, D)
    phi = jnp.abs(xg[:, :, None, :] - xg[:, None, :, :])    # (N, S, S, D)
    h = _leaky(phi @ w1 + b1[0])
    h = _leaky(h @ w2 + b2[0])
    h = _leaky(h @ w3 + b3[0])
    h = _leaky(h @ w4 + b4[0])
    L = (h @ w5 + b5[0])[..., 0]                            # (N, S, S)
    A = jax.nn.softmax(L, axis=2)
    out = jnp.einsum('nij,njd->nid', A, xg) @ wg + bg[0]
    return out, A


def reference_encoder(src, layer_params, nhead):
    S, B, E = src.shape
    output, A = src, None
    for params in layer_params:
        out, A = reference_forward(output, params, nhead)
        output = _reshape_back_like_torch(out, B, E)
    return output, A


# ----------------------------------- main ------------------------------------

if __name__ == "__main__":
    seq, bsz, d_model, nhead, num_layers = 8, 2, 32, 4, 2
    head_dim = d_model // nhead

    x = jax.random.normal(jax.random.PRNGKey(0), (seq, bsz, d_model), dtype=jnp.float32)
    # _get_clones deep-copies a single layer, so every layer has identical params.
    layer_params = [make_params(jax.random.PRNGKey(1), head_dim)] * num_layers

    # single-layer core
    out1, A1, _ = gnn_v2_forward(x, layer_params[0], nhead)
    # stacked encoder
    enc_out, enc_A = re_transformer_encoder_forward(x, layer_params, nhead)
    out1, A1, enc_out, enc_A = jax.block_until_ready((out1, A1, enc_out, enc_A))

    ref_out1, ref_A1 = reference_forward(x, layer_params[0], nhead)
    ref_enc_out, ref_enc_A = reference_encoder(x, layer_params, nhead)

    assert out1.shape == (bsz * nhead, seq, head_dim)
    assert A1.shape == (bsz * nhead, seq, seq)
    assert enc_out.shape == (seq, bsz, d_model)
    assert bool(jnp.allclose(out1, ref_out1, atol=2e-3, rtol=2e-3))
    assert bool(jnp.allclose(A1, ref_A1, atol=2e-3, rtol=2e-3))
    assert bool(jnp.allclose(enc_out, ref_enc_out, atol=2e-3, rtol=2e-3))
    assert bool(jnp.allclose(enc_A, ref_enc_A, atol=2e-3, rtol=2e-3))

    print("KERNEL_OK")
</pallas_src>

<mosaic_0001>
module attributes {stable_mosaic.version = 11 : i64} {
  func.func @_gnn_kernel(%arg0: i32, %arg1: memref<4x8x8xf32, #tpu.memory_space<vmem>>, %arg2: memref<112x128xf32, #tpu.memory_space<vmem>>, %arg3: memref<4x8x8xf32, #tpu.memory_space<vmem>>, %arg4: memref<4x8x8xf32, #tpu.memory_space<vmem>>) attributes {dimension_semantics = [#tpu.dimension_semantics<parallel>], iteration_bounds = array<i64: 2>, scalar_prefetch = 0 : i64, scratch_operands = 0 : i64, tpu.core_type = #tpu.core_type<tc>, window_params = [{transform_indices = @transform_0, window_bounds = array<i64: 4, 8, 8>}, {pipeline_mode = #tpu.pipeline_mode<synchronous>, transform_indices = @transform_1, window_bounds = array<i64: 112, 128>}, {transform_indices = @transform_2, window_bounds = array<i64: 4, 8, 8>}, {transform_indices = @transform_3, window_bounds = array<i64: 4, 8, 8>}]} {
    %c0 = arith.constant 0 : index
    %c0_0 = arith.constant 0 : index
    %c0_1 = arith.constant 0 : index
    %0 = vector.load %arg1[%c0, %c0_0, %c0_1] : memref<4x8x8xf32, #tpu.memory_space<vmem>>, vector<4x8x8xf32>
    %1 = vector.shape_cast %0 : vector<4x8x8xf32> to vector<4x8x1x8xf32>
    %2 = vector.shape_cast %0 : vector<4x8x8xf32> to vector<4x1x8x8xf32>
    %3 = vector.broadcast %1 : vector<4x8x1x8xf32> to vector<4x8x8x8xf32>
    %4 = vector.broadcast %2 : vector<4x1x8x8xf32> to vector<4x8x8x8xf32>
    %5 = arith.subf %3, %4 : vector<4x8x8x8xf32>
    %6 = math.absf %5 : vector<4x8x8x8xf32>
    %7 = vector.shape_cast %6 : vector<4x8x8x8xf32> to vector<256x8xf32>
    %c0_2 = arith.constant 0 : index
    %c0_3 = arith.constant 0 : index
    %8 = vector.load %arg2[%c0_2, %c0_3] : memref<112x128xf32, #tpu.memory_space<vmem>>, vector<8x16xf32>
    %cst = arith.constant dense<0.000000e+00> : vector<256x16xf32>
    %9 = tpu.matmul %7, %8, %cst {dimension_numbers = #tpu.dot_dimension_numbers<[1], [0], [0], [1], [0, 0, 1, 1], [], []>} : vector<256x8xf32>, vector<8x16xf32>, vector<256x16xf32> -> vector<256x16xf32>
    %c64 = arith.constant 64 : index
    %c0_4 = arith.constant 0 : index
    %10 = vector.load %arg2[%c64, %c0_4] : memref<112x128xf32, #tpu.memory_space<vmem>>, vector<1x16xf32>
    %11 = vector.broadcast %10 : vector<1x16xf32> to vector<256x16xf32>
    %12 = arith.addf %9, %11 : vector<256x16xf32>
    %cst_5 = arith.constant 0.000000e+00 : f32
    %13 = vector.broadcast %cst_5 : f32 to vector<256x16xf32>
    %14 = arith.cmpf ogt, %12, %13 : vector<256x16xf32>
    %cst_6 = arith.constant 0.00999999977 : f32
    %15 = vector.broadcast %cst_6 : f32 to vector<256x16xf32>
    %16 = arith.mulf %15, %12 : vector<256x16xf32>
    %17 = arith.select %14, %12, %16 : vector<256x16xi1>, vector<256x16xf32>
    %c8 = arith.constant 8 : index
    %c0_7 = arith.constant 0 : index
    %18 = vector.load %arg2[%c8, %c0_7] : memref<112x128xf32, #tpu.memory_space<vmem>>, vector<16x16xf32>
    %cst_8 = arith.constant dense<0.000000e+00> : vector<256x16xf32>
    %19 = tpu.matmul %17, %18, %cst_8 {dimension_numbers = #tpu.dot_dimension_numbers<[1], [0], [0], [1], [0, 0, 1, 1], [], []>} : vector<256x16xf32>, vector<16x16xf32>, vector<256x16xf32> -> vector<256x16xf32>
    %c72 = arith.constant 72 : index
    %c0_9 = arith.constant 0 : index
    %20 = vector.load %arg2[%c72, %c0_9] : memref<112x128xf32, #tpu.memory_space<vmem>>, vector<1x16xf32>
    %21 = vector.broadcast %20 : vector<1x16xf32> to vector<256x16xf32>
    %22 = arith.addf %19, %21 : vector<256x16xf32>
    %cst_10 = arith.constant 0.000000e+00 : f32
    %23 = vector.broadcast %cst_10 : f32 to vector<256x16xf32>
    %24 = arith.cmpf ogt, %22, %23 : vector<256x16xf32>
    %cst_11 = arith.constant 0.00999999977 : f32
    %25 = vector.broadcast %cst_11 : f32 to vector<256x16xf32>
    %26 = arith.mulf %25, %22 : vector<256x16xf32>
    %27 = arith.select %24, %22, %26 : vector<256x16xi1>, vector<256x16xf32>
    %c24 = arith.constant 24 : index
    %c0_12 = arith.constant 0 : index
    %28 = vector.load %arg2[%c24, %c0_12] : memref<112x128xf32, #tpu.memory_space<vmem>>, vector<16x8xf32>
    %cst_13 = arith.constant dense<0.000000e+00> : vector<256x8xf32>
    %29 = tpu.matmul %27, %28, %cst_13 {dimension_numbers = #tpu.dot_dimension_numbers<[1], [0], [0], [1], [0, 0, 1, 1], [], []>} : vector<256x16xf32>, vector<16x8xf32>, vector<256x8xf32> -> vector<256x8xf32>
    %c80 = arith.constant 80 : index
    %c0_14 = arith.constant 0 : index
    %30 = vector.load %arg2[%c80, %c0_14] : memref<112x128xf32, #tpu.memory_space<vmem>>, vector<1x8xf32>
    %31 = vector.broadcast %30 : vector<1x8xf32> to vector<256x8xf32>
    %32 = arith.addf %29, %31 : vector<256x8xf32>
    %cst_15 = arith.constant 0.000000e+00 : f32
    %33 = vector.broadcast %cst_15 : f32 to vector<256x8xf32>
    %34 = arith.cmpf ogt, %32, %33 : vector<256x8xf32>
    %cst_16 = arith.constant 0.00999999977 : f32
    %35 = vector.broadcast %cst_16 : f32 to vector<256x8xf32>
    %36 = arith.mulf %35, %32 : vector<256x8xf32>
    %37 = arith.select %34, %32, %36 : vector<256x8xi1>, vector<256x8xf32>
    %c40 = arith.constant 40 : index
    %c0_17 = arith.constant 0 : index
    %38 = vector.load %arg2[%c40, %c0_17] : memref<112x128xf32, #tpu.memory_space<vmem>>, vector<8x8xf32>
    %cst_18 = arith.constant dense<0.000000e+00> : vector<256x8xf32>
    %39 = tpu.matmul %37, %38, %cst_18 {dimension_numbers = #tpu.dot_dimension_numbers<[1], [0], [0], [1], [0, 0, 1, 1], [], []>} : vector<256x8xf32>, vector<8x8xf32>, vector<256x8xf32> -> vector<256x8xf32>
    %c88 = arith.constant 88 : index
    %c0_19 = arith.constant 0 : index
    %40 = vector.load %arg2[%c88, %c0_19] : memref<112x128xf32, #tpu.memory_space<vmem>>, vector<1x8xf32>
    %41 = vector.broadcast %40 : vector<1x8xf32> to vector<256x8xf32>
    %42 = arith.addf %39, %41 : vector<256x8xf32>
    %cst_20 = arith.constant 0.000000e+00 : f32
    %43 = vector.broadcast %cst_20 : f32 to vector<256x8xf32>
    %44 = arith.cmpf ogt, %42, %43 : vector<256x8xf32>
    %cst_21 = arith.constant 0.00999999977 : f32
    %45 = vector.broadcast %cst_21 : f32 to vector<256x8xf32>
    %46 = arith.mulf %45, %42 : vector<256x8xf32>
    %47 = arith.select %44, %42, %46 : vector<256x8xi1>, vector<256x8xf32>
    %48 = vector.shape_cast %47 : vector<256x8xf32> to vector<4x8x8x8xf32>
    %c56 = arith.constant 56 : index
    %c0_22 = arith.constant 0 : index
    %49 = vector.load %arg2[%c56, %c0_22] : memref<112x128xf32, #tpu.memory_space<vmem>>, vector<1x8xf32>
    %50 = vector.shape_cast %49 : vector<1x8xf32> to vector<1x1x1x8xf32>
    %51 = vector.broadcast %50 : vector<1x1x1x8xf32> to vector<4x8x8x8xf32>
    %52 = arith.mulf %48, %51 : vector<4x8x8x8xf32>
    %cst_23 = arith.constant dense<0.000000e+00> : vector<4x8x8xf32>
    %53 = vector.multi_reduction <add>, %52, %cst_23 [3] : vector<4x8x8x8xf32> to vector<4x8x8xf32>
    %c96 = arith.constant 96 : index
    %c0_24 = arith.constant 0 : index
    %54 = vector.load %arg2[%c96, %c0_24] : memref<112x128xf32, #tpu.memory_space<vmem>>, vector<1x1xf32>
    %55 = vector.shape_cast %54 : vector<1x1xf32> to vector<1x1x1xf32>
    %56 = vector.broadcast %55 : vector<1x1x1xf32> to vector<4x8x8xf32>
    %57 = arith.addf %53, %56 : vector<4x8x8xf32>
    %cst_25 = arith.constant dense<0xFF800000> : vector<4x8xf32>
    %58 = vector.multi_reduction <maximumf>, %57, %cst_25 [2] : vector<4x8x8xf32> to vector<4x8xf32>
    %59 = vector.shape_cast %58 : vector<4x8xf32> to vector<4x8x1xf32>
    %60 = vector.broadcast %59 : vector<4x8x1xf32> to vector<4x8x8xf32>
    %61 = arith.subf %57, %60 : vector<4x8x8xf32>
    %62 = math.exp %61 : vector<4x8x8xf32>
    %cst_26 = arith.constant dense<0.000000e+00> : vector<4x8xf32>
    %63 = vector.multi_reduction <add>, %62, %cst_26 [2] : vector<4x8x8xf32> to vector<4x8xf32>
    %64 = vector.shape_cast %63 : vector<4x8xf32> to vector<4x8x1xf32>
    %65 = tpu.reciprocal %64 {approx = true} : vector<4x8x1xf32> -> vector<4x8x1xf32>
    %66 = vector.broadcast %65 : vector<4x8x1xf32> to vector<4x8x8xf32>
    %67 = arith.mulf %62, %66 : vector<4x8x8xf32>
    %c0_27 = arith.constant 0 : index
    %c0_28 = arith.constant 0 : index
    %c0_29 = arith.constant 0 : index
    %68 = vector.load %arg4[%c0_27, %c0_28, %c0_29] : memref<4x8x8xf32, #tpu.memory_space<vmem>>, vector<4x8x8xf32>
    tpu.vector_store %arg4[%c0_27, %c0_28, %c0_29], %67 {strides = array<i32>} : memref<4x8x8xf32, #tpu.memory_space<vmem>>, vector<4x8x8xf32>,
    "tpu.trace_start"() <{level = 10 : i32, message = "nij,njd->nid"}> : () -> ()
    %cst_30 = arith.constant dense<0.000000e+00> : vector<4x8x8xf32>
    %69 = tpu.matmul %67, %0, %cst_30 {dimension_numbers = #tpu.dot_dimension_numbers<[2], [1], [1], [2], [0, 0, 0, 1, 1, 2], [0], [0]>} : vector<4x8x8xf32>, vector<4x8x8xf32>, vector<4x8x8xf32> -> vector<4x8x8xf32>
    "tpu.trace_stop"() : () -> ()
    %70 = vector.shape_cast %69 : vector<4x8x8xf32> to vector<32x8xf32>
    %c48 = arith.constant 48 : index
    %c0_31 = arith.constant 0 : index
    %71 = vector.load %arg2[%c48, %c0_31] : memref<112x128xf32, #tpu.memory_space<vmem>>, vector<8x8xf32>
    %cst_32 = arith.constant dense<0.000000e+00> : vector<32x8xf32>
    %72 = tpu.matmul %70, %71, %cst_32 {dimension_numbers = #tpu.dot_dimension_numbers<[1], [0], [0], [1], [0, 0, 1, 1], [], []>} : vector<32x8xf32>, vector<8x8xf32>, vector<32x8xf32> -> vector<32x8xf32>
    %c104 = arith.constant 104 : index
    %c0_33 = arith.constant 0 : index
    %73 = vector.load %arg2[%c104, %c0_33] : memref<112x128xf32, #tpu.memory_space<vmem>>, vector<1x8xf32>
    %74 = vector.broadcast %73 : vector<1x8xf32> to vector<32x8xf32>
    %75 = arith.addf %72, %74 : vector<32x8xf32>
    %76 = vector.shape_cast %75 : vector<32x8xf32> to vector<4x8x8xf32>
    %c0_34 = arith.constant 0 : index
    %c0_35 = arith.constant 0 : index
    %c0_36 = arith.constant 0 : index
    %77 = vector.load %arg3[%c0_34, %c0_35, %c0_36] : memref<4x8x8xf32, #tpu.memory_space<vmem>>, vector<4x8x8xf32>
    tpu.vector_store %arg3[%c0_34, %c0_35, %c0_36], %76 {strides = array<i32>} : memref<4x8x8xf32, #tpu.memory_space<vmem>>, vector<4x8x8xf32>,
    return
  }
  func.func @transform_0(%arg0: i32) -> (i32, i32, i32) {
    %c0_i32 = arith.constant 0 : i32
    %c0_i32_0 = arith.constant 0 : i32
    %c0_i32_1 = arith.constant 0 : i32
    return %arg0, %c0_i32, %c0_i32_0 : i32, i32, i32
  }
  func.func @transform_1(%arg0: i32) -> (i32, i32) {
    %c0_i32 = arith.constant 0 : i32
    %c0_i32_0 = arith.constant 0 : i32
    %c0_i32_1 = arith.constant 0 : i32
    return %c0_i32, %c0_i32_0 : i32, i32
  }
  func.func @transform_2(%arg0: i32) -> (i32, i32, i32) {
    %c0_i32 = arith.constant 0 : i32
    %c0_i32_0 = arith.constant 0 : i32
    %c0_i32_1 = arith.constant 0 : i32
    return %arg0, %c0_i32, %c0_i32_0 : i32, i32, i32
  }
  func.func @transform_3(%arg0: i32) -> (i32, i32, i32) {
    %c0_i32 = arith.constant 0 : i32
    %c0_i32_0 = arith.constant 0 : i32
    %c0_i32_1 = arith.constant 0 : i32
    return %arg0, %c0_i32, %c0_i32_0 : i32, i32, i32
  }
}

</mosaic_0001>

<llo_original>
// kernel: tpu_custom_call.1
$region0: #{tpu_custom_call.1}
  #allocation0 [shape = 'u32[]', space=smem, size = 0x4, offset = 0x4, fixed_abs, tag = 'smem constant byte address 0x4 - core index']
  #allocation1 [shape = 'u32[144,128]{1,0:T(1,128)}', space=vmem, size = 0x12000, scoped, tag = 'internal scratch']
  %s0 = inlined_call_operand.hbm [shape: f32[8,8,8], index: 0, kind: input, shape index: {}]
  %s1 = inlined_call_operand.hbm [shape: f32[112,128], index: 1, kind: input, shape index: {}]
  %s2 = inlined_call_operand.hbm [shape: f32[8,8,8], index: 2, kind: output, shape index: {0}]
  %s3 = inlined_call_operand.hbm [shape: f32[8,8,8], index: 3, kind: output, shape index: {1}]
  %4 = xla_tuple %s2, %s3
  %s5 = sld [smem:[#allocation0]]
  $region57: #{tpu_custom_call.1} parent=0
    _
  %s7 = ssub.s32 1, %s5
  %s8 = scalar_select 0, %s7, %s5
  $region1: #{tpu_custom_call.1} parent=0
    #allocation2 [shape = 'u8[32768]{0}', space=vmem, size = 0x8000, scoped, tag = 'input window, operand 0']
    #allocation3 [shape = 's32[2]{0}', space=sflag, size = 0x8, scoped, tag = 'scoped memory for tpu_custom_call.1']
    #allocation4 [shape = 's32[2]{0}', space=sflag, size = 0x8, scoped, tag = 'scoped memory for tpu_custom_call.1']
    #allocation5 [shape = 'u8[57344]{0}', space=vmem, size = 0xe000, scoped, tag = 'input window, operand 1, single buffered']
    #allocation6 [shape = 's32[1]{0}', space=sflag, size = 0x4, scoped, tag = 'scoped memory for tpu_custom_call.1']
    #allocation7 [shape = 'u8[32768]{0}', space=vmem, size = 0x8000, scoped, tag = 'output window, operand 0']
    #allocation8 [shape = 'u8[32768]{0}', space=vmem, size = 0x8000, scoped, tag = 'output window, operand 1']
    #allocation9 [shape = 's32[2]{0}', space=sflag, size = 0x8, scoped, tag = 'scoped memory for tpu_custom_call.1']
    %9 = vsyncpa [#allocation3], 0
    %s10 = scalar_lea.sflag [#allocation3], 1
    %11 = vsyncpa %s10, 0
    %12 = vsyncpa [#allocation6], 0
    %13 = vsyncpa [#allocation4], 0
    %s14 = scalar_lea.sflag [#allocation4], 1
    %15 = vsyncpa %s14, 0
    %16 = vsyncpa [#allocation9], 0
    %s17 = scalar_lea.sflag [#allocation9], 1
    %18 = vsyncpa %s17, 0
    loop: start=0, step=1, limit=4
    $region2: #{tpu_custom_call.1} parent=1 // loop_pre_header
      _
    $region3: #{tpu_custom_call.1} parent=1 // loop_header
      %s20 = sphi 0, %s24
      %p21 = scmp.ge.s32.totalorder %s20, 4
      %s30 = sphi 0, %s32
      %s33 = sphi 0, %s30
      %s34 = sphi 0, %s33
      %s50 = sphi 0, %s34
      %s54 = sphi 0, %s54
      %s56 = sphi 0, %s54
      %s57 = sphi 0, %s56
      %s71 = sphi 0, %s57
      %s77 = sphi 0, %s79
      %s80 = sphi 0, %s77
      %s81 = sphi 0, %s80
      %s97 = sphi 0, %s81
      %s103 = sphi 0, %s105
      %s106 = sphi 0, %s103
      %s107 = sphi 0, %s106
      %s123 = sphi 0, %s107
    $region4: #{tpu_custom_call.1} parent=1 // loop_header_branch
      %23 = sbr.rel (%p21) target = $region8
    $region5: #{tpu_custom_call.1} parent=1 // loop_body
      %s25 = ssub.s32 %s20, 1
      %s26 = ssub.s32 %s20, 2
      %s27 = sadd.s32 %s20, 1
      %s28 = ssub.s32 %s20, %s27
      %p29 = scmp.eq.s32.totalorder %s28, 0
      %s31 = sadd.s32 %s30, 1
      %s32 = scalar_select %p29, %s30, %s31
      %p35 = pneg %p29
      %p36 = scmp.eq.s32.totalorder %s20, 1
      %p37 = por %p35, %p36
      %p38 = scmp.ne.s32.totalorder %s30, %s33
      %p39 = scmp.eq.s32.totalorder %s20, 0
      %p40 = por %p38, %p39
      %p41 = scmp.ne.s32.totalorder %s30, %s33
      %p42 = scmp.eq.s32.totalorder %s25, 1
      %p43 = por %p41, %p42
      %p44 = scmp.ne.s32.totalorder %s33, %s34
      %p45 = scmp.eq.s32.totalorder %s25, 0
      %p46 = por %p44, %p45
      %p47 = scmp.ne.s32.totalorder %s33, %s34
      %p48 = scmp.eq.s32.totalorder %s26, 1
      %p49 = por %p47, %p48
      %p51 = scmp.ne.s32.totalorder %s34, %s50
      %p52 = scmp.eq.s32.totalorder %s26, 0
      %p53 = por %p51, %p52
      %s55 = sadd.s32 %s54, 1
      %p58 = scmp.eq.s32.totalorder %s20, 1
      %p59 = scmp.ne.s32.totalorder %s54, %s56
      %p60 = scmp.eq.s32.totalorder %s20, 0
      %p61 = por %p59, %p60
      %p62 = scmp.ne.s32.totalorder %s54, %s56
      %p63 = scmp.eq.s32.totalorder %s25, 1
      %p64 = por %p62, %p63
      %p65 = scmp.ne.s32.totalorder %s56, %s57
      %p66 = scmp.eq.s32.totalorder %s25, 0
      %p67 = por %p65, %p66
      %p68 = scmp.ne.s32.totalorder %s56, %s57
      %p69 = scmp.eq.s32.totalorder %s26, 1
      %p70 = por %p68, %p69
      %p72 = scmp.ne.s32.totalorder %s57, %s71
      %p73 = scmp.eq.s32.totalorder %s26, 0
      %p74 = por %p72, %p73
      %s75 = ssub.s32 %s20, %s27
      %p76 = scmp.eq.s32.totalorder %s75, 0
      %s78 = sadd.s32 %s77, 1
      %s79 = scalar_select %p76, %s77, %s78
      %p82 = pneg %p76
      %p83 = scmp.eq.s32.totalorder %s20, 1
      %p84 = por %p82, %p83
      %p85 = scmp.ne.s32.totalorder %s77, %s80
      %p86 = scmp.eq.s32.totalorder %s20, 0
      %p87 = por %p85, %p86
      %p88 = scmp.ne.s32.totalorder %s77, %s80
      %p89 = scmp.eq.s32.totalorder %s25, 1
      %p90 = por %p88, %p89
      %p91 = scmp.ne.s32.totalorder %s80, %s81
      %p92 = scmp.eq.s32.totalorder %s25, 0
      %p93 = por %p91, %p92
      %p94 = scmp.ne.s32.totalorder %s80, %s81
      %p95 = scmp.eq.s32.totalorder %s26, 1
      %p96 = por %p94, %p95
      %p98 = scmp.ne.s32.totalorder %s81, %s97
      %p99 = scmp.eq.s32.totalorder %s26, 0
      %p100 = por %p98, %p99
      %s101 = ssub.s32 %s20, %s27
      %p102 = scmp.eq.s32.totalorder %s101, 0
      %s104 = sadd.s32 %s103, 1
      %s105 = scalar_select %p102, %s103, %s104
      %p108 = pneg %p102
      %p109 = scmp.eq.s32.totalorder %s20, 1
      %p110 = por %p108, %p109
      %p111 = scmp.ne.s32.totalorder %s103, %s106
      %p112 = scmp.eq.s32.totalorder %s20, 0
      %p113 = por %p111, %p112
      %p114 = scmp.ne.s32.totalorder %s103, %s106
      %p115 = scmp.eq.s32.totalorder %s25, 1
      %p116 = por %p114, %p115
      %p117 = scmp.ne.s32.totalorder %s106, %s107
      %p118 = scmp.eq.s32.totalorder %s25, 0
      %p119 = por %p117, %p118
      %p120 = scmp.ne.s32.totalorder %s106, %s107
      %p121 = scmp.eq.s32.totalorder %s26, 1
      %p122 = por %p120, %p121
      %p124 = scmp.ne.s32.totalorder %s107, %s123
      %p125 = scmp.eq.s32.totalorder %s26, 0
      %p126 = por %p124, %p125
      %p127 = scmp.le.s32.totalorder 1, %s20
      %p128 = scmp.lt.s32.totalorder %s20, 3
      %p129 = pnand %p127, %p128
      %p130 = pneg %p129
      // Predicated region
      $region9: #{tpu_custom_call.1} parent=5 // pred_check
        _
      $region10: #{tpu_custom_call.1} parent=5 // pred_check_branch
        %132 = sbr.rel (%p129) target = $region12
      $region11: #{tpu_custom_call.1} parent=5 // pred_region
        %s133 = ssub.s32 %s20, 1
        // Predicated region
        $region13: #{tpu_custom_call.1} parent=11 // pred_check
          %p134 = pneg %p67
        $region14: #{tpu_custom_call.1} parent=11 // pred_check_branch
          %136 = sbr.rel (%p134) target = $region16
        $region15: #{tpu_custom_call.1} parent=11 // pred_region
          %s138 = ssub.s32 1792, 1792
          %139 = vsyncadd [#allocation6], %s138
          %s140 = sshll.u32 [#allocation5], 4
          %s141 = int_to_ptr.vmem [resolvable:$true] %s140
          %146 = dma.hbm_to_vmem [thread:$0]  %s1, 1792, %s141, [#allocation6], 128, 128, 8
        $region16: #{tpu_custom_call.1} parent=11 // pred_fallthru
          _
      $region12: #{tpu_custom_call.1} parent=5 // pred_fallthru
        _
      %p147 = scmp.lt.s32.totalorder %s20, 2
      // Predicated region
      $region17: #{tpu_custom_call.1} parent=5 // pred_check
        %p148 = pneg %p147
      $region18: #{tpu_custom_call.1} parent=5 // pred_check_branch
        %150 = sbr.rel (%p148) target = $region20
      $region19: #{tpu_custom_call.1} parent=5 // pred_region
        // Predicated region
        $region21: #{tpu_custom_call.1} parent=19 // pred_check
          %p151 = pneg %p40
        $region22: #{tpu_custom_call.1} parent=19 // pred_check_branch
          %153 = sbr.rel (%p151) target = $region24
        $region23: #{tpu_custom_call.1} parent=19 // pred_region
          %s154 = sand.u32 %s30, 1
          %s155 = scalar_lea.sflag [#allocation3], %s154
          %s156 = sand.u32 %s30, 1
          %s157 = smul.addr %s156, 32
          %s158 = scalar_lea.vmem [#allocation2], %s157
          %s159 = smul.u32 4, %s20
          %s161 = ssub.s32 512, 512
          %162 = vsyncadd %s155, %s161
          %s163 = smul.addr %s159, 128
          %s164 = scalar_lea.hbm %s0, %s163
          %s165 = sshll.u32 %s158, 4
          %s166 = int_to_ptr.vmem [resolvable:$true] %s165
          %171 = dma.hbm_to_vmem [thread:$0]  %s164, 512, %s166, %s155, 128, 128, 8
        $region24: #{tpu_custom_call.1} parent=19 // pred_fallthru
          _
      $region20: #{tpu_custom_call.1} parent=5 // pred_fallthru
        _
      %p172 = scmp.le.s32.totalorder 1, %s20
      %p173 = scmp.lt.s32.totalorder %s20, 3
      %p174 = pnand %p172, %p173
      %p175 = pneg %p174
      // Predicated region
      $region25: #{tpu_custom_call.1} parent=5 // pred_check
        _
      $region26: #{tpu_custom_call.1} parent=5 // pred_check_branch
        %177 = sbr.rel (%p174) target = $region28
      $region27: #{tpu_custom_call.1} parent=5 // pred_region
        %s178 = ssub.s32 %s20, 1
        %s179 = sand.u32 %s33, 1
        %s180 = scalar_lea.sflag [#allocation3], %s179
        %s181 = sand.u32 %s33, 1
        %s182 = smul.addr %s181, 32
        %s183 = scalar_lea.vmem [#allocation2], %s182
        // Predicated region
        $region29: #{tpu_custom_call.1} parent=27 // pred_check
          %p184 = pneg %p46
        $region30: #{tpu_custom_call.1} parent=27 // pred_check_branch
          %186 = sbr.rel (%p184) target = $region32
        $region31: #{tpu_custom_call.1} parent=27 // pred_region
          %187 = dma.done %s180, 512
        $region32: #{tpu_custom_call.1} parent=27 // pred_fallthru
          _
        // Predicated region
        $region33: #{tpu_custom_call.1} parent=27 // pred_check
          %p188 = pneg %p67
        $region34: #{tpu_custom_call.1} parent=27 // pred_check_branch
          %190 = sbr.rel (%p188) target = $region36
        $region35: #{tpu_custom_call.1} parent=27 // pred_region
          %191 = dma.done [#allocation6], 1792
        $region36: #{tpu_custom_call.1} parent=27 // pred_fallthru
          _
        %s192 = sand.u32 %s33, 1
        %s193 = scalar_lea.sflag [#allocation3], %s192
        %s194 = sand.u32 %s33, 1
        %s195 = smul.addr %s194, 32
        %s196 = scalar_lea.vmem [#allocation2], %s195
        %p197 = pneg %p46
        %p198 = pneg %p43
        %p199 = pneg %p67
        %p200 = pneg %p64
        %p201 = pneg %p93
        %p202 = pneg %p90
        %s203 = sand.u32 %s80, 1
        %s204 = scalar_lea.sflag [#allocation4], %s203
        %s205 = sand.u32 %s80, 1
        %s206 = smul.addr %s205, 32
        %s207 = scalar_lea.vmem [#allocation7], %s206
        %p208 = pneg %p119
        %p209 = pneg %p116
        %s210 = sand.u32 %s106, 1
        %s211 = scalar_lea.sflag [#allocation9], %s210
        %s212 = sand.u32 %s106, 1
        %s213 = smul.addr %s212, 32
        %s214 = scalar_lea.vmem [#allocation8], %s213
        %s215 = smul.u32 4, %s25
        %s216 = smul.u32 4, %s25
        %s217 = smul.u32 4, %s25
        %v218 = vld [vmem:[%s183] sm:$0xff]
        %v219 = vld [vmem:[%s183 + $0x8] sm:$0xff]
        %v220 = vld [vmem:[%s183 + $0x10] sm:$0xff]
        %v221 = vld [vmem:[%s183 + $0x18] sm:$0xff]
        %v226 = vcombine.high %v218, %v218
        %v228 = vunpack.c.l.s4 1966171168
        %v229 = vunpack.c.0.s8 %v228
        %v230 = vlaneseq
        %v231 = vshrl.u32 %v230, 7
        %v232 = vsub.s32 %v229, %v231
        %v233 = vrot.slane %v218, %v232
        %v235 = vunpack.c.l.s4 1966171168
        %v236 = vunpack.c.0.s8 %v235
        %v237 = vlaneseq
        %v238 = vshrl.u32 %v237, 7
        %v239 = vsub.s32 %v236, %v238
        %v240 = vrot.slane %v226, %v239
        %v241 = vcombine.high %v233, %v233
        %v242 = vcombine.high %v240, %v240
        %v244 = vunpack.c.l.s4 1966171168
        %v245 = vunpack.c.0.s8 %v244
        %v246 = vlaneseq
        %v247 = vshrl.u32 %v246, 7
        %v248 = vsub.s32 %v245, %v247
        %v249 = vrot.slane %v233, %v248
        %v251 = vunpack.c.l.s4 1966171168
        %v252 = vunpack.c.0.s8 %v251
        %v253 = vlaneseq
        %v254 = vshrl.u32 %v253, 7
        %v255 = vsub.s32 %v252, %v254
        %v256 = vrot.slane %v240, %v255
        %v258 = vunpack.c.l.s4 1966171168
        %v259 = vunpack.c.0.s8 %v258
        %v260 = vlaneseq
        %v261 = vshrl.u32 %v260, 7
        %v262 = vsub.s32 %v259, %v261
        %v263 = vrot.slane %v241, %v262
        %v265 = vunpack.c.l.s4 1966171168
        %v266 = vunpack.c.0.s8 %v265
        %v267 = vlaneseq
        %v268 = vshrl.u32 %v267, 7
        %v269 = vsub.s32 %v266, %v268
        %v270 = vrot.slane %v242, %v269
        %v271 = vcombine.high %v249, %v249
        %v272 = vcombine.high %v256, %v256
        %v273 = vcombine.high %v263, %v263
        %v274 = vcombine.high %v270, %v270
        %v275 = vcombine.high %v219, %v219
        %v277 = vunpack.c.l.s4 1966171168
        %v278 = vunpack.c.0.s8 %v277
        %v279 = vlaneseq
        %v280 = vshrl.u32 %v279, 7
        %v281 = vsub.s32 %v278, %v280
        %v282 = vrot.slane %v219, %v281
        %v284 = vunpack.c.l.s4 1966171168
        %v285 = vunpack.c.0.s8 %v284
        %v286 = vlaneseq
        %v287 = vshrl.u32 %v286, 7
        %v288 = vsub.s32 %v285, %v287
        %v289 = vrot.slane %v275, %v288
        %v290 = vcombine.high %v282, %v282
        %v291 = vcombine.high %v289, %v289
        %v293 = vunpack.c.l.s4 1966171168
        %v294 = vunpack.c.0.s8 %v293
        %v295 = vlaneseq
        %v296 = vshrl.u32 %v295, 7
        %v297 = vsub.s32 %v294, %v296
        %v298 = vrot.slane %v282, %v297
        %v300 = vunpack.c.l.s4 1966171168
        %v301 = vunpack.c.0.s8 %v300
        %v302 = vlaneseq
        %v303 = vshrl.u32 %v302, 7
        %v304 = vsub.s32 %v301, %v303
        %v305 = vrot.slane %v289, %v304
        %v307 = vunpack.c.l.s4 1966171168
        %v308 = vunpack.c.0.s8 %v307
        %v309 = vlaneseq
        %v310 = vshrl.u32 %v309, 7
        %v311 = vsub.s32 %v308, %v310
        %v312 = vrot.slane %v290, %v311
        %v314 = vunpack.c.l.s4 1966171168
        %v315 = vunpack.c.0.s8 %v314
        %v316 = vlaneseq
        %v317 = vshrl.u32 %v316, 7
        %v318 = vsub.s32 %v315, %v317
        %v319 = vrot.slane %v291, %v318
        %v320 = vcombine.high %v298, %v298
        %v321 = vcombine.high %v305, %v305
        %v322 = vcombine.high %v312, %v312
        %v323 = vcombine.high %v319, %v319
        %v324 = vcombine.high %v220, %v220
        %v326 = vunpack.c.l.s4 1966171168
        %v327 = vunpack.c.0.s8 %v326
        %v328 = vlaneseq
        %v329 = vshrl.u32 %v328, 7
        %v330 = vsub.s32 %v327, %v329
        %v331 = vrot.slane %v220, %v330
        %v333 = vunpack.c.l.s4 1966171168
        %v334 = vunpack.c.0.s8 %v333
        %v335 = vlaneseq
        %v336 = vshrl.u32 %v335, 7
        %v337 = vsub.s32 %v334, %v336
        %v338 = vrot.slane %v324, %v337
        %v339 = vcombine.high %v331, %v331
        %v340 = vcombine.high %v338, %v338
        %v342 = vunpack.c.l.s4 1966171168
        %v343 = vunpack.c.0.s8 %v342
        %v344 = vlaneseq
        %v345 = vshrl.u32 %v344, 7
        %v346 = vsub.s32 %v343, %v345
        %v347 = vrot.slane %v331, %v346
        %v349 = vunpack.c.l.s4 1966171168
        %v350 = vunpack.c.0.s8 %v349
        %v351 = vlaneseq
        %v352 = vshrl.u32 %v351, 7
        %v353 = vsub.s32 %v350, %v352
        %v354 = vrot.slane %v338, %v353
        %v356 = vunpack.c.l.s4 1966171168
        %v357 = vunpack.c.0.s8 %v356
        %v358 = vlaneseq
        %v359 = vshrl.u32 %v358, 7
        %v360 = vsub.s32 %v357, %v359
        %v361 = vrot.slane %v339, %v360
        %v363 = vunpack.c.l.s4 1966171168
        %v364 = vunpack.c.0.s8 %v363
        %v365 = vlaneseq
        %v366 = vshrl.u32 %v365, 7
        %v367 = vsub.s32 %v364, %v366
        %v368 = vrot.slane %v340, %v367
        %v369 = vcombine.high %v347, %v347
        %v370 = vcombine.high %v354, %v354
        %v371 = vcombine.high %v361, %v361
        %v372 = vcombine.high %v368, %v368
        %v373 = vcombine.high %v221, %v221
        %v375 = vunpack.c.l.s4 1966171168
        %v376 = vunpack.c.0.s8 %v375
        %v377 = vlaneseq
        %v378 = vshrl.u32 %v377, 7
        %v379 = vsub.s32 %v376, %v378
        %v380 = vrot.slane %v221, %v379
        %v382 = vunpack.c.l.s4 1966171168
        %v383 = vunpack.c.0.s8 %v382
        %v384 = vlaneseq
        %v385 = vshrl.u32 %v384, 7
        %v386 = vsub.s32 %v383, %v385
        %v387 = vrot.slane %v373, %v386
        %v388 = vcombine.high %v380, %v380
        %v389 = vcombine.high %v387, %v387
        %v391 = vunpack.c.l.s4 1966171168
        %v392 = vunpack.c.0.s8 %v391
        %v393 = vlaneseq
        %v394 = vshrl.u32 %v393, 7
        %v395 = vsub.s32 %v392, %v394
        %v396 = vrot.slane %v380, %v395
        %v398 = vunpack.c.l.s4 1966171168
        %v399 = vunpack.c.0.s8 %v398
        %v400 = vlaneseq
        %v401 = vshrl.u32 %v400, 7
        %v402 = vsub.s32 %v399, %v401
        %v403 = vrot.slane %v387, %v402
        %v405 = vunpack.c.l.s4 1966171168
        %v406 = vunpack.c.0.s8 %v405
        %v407 = vlaneseq
        %v408 = vshrl.u32 %v407, 7
        %v409 = vsub.s32 %v406, %v408
        %v410 = vrot.slane %v388, %v409
        %v412 = vunpack.c.l.s4 1966171168
        %v413 = vunpack.c.0.s8 %v412
        %v414 = vlaneseq
        %v415 = vshrl.u32 %v414, 7
        %v416 = vsub.s32 %v413, %v415
        %v417 = vrot.slane %v389, %v416
        %v418 = vcombine.high %v396, %v396
        %v419 = vcombine.high %v403, %v403
        %v420 = vcombine.high %v410, %v410
        %v421 = vcombine.high %v417, %v417
        %v422 = vlaneseq
        %v423 = vshrl.u32 %v422, 7
        %v424 = vsub.s32 0, %v423
        %v425 = vrot.slane %v249, %v424
        %v426 = vlaneseq
        %v427 = vshrl.u32 %v426, 7
        %v428 = vsub.s32 0, %v427
        %v429 = vrot.slane %v263, %v428
        %v430 = vlaneseq
        %v431 = vshrl.u32 %v430, 7
        %v432 = vsub.s32 0, %v431
        %v433 = vrot.slane %v271, %v432
        %v434 = vlaneseq
        %v435 = vshrl.u32 %v434, 7
        %v436 = vsub.s32 0, %v435
        %v437 = vrot.slane %v273, %v436
        %v438 = vlaneseq
        %v439 = vshrl.u32 %v438, 7
        %v440 = vsub.s32 0, %v439
        %v441 = vrot.slane %v256, %v440
        %v442 = vlaneseq
        %v443 = vshrl.u32 %v442, 7
        %v444 = vsub.s32 0, %v443
        %v445 = vrot.slane %v270, %v444
        %v446 = vlaneseq
        %v447 = vshrl.u32 %v446, 7
        %v448 = vsub.s32 0, %v447
        %v449 = vrot.slane %v272, %v448
        %v450 = vlaneseq
        %v451 = vshrl.u32 %v450, 7
        %v452 = vsub.s32 0, %v451
        %v453 = vrot.slane %v274, %v452
        %v454 = vlaneseq
        %v455 = vshrl.u32 %v454, 7
        %v456 = vsub.s32 0, %v455
        %v457 = vrot.slane %v298, %v456
        %v458 = vlaneseq
        %v459 = vshrl.u32 %v458, 7
        %v460 = vsub.s32 0, %v459
        %v461 = vrot.slane %v312, %v460
        %v462 = vlaneseq
        %v463 = vshrl.u32 %v462, 7
        %v464 = vsub.s32 0, %v463
        %v465 = vrot.slane %v320, %v464
        %v466 = vlaneseq
        %v467 = vshrl.u32 %v466, 7
        %v468 = vsub.s32 0, %v467
        %v469 = vrot.slane %v322, %v468
        %v470 = vlaneseq
        %v471 = vshrl.u32 %v470, 7
        %v472 = vsub.s32 0, %v471
        %v473 = vrot.slane %v305, %v472
        %v474 = vlaneseq
        %v475 = vshrl.u32 %v474, 7
        %v476 = vsub.s32 0, %v475
        %v477 = vrot.slane %v319, %v476
        %v478 = vlaneseq
        %v479 = vshrl.u32 %v478, 7
        %v480 = vsub.s32 0, %v479
        %v481 = vrot.slane %v321, %v480
        %v482 = vlaneseq
        %v483 = vshrl.u32 %v482, 7
        %v484 = vsub.s32 0, %v483
        %v485 = vrot.slane %v323, %v484
        %v486 = vlaneseq
        %v487 = vshrl.u32 %v486, 7
        %v488 = vsub.s32 0, %v487
        %v489 = vrot.slane %v347, %v488
        %v490 = vlaneseq
        %v491 = vshrl.u32 %v490, 7
        %v492 = vsub.s32 0, %v491
        %v493 = vrot.slane %v361, %v492
        %v494 = vlaneseq
        %v495 = vshrl.u32 %v494, 7
        %v496 = vsub.s32 0, %v495
        %v497 = vrot.slane %v369, %v496
        %v498 = vlaneseq
        %v499 = vshrl.u32 %v498, 7
        %v500 = vsub.s32 0, %v499
        %v501 = vrot.slane %v371, %v500
        %v502 = vlaneseq
        %v503 = vshrl.u32 %v502, 7
        %v504 = vsub.s32 0, %v503
        %v505 = vrot.slane %v354, %v504
        %v506 = vlaneseq
        %v507 = vshrl.u32 %v506, 7
        %v508 = vsub.s32 0, %v507
        %v509 = vrot.slane %v368, %v508
        %v510 = vlaneseq
        %v511 = vshrl.u32 %v510, 7
        %v512 = vsub.s32 0, %v511
        %v513 = vrot.slane %v370, %v512
        %v514 = vlaneseq
        %v515 = vshrl.u32 %v514, 7
        %v516 = vsub.s32 0, %v515
        %v517 = vrot.slane %v372, %v516
        %v518 = vlaneseq
        %v519 = vshrl.u32 %v518, 7
        %v520 = vsub.s32 0, %v519
        %v521 = vrot.slane %v396, %v520
        %v522 = vlaneseq
        %v523 = vshrl.u32 %v522, 7
        %v524 = vsub.s32 0, %v523
        %v525 = vrot.slane %v410, %v524
        %v526 = vlaneseq
        %v527 = vshrl.u32 %v526, 7
        %v528 = vsub.s32 0, %v527
        %v529 = vrot.slane %v418, %v528
        %v530 = vlaneseq
        %v531 = vshrl.u32 %v530, 7
        %v532 = vsub.s32 0, %v531
        %v533 = vrot.slane %v420, %v532
        %v534 = vlaneseq
        %v535 = vshrl.u32 %v534, 7
        %v536 = vsub.s32 0, %v535
        %v537 = vrot.slane %v403, %v536
        %v538 = vlaneseq
        %v539 = vshrl.u32 %v538, 7
        %v540 = vsub.s32 0, %v539
        %v541 = vrot.slane %v417, %v540
        %v542 = vlaneseq
        %v543 = vshrl.u32 %v542, 7
        %v544 = vsub.s32 0, %v543
        %v545 = vrot.slane %v419, %v544
        %v546 = vlaneseq
        %v547 = vshrl.u32 %v546, 7
        %v548 = vsub.s32 0, %v547
        %v549 = vrot.slane %v421, %v548
        %v582 = vsub.f32 %v425, %v218
        %v583 = vsub.f32 %v429, %v218
        %v584 = vsub.f32 %v433, %v218
        %v585 = vsub.f32 %v437, %v218
        %v586 = vsub.f32 %v441, %v218
        %v587 = vsub.f32 %v445, %v218
        %v588 = vsub.f32 %v449, %v218
        %v589 = vsub.f32 %v453, %v218
        %v590 = vsub.f32 %v457, %v219
        %v591 = vsub.f32 %v461, %v219
        %v592 = vsub.f32 %v465, %v219
        %v593 = vsub.f32 %v469, %v219
        %v594 = vsub.f32 %v473, %v219
        %v595 = vsub.f32 %v477, %v219
        %v596 = vsub.f32 %v481, %v219
        %v597 = vsub.f32 %v485, %v219
        %v598 = vsub.f32 %v489, %v220
        %v599 = vsub.f32 %v493, %v220
        %v600 = vsub.f32 %v497, %v220
        %v601 = vsub.f32 %v501, %v220
        %v602 = vsub.f32 %v505, %v220
        %v603 = vsub.f32 %v509, %v220
        %v604 = vsub.f32 %v513, %v220
        %v605 = vsub.f32 %v517, %v220
        %v606 = vsub.f32 %v521, %v221
        %v607 = vsub.f32 %v525, %v221
        %v608 = vsub.f32 %v529, %v221
        %v609 = vsub.f32 %v533, %v221
        %v610 = vsub.f32 %v537, %v221
        %v611 = vsub.f32 %v541, %v221
        %v612 = vsub.f32 %v545, %v221
        %v613 = vsub.f32 %v549, %v221
        %v614 = vand.u32 2147483647, %v582
        %v615 = vand.u32 2147483647, %v583
        %v616 = vand.u32 2147483647, %v584
        %v617 = vand.u32 2147483647, %v585
        %v618 = vand.u32 2147483647, %v586
        %v619 = vand.u32 2147483647, %v587
        %v620 = vand.u32 2147483647, %v588
        %v621 = vand.u32 2147483647, %v589
        %v622 = vand.u32 2147483647, %v590
        %v623 = vand.u32 2147483647, %v591
        %v624 = vand.u32 2147483647, %v592
        %v625 = vand.u32 2147483647, %v593
        %v626 = vand.u32 2147483647, %v594
        %v627 = vand.u32 2147483647, %v595
        %v628 = vand.u32 2147483647, %v596
        %v629 = vand.u32 2147483647, %v597
        %v630 = vand.u32 2147483647, %v598
        %v631 = vand.u32 2147483647, %v599
        %v632 = vand.u32 2147483647, %v600
        %v633 = vand.u32 2147483647, %v601
        %v634 = vand.u32 2147483647, %v602
        %v635 = vand.u32 2147483647, %v603
        %v636 = vand.u32 2147483647, %v604
        %v637 = vand.u32 2147483647, %v605
        %v638 = vand.u32 2147483647, %v606
        %v639 = vand.u32 2147483647, %v607
        %v640 = vand.u32 2147483647, %v608
        %v641 = vand.u32 2147483647, %v609
        %v642 = vand.u32 2147483647, %v610
        %v643 = vand.u32 2147483647, %v611
        %v644 = vand.u32 2147483647, %v612
        %v645 = vand.u32 2147483647, %v613
        %v646 = vld [vmem:[#allocation5] sm:$0xff]
        %v647 = vld [vmem:[#allocation5 + $0x40] sm:$0x1]
        %v648 = vlaneseq
        %v649 = vshrl.u32 %v648, 7
        %v650 = vsub.s32 0, %v649
        %v651 = vrot.slane %v647, %v650
        %vm652 = vcmask 64512
        %v654 = vsel %vm652, %v614, 0
        %v657 = vsel %vm652, %v615, 0
        %v660 = vsel %vm652, %v616, 0
        %v663 = vsel %vm652, %v617, 0
        %v666 = vsel %vm652, %v618, 0
        %v669 = vsel %vm652, %v619, 0
        %v672 = vsel %vm652, %v620, 0
        %v675 = vsel %vm652, %v621, 0
        %v678 = vsel %vm652, %v622, 0
        %v681 = vsel %vm652, %v623, 0
        %v684 = vsel %vm652, %v624, 0
        %v687 = vsel %vm652, %v625, 0
        %v690 = vsel %vm652, %v626, 0
        %v693 = vsel %vm652, %v627, 0
        %v696 = vsel %vm652, %v628, 0
        %v699 = vsel %vm652, %v629, 0
        %v702 = vsel %vm652, %v630, 0
        %v705 = vsel %vm652, %v631, 0
        %v708 = vsel %vm652, %v632, 0
        %v711 = vsel %vm652, %v633, 0
        %v714 = vsel %vm652, %v634, 0
        %v717 = vsel %vm652, %v635, 0
        %v720 = vsel %vm652, %v636, 0
        %v723 = vsel %vm652, %v637, 0
        %v726 = vsel %vm652, %v638, 0
        %v729 = vsel %vm652, %v639, 0
        %v732 = vsel %vm652, %v640, 0
        %v735 = vsel %vm652, %v641, 0
        %v738 = vsel %vm652, %v642, 0
        %v741 = vsel %vm652, %v643, 0
        %v744 = vsel %vm652, %v644, 0
        %v747 = vsel %vm652, %v645, 0
        %749 = vmatprep.subr.mxu0 0.0
        %750 = vmatpush1.msra.mxu0 %v646
        %751 = vmatprep.subr.mxu0 0.0
        %752 = vmatpush1.msra.mxu0 0.0
        %753 = vmatprep.subr.mxu0 0.0
        %754 = vmatpush1.msra.mxu0 0.0
        %755 = vmatprep.subr.mxu0 0.0
        %756 = vmatpush1.msra.mxu0 0.0
        %757 = vmatprep.subr.mxu0 0.0
        %758 = vmatpush1.msra.mxu0 0.0
        %759 = vmatprep.subr.mxu0 0.0
        %760 = vmatpush1.msra.mxu0 0.0
        %761 = vmatprep.subr.mxu0 0.0
        %762 = vmatpush1.msra.mxu0 0.0
        %763 = vmatprep.subr.mxu0 0.0
        %764 = vmatpush1.msra.mxu0 0.0
        %765 = vmatprep.subr.mxu0 0.0
        %766 = vmatpush1.msra.mxu0 0.0
        %767 = vmatprep.subr.mxu0 0.0
        %768 = vmatpush1.msra.mxu0 0.0
        %769 = vmatprep.subr.mxu0 0.0
        %770 = vmatpush1.msra.mxu0 0.0
        %771 = vmatprep.subr.mxu0 0.0
        %772 = vmatpush1.msra.mxu0 0.0
        %773 = vmatprep.subr.mxu0 0.0
        %774 = vmatpush1.msra.mxu0 0.0
        %775 = vmatprep.subr.mxu0 0.0
        %776 = vmatpush1.msra.mxu0 0.0
        %777 = vmatprep.subr.mxu0 0.0
        %778 = vmatpush1.msra.mxu0 0.0
        %779 = vmatprep.subr.mxu0 0.0
        %780 = vmatpush1.msra.mxu0 0.0
        %781 = vmatprep.subr.mxu0 0.0
        %782 = vmatpush1.msra.mxu0 0.0
        %783 = vmatprep.subr.mxu0 0.0
        %784 = vmatpush1.msra.mxu0 0.0
        %785 = vmatprep.subr.mxu0 0.0
        %786 = vmatpush1.msra.mxu0 0.0
        %787 = vmatprep.subr.mxu0 0.0
        %788 = vmatpush1.msra.mxu0 0.0
        %789 = vmatprep.subr.mxu0 0.0
        %790 = vmatpush1.msra.mxu0 0.0
        %791 = vmatprep.subr.mxu0 0.0
        %792 = vmatpush1.msra.mxu0 0.0
        %793 = vmatprep.subr.mxu0 0.0
        %794 = vmatpush1.msra.mxu0 0.0
        %795 = vmatprep.subr.mxu0 0.0
        %796 = vmatpush1.msra.mxu0 0.0
        %797 = vmatprep.subr.mxu0 0.0
        %798 = vmatpush1.msra.mxu0 0.0
        %799 = vmatprep.subr.mxu0 0.0
        %800 = vmatpush1.msra.mxu0 0.0
        %801 = vmatprep.subr.mxu0 0.0
        %802 = vmatpush1.msra.mxu0 0.0
        %803 = vmatprep.subr.mxu0 0.0
        %804 = vmatpush1.msra.mxu0 0.0
        %805 = vmatprep.subr.mxu0 0.0
        %806 = vmatpush1.msra.mxu0 0.0
        %807 = vmatprep.subr.mxu0 0.0
        %808 = vmatpush1.msra.mxu0 0.0
        %809 = vmatprep.subr.mxu0 0.0
        %810 = vmatpush1.msra.mxu0 0.0
        %811 = vmatprep.subr.mxu0 0.0
        %812 = vmatpush1.msra.mxu0 0.0
        %813 = vmatprep.mubr.f32.mxu0 0.0
        %814 = vmatmul.mubr.f32.gmra.mrb[0].mxu0 %v654
        %v815 = vpop.f32.mrb[0].mxu0
        %v816 = vadd.f32 %v651, %v815
        %v817 = vpop.f32.mrb[0].mxu0
        %818 = vmatprep.mubr.f32.mxu0 0.0
        %819 = vmatmul.mubr.f32.gmra.mrb[0].mxu0 %v657
        %v820 = vpop.f32.mrb[0].mxu0
        %v821 = vadd.f32 %v651, %v820
        %v822 = vpop.f32.mrb[0].mxu0
        %823 = vmatprep.mubr.f32.mxu0 0.0
        %824 = vmatmul.mubr.f32.gmra.mrb[0].mxu0 %v660
        %v825 = vpop.f32.mrb[0].mxu0
        %v826 = vadd.f32 %v651, %v825
        %v827 = vpop.f32.mrb[0].mxu0
        %828 = vmatprep.mubr.f32.mxu0 0.0
        %829 = vmatmul.mubr.f32.gmra.mrb[0].mxu0 %v663
        %v830 = vpop.f32.mrb[0].mxu0
        %v831 = vadd.f32 %v651, %v830
        %v832 = vpop.f32.mrb[0].mxu0
        %833 = vmatprep.mubr.f32.mxu0 0.0
        %834 = vmatmul.mubr.f32.gmra.mrb[0].mxu0 %v666
        %v835 = vpop.f32.mrb[0].mxu0
        %v836 = vadd.f32 %v651, %v835
        %v837 = vpop.f32.mrb[0].mxu0
        %838 = vmatprep.mubr.f32.mxu0 0.0
        %839 = vmatmul.mubr.f32.gmra.mrb[0].mxu0 %v669
        %v840 = vpop.f32.mrb[0].mxu0
        %v841 = vadd.f32 %v651, %v840
        %v842 = vpop.f32.mrb[0].mxu0
        %843 = vmatprep.mubr.f32.mxu0 0.0
        %844 = vmatmul.mubr.f32.gmra.mrb[0].mxu0 %v672
        %v845 = vpop.f32.mrb[0].mxu0
        %v846 = vadd.f32 %v651, %v845
        %v847 = vpop.f32.mrb[0].mxu0
        %848 = vmatprep.mubr.f32.mxu0 0.0
        %849 = vmatmul.mubr.f32.gmra.mrb[0].mxu0 %v675
        %v850 = vpop.f32.mrb[0].mxu0
        %v851 = vadd.f32 %v651, %v850
        %v852 = vpop.f32.mrb[0].mxu0
        %853 = vmatprep.mubr.f32.mxu0 0.0
        %854 = vmatmul.mubr.f32.gmra.mrb[0].mxu0 %v678
        %v855 = vpop.f32.mrb[0].mxu0
        %v856 = vadd.f32 %v651, %v855
        %v857 = vpop.f32.mrb[0].mxu0
        %858 = vmatprep.mubr.f32.mxu0 0.0
        %859 = vmatmul.mubr.f32.gmra.mrb[0].mxu0 %v681
        %v860 = vpop.f32.mrb[0].mxu0
        %v861 = vadd.f32 %v651, %v860
        %v862 = vpop.f32.mrb[0].mxu0
        %863 = vmatprep.mubr.f32.mxu0 0.0
        %864 = vmatmul.mubr.f32.gmra.mrb[0].mxu0 %v684
        %v865 = vpop.f32.mrb[0].mxu0
        %v866 = vadd.f32 %v651, %v865
        %v867 = vpop.f32.mrb[0].mxu0
        %868 = vmatprep.mubr.f32.mxu0 0.0
        %869 = vmatmul.mubr.f32.gmra.mrb[0].mxu0 %v687
        %v870 = vpop.f32.mrb[0].mxu0
        %v871 = vadd.f32 %v651, %v870
        %v872 = vpop.f32.mrb[0].mxu0
        %873 = vmatprep.mubr.f32.mxu0 0.0
        %874 = vmatmul.mubr.f32.gmra.mrb[0].mxu0 %v690
        %v875 = vpop.f32.mrb[0].mxu0
        %v876 = vadd.f32 %v651, %v875
        %v877 = vpop.f32.mrb[0].mxu0
        %878 = vmatprep.mubr.f32.mxu0 0.0
        %879 = vmatmul.mubr.f32.gmra.mrb[0].mxu0 %v693
        %v880 = vpop.f32.mrb[0].mxu0
        %v881 = vadd.f32 %v651, %v880
        %v882 = vpop.f32.mrb[0].mxu0
        %883 = vmatprep.mubr.f32.mxu0 0.0
        %884 = vmatmul.mubr.f32.gmra.mrb[0].mxu0 %v696
        %v885 = vpop.f32.mrb[0].mxu0
        %v886 = vadd.f32 %v651, %v885
        %v887 = vpop.f32.mrb[0].mxu0
        %888 = vmatprep.mubr.f32.mxu0 0.0
        %889 = vmatmul.mubr.f32.gmra.mrb[0].mxu0 %v699
        %v890 = vpop.f32.mrb[0].mxu0
        %v891 = vadd.f32 %v651, %v890
        %v892 = vpop.f32.mrb[0].mxu0
        %893 = vmatprep.mubr.f32.mxu0 0.0
        %894 = vmatmul.mubr.f32.gmra.mrb[0].mxu0 %v702
        %v895 = vpop.f32.mrb[0].mxu0
        %v896 = vadd.f32 %v651, %v895
        %v897 = vpop.f32.mrb[0].mxu0
        %898 = vmatprep.mubr.f32.mxu0 0.0
        %899 = vmatmul.mubr.f32.gmra.mrb[0].mxu0 %v705
        %v900 = vpop.f32.mrb[0].mxu0
        %v901 = vadd.f32 %v651, %v900
        %v902 = vpop.f32.mrb[0].mxu0
        %903 = vmatprep.mubr.f32.mxu0 0.0
        %904 = vmatmul.mubr.f32.gmra.mrb[0].mxu0 %v708
        %v905 = vpop.f32.mrb[0].mxu0
        %v906 = vadd.f32 %v651, %v905
        %v907 = vpop.f32.mrb[0].mxu0
        %908 = vmatprep.mubr.f32.mxu0 0.0
        %909 = vmatmul.mubr.f32.gmra.mrb[0].mxu0 %v711
        %v910 = vpop.f32.mrb[0].mxu0
        %v911 = vadd.f32 %v651, %v910
        %v912 = vpop.f32.mrb[0].mxu0
        %913 = vmatprep.mubr.f32.mxu0 0.0
        %914 = vmatmul.mubr.f32.gmra.mrb[0].mxu0 %v714
        %v915 = vpop.f32.mrb[0].mxu0
        %v916 = vadd.f32 %v651, %v915
        %v917 = vpop.f32.mrb[0].mxu0
        %918 = vmatprep.mubr.f32.mxu0 0.0
        %919 = vmatmul.mubr.f32.gmra.mrb[0].mxu0 %v717
        %v920 = vpop.f32.mrb[0].mxu0
        %v921 = vadd.f32 %v651, %v920
        %v922 = vpop.f32.mrb[0].mxu0
        %923 = vmatprep.mubr.f32.mxu0 0.0
        %924 = vmatmul.mubr.f32.gmra.mrb[0].mxu0 %v720
        %v925 = vpop.f32.mrb[0].mxu0
        %v926 = vadd.f32 %v651, %v925
        %v927 = vpop.f32.mrb[0].mxu0
        %928 = vmatprep.mubr.f32.mxu0 0.0
        %929 = vmatmul.mubr.f32.gmra.mrb[0].mxu0 %v723
        %v930 = vpop.f32.mrb[0].mxu0
        %v931 = vadd.f32 %v651, %v930
        %v932 = vpop.f32.mrb[0].mxu0
        %933 = vmatprep.mubr.f32.mxu0 0.0
        %934 = vmatmul.mubr.f32.gmra.mrb[0].mxu0 %v726
        %v935 = vpop.f32.mrb[0].mxu0
        %v936 = vadd.f32 %v651, %v935
        %v937 = vpop.f32.mrb[0].mxu0
        %938 = vmatprep.mubr.f32.mxu0 0.0
        %939 = vmatmul.mubr.f32.gmra.mrb[0].mxu0 %v729
        %v940 = vpop.f32.mrb[0].mxu0
        %v941 = vadd.f32 %v651, %v940
        %v942 = vpop.f32.mrb[0].mxu0
        %943 = vmatprep.mubr.f32.mxu0 0.0
        %944 = vmatmul.mubr.f32.gmra.mrb[0].mxu0 %v732
        %v945 = vpop.f32.mrb[0].mxu0
        %v946 = vadd.f32 %v651, %v945
        %v947 = vpop.f32.mrb[0].mxu0
        %948 = vmatprep.mubr.f32.mxu0 0.0
        %949 = vmatmul.mubr.f32.gmra.mrb[0].mxu0 %v735
        %v950 = vpop.f32.mrb[0].mxu0
        %v951 = vadd.f32 %v651, %v950
        %v952 = vpop.f32.mrb[0].mxu0
        %953 = vmatprep.mubr.f32.mxu0 0.0
        %954 = vmatmul.mubr.f32.gmra.mrb[0].mxu0 %v738
        %v955 = vpop.f32.mrb[0].mxu0
        %v956 = vadd.f32 %v651, %v955
        %v957 = vpop.f32.mrb[0].mxu0
        %958 = vmatprep.mubr.f32.mxu0 0.0
        %959 = vmatmul.mubr.f32.gmra.mrb[0].mxu0 %v741
        %v960 = vpop.f32.mrb[0].mxu0
        %v961 = vadd.f32 %v651, %v960
        %v962 = vpop.f32.mrb[0].mxu0
        %963 = vmatprep.mubr.f32.mxu0 0.0
        %964 = vmatmul.mubr.f32.gmra.mrb[0].mxu0 %v744
        %v965 = vpop.f32.mrb[0].mxu0
        %v966 = vadd.f32 %v651, %v965
        %v967 = vpop.f32.mrb[0].mxu0
        %968 = vmatprep.mubr.f32.mxu0 0.0
        %969 = vmatmul.mubr.f32.gmra.mrb[0].mxu0 %v747
        %v970 = vpop.f32.mrb[0].mxu0
        %v971 = vadd.f32 %v651, %v970
        %v972 = vpop.f32.mrb[0].mxu0
        %973 = vdwg.mxu0
        %vm974 = vcmp.gt.f32.partialorder %v816, 0.0
        %vm975 = vcmp.gt.f32.partialorder %v821, 0.0
        %vm976 = vcmp.gt.f32.partialorder %v826, 0.0
        %vm977 = vcmp.gt.f32.partialorder %v831, 0.0
        %vm978 = vcmp.gt.f32.partialorder %v836, 0.0
        %vm979 = vcmp.gt.f32.partialorder %v841, 0.0
        %vm980 = vcmp.gt.f32.partialorder %v846, 0.0
        %vm981 = vcmp.gt.f32.partialorder %v851, 0.0
        %vm982 = vcmp.gt.f32.partialorder %v856, 0.0
        %vm983 = vcmp.gt.f32.partialorder %v861, 0.0
        %vm984 = vcmp.gt.f32.partialorder %v866, 0.0
        %vm985 = vcmp.gt.f32.partialorder %v871, 0.0
        %vm986 = vcmp.gt.f32.partialorder %v876, 0.0
        %vm987 = vcmp.gt.f32.partialorder %v881, 0.0
        %vm988 = vcmp.gt.f32.partialorder %v886, 0.0
        %vm989 = vcmp.gt.f32.partialorder %v891, 0.0
        %vm990 = vcmp.gt.f32.partialorder %v896, 0.0
        %vm991 = vcmp.gt.f32.partialorder %v901, 0.0
        %vm992 = vcmp.gt.f32.partialorder %v906, 0.0
        %vm993 = vcmp.gt.f32.partialorder %v911, 0.0
        %vm994 = vcmp.gt.f32.partialorder %v916, 0.0
        %vm995 = vcmp.gt.f32.partialorder %v921, 0.0
        %vm996 = vcmp.gt.f32.partialorder %v926, 0.0
        %vm997 = vcmp.gt.f32.partialorder %v931, 0.0
        %vm998 = vcmp.gt.f32.partialorder %v936, 0.0
        %vm999 = vcmp.gt.f32.partialorder %v941, 0.0
        %vm1000 = vcmp.gt.f32.partialorder %v946, 0.0
        %vm1001 = vcmp.gt.f32.partialorder %v951, 0.0
        %vm1002 = vcmp.gt.f32.partialorder %v956, 0.0
        %vm1003 = vcmp.gt.f32.partialorder %v961, 0.0
        %vm1004 = vcmp.gt.f32.partialorder %v966, 0.0
        %vm1005 = vcmp.gt.f32.partialorder %v971, 0.0
        %v1006 = vmul.f32 %v816, 0.01
        %v1007 = vmul.f32 %v821, 0.01
        %v1008 = vmul.f32 %v826, 0.01
        %v1009 = vmul.f32 %v831, 0.01
        %v1010 = vmul.f32 %v836, 0.01
        %v1011 = vmul.f32 %v841, 0.01
        %v1012 = vmul.f32 %v846, 0.01
        %v1013 = vmul.f32 %v851, 0.01
        %v1014 = vmul.f32 %v856, 0.01
        %v1015 = vmul.f32 %v861, 0.01
        %v1016 = vmul.f32 %v866, 0.01
        %v1017 = vmul.f32 %v871, 0.01
        %v1018 = vmul.f32 %v876, 0.01
        %v1019 = vmul.f32 %v881, 0.01
        %v1020 = vmul.f32 %v886, 0.01
        %v1021 = vmul.f32 %v891, 0.01
        %v1022 = vmul.f32 %v896, 0.01
        %v1023 = vmul.f32 %v901, 0.01
        %v1024 = vmul.f32 %v906, 0.01
        %v1025 = vmul.f32 %v911, 0.01
        %v1026 = vmul.f32 %v916, 0.01
        %v1027 = vmul.f32 %v921, 0.01
        %v1028 = vmul.f32 %v926, 0.01
        %v1029 = vmul.f32 %v931, 0.01
        %v1030 = vmul.f32 %v936, 0.01
        %v1031 = vmul.f32 %v941, 0.01
        %v1032 = vmul.f32 %v946, 0.01
        %v1033 = vmul.f32 %v951, 0.01
        %v1034 = vmul.f32 %v956, 0.01
        %v1035 = vmul.f32 %v961, 0.01
        %v1036 = vmul.f32 %v966, 0.01
        %v1037 = vmul.f32 %v971, 0.01
        %v1038 = vsel %vm974, %v816, %v1006
        %v1039 = vsel %vm975, %v821, %v1007
        %v1040 = vsel %vm976, %v826, %v1008
        %v1041 = vsel %vm977, %v831, %v1009
        %v1042 = vsel %vm978, %v836, %v1010
        %v1043 = vsel %vm979, %v841, %v1011
        %v1044 = vsel %vm980, %v846, %v1012
        %v1045 = vsel %vm981, %v851, %v1013
        %v1046 = vsel %vm982, %v856, %v1014
        %v1047 = vsel %vm983, %v861, %v1015
        %v1048 = vsel %vm984, %v866, %v1016
        %v1049 = vsel %vm985, %v871, %v1017
        %v1050 = vsel %vm986, %v876, %v1018
        %v1051 = vsel %vm987, %v881, %v1019
        %v1052 = vsel %vm988, %v886, %v1020
        %v1053 = vsel %vm989, %v891, %v1021
        %v1054 = vsel %vm990, %v896, %v1022
        %v1055 = vsel %vm991, %v901, %v1023
        %v1056 = vsel %vm992, %v906, %v1024
        %v1057 = vsel %vm993, %v911, %v1025
        %v1058 = vsel %vm994, %v916, %v1026
        %v1059 = vsel %vm995, %v921, %v1027
        %v1060 = vsel %vm996, %v926, %v1028
        %v1061 = vsel %vm997, %v931, %v1029
        %v1062 = vsel %vm998, %v936, %v1030
        %v1063 = vsel %vm999, %v941, %v1031
        %v1064 = vsel %vm1000, %v946, %v1032
        %v1065 = vsel %vm1001, %v951, %v1033
        %v1066 = vsel %vm1002, %v956, %v1034
        %v1067 = vsel %vm1003, %v961, %v1035
        %v1068 = vsel %vm1004, %v966, %v1036
        %v1069 = vsel %vm1005, %v971, %v1037
        %v1070 = vld [vmem:[#allocation5 + $0x8] sm:$0xff]
        %v1071 = vld [vmem:[#allocation5 + $0x10] sm:$0xff]
        %v1072 = vld [vmem:[#allocation5 + $0x48] sm:$0x1]
        %v1073 = vlaneseq
        %v1074 = vshrl.u32 %v1073, 7
        %v1075 = vsub.s32 0, %v1074
        %v1076 = vrot.slane %v1072, %v1075
        %vm1077 = vcmask 130048
        %v1079 = vsel %vm1077, %v1038, 0
        %v1082 = vsel %vm1077, %v1039, 0
        %v1085 = vsel %vm1077, %v1040, 0
        %v1088 = vsel %vm1077, %v1041, 0
        %v1091 = vsel %vm1077, %v1042, 0
        %v1094 = vsel %vm1077, %v1043, 0
        %v1097 = vsel %vm1077, %v1044, 0
        %v1100 = vsel %vm1077, %v1045, 0
        %v1103 = vsel %vm1077, %v1046, 0
        %v1106 = vsel %vm1077, %v1047, 0
        %v1109 = vsel %vm1077, %v1048, 0
        %v1112 = vsel %vm1077, %v1049, 0
        %v1115 = vsel %vm1077, %v1050, 0
        %v1118 = vsel %vm1077, %v1051, 0
        %v1121 = vsel %vm1077, %v1052, 0
        %v1124 = vsel %vm1077, %v1053, 0
        %v1127 = vsel %vm1077, %v1054, 0
        %v1130 = vsel %vm1077, %v1055, 0
        %v1133 = vsel %vm1077, %v1056, 0
        %v1136 = vsel %vm1077, %v1057, 0
        %v1139 = vsel %vm1077, %v1058, 0
        %v1142 = vsel %vm1077, %v1059, 0
        %v1145 = vsel %vm1077, %v1060, 0
        %v1148 = vsel %vm1077, %v1061, 0
        %v1151 = vsel %vm1077, %v1062, 0
        %v1154 = vsel %vm1077, %v1063, 0
        %v1157 = vsel %vm1077, %v1064, 0
        %v1160 = vsel %vm1077, %v1065, 0
        %v1163 = vsel %vm1077, %v1066, 0
        %v1166 = vsel %vm1077, %v1067, 0
        %v1169 = vsel %vm1077, %v1068, 0
        %v1172 = vsel %vm1077, %v1069, 0
        %1174 = vmatprep.subr.mxu0 0.0
        %1175 = vmatpush1.msra.mxu0 %v1070
        %1176 = vmatprep.subr.mxu0 0.0
        %1177 = vmatpush1.msra.mxu0 %v1071
        %1178 = vmatprep.subr.mxu0 0.0
        %1179 = vmatpush1.msra.mxu0 0.0
        %1180 = vmatprep.subr.mxu0 0.0
        %1181 = vmatpush1.msra.mxu0 0.0
        %1182 = vmatprep.subr.mxu0 0.0
        %1183 = vmatpush1.msra.mxu0 0.0
        %1184 = vmatprep.subr.mxu0 0.0
        %1185 = vmatpush1.msra.mxu0 0.0
        %1186 = vmatprep.subr.mxu0 0.0
        %1187 = vmatpush1.msra.mxu0 0.0
        %1188 = vmatprep.subr.mxu0 0.0
        %1189 = vmatpush1.msra.mxu0 0.0
        %1190 = vmatprep.subr.mxu0 0.0
        %1191 = vmatpush1.msra.mxu0 0.0
        %1192 = vmatprep.subr.mxu0 0.0
        %1193 = vmatpush1.msra.mxu0 0.0
        %1194 = vmatprep.subr.mxu0 0.0
        %1195 = vmatpush1.msra.mxu0 0.0
        %1196 = vmatprep.subr.mxu0 0.0
        %1197 = vmatpush1.msra.mxu0 0.0
        %1198 = vmatprep.subr.mxu0 0.0
        %1199 = vmatpush1.msra.mxu0 0.0
        %1200 = vmatprep.subr.mxu0 0.0
        %1201 = vmatpush1.msra.mxu0 0.0
        %1202 = vmatprep.subr.mxu0 0.0
        %1203 = vmatpush1.msra.mxu0 0.0
        %1204 = vmatprep.subr.mxu0 0.0
        %1205 = vmatpush1.msra.mxu0 0.0
        %1206 = vmatprep.subr.mxu0 0.0
        %1207 = vmatpush1.msra.mxu0 0.0
        %1208 = vmatprep.subr.mxu0 0.0
        %1209 = vmatpush1.msra.mxu0 0.0
        %1210 = vmatprep.subr.mxu0 0.0
        %1211 = vmatpush1.msra.mxu0 0.0
        %1212 = vmatprep.subr.mxu0 0.0
        %1213 = vmatpush1.msra.mxu0 0.0
        %1214 = vmatprep.subr.mxu0 0.0
        %1215 = vmatpush1.msra.mxu0 0.0
        %1216 = vmatprep.subr.mxu0 0.0
        %1217 = vmatpush1.msra.mxu0 0.0
        %1218 = vmatprep.subr.mxu0 0.0
        %1219 = vmatpush1.msra.mxu0 0.0
        %1220 = vmatprep.subr.mxu0 0.0
        %1221 = vmatpush1.msra.mxu0 0.0
        %1222 = vmatprep.subr.mxu0 0.0
        %1223 = vmatpush1.msra.mxu0 0.0
        %1224 = vmatprep.subr.mxu0 0.0
        %1225 = vmatpush1.msra.mxu0 0.0
        %1226 = vmatprep.subr.mxu0 0.0
        %1227 = vmatpush1.msra.mxu0 0.0
        %1228 = vmatprep.subr.mxu0 0.0
        %1229 = vmatpush1.msra.mxu0 0.0
        %1230 = vmatprep.subr.mxu0 0.0
        %1231 = vmatpush1.msra.mxu0 0.0
        %1232 = vmatprep.subr.mxu0 0.0
        %1233 = vmatpush1.msra.mxu0 0.0
        %1234 = vmatprep.subr.mxu0 0.0
        %1235 = vmatpush1.msra.mxu0 0.0
        %1236 = vmatprep.subr.mxu0 0.0
        %1237 = vmatpush1.msra.mxu0 0.0
        %1238 = vmatprep.mubr.f32.mxu0 0.0
        %1239 = vmatmul.mubr.f32.gmra.mrb[0].mxu0 %v1079
        %v1240 = vpop.f32.mrb[0].mxu0
        %v1241 = vadd.f32 %v1076, %v1240
        %v1242 = vpop.f32.mrb[0].mxu0
        %1243 = vmatprep.mubr.f32.mxu0 0.0
        %1244 = vmatmul.mubr.f32.gmra.mrb[0].mxu0 %v1082
        %v1245 = vpop.f32.mrb[0].mxu0
        %v1246 = vadd.f32 %v1076, %v1245
        %v1247 = vpop.f32.mrb[0].mxu0
        %1248 = vmatprep.mubr.f32.mxu0 0.0
        %1249 = vmatmul.mubr.f32.gmra.mrb[0].mxu0 %v1085
        %v1250 = vpop.f32.mrb[0].mxu0
        %v1251 = vadd.f32 %v1076, %v1250
        %v1252 = vpop.f32.mrb[0].mxu0
        %1253 = vmatprep.mubr.f32.mxu0 0.0
        %1254 = vmatmul.mubr.f32.gmra.mrb[0].mxu0 %v1088
        %v1255 = vpop.f32.mrb[0].mxu0
        %v1256 = vadd.f32 %v1076, %v1255
        %v1257 = vpop.f32.mrb[0].mxu0
        %1258 = vmatprep.mubr.f32.mxu0 0.0
        %1259 = vmatmul.mubr.f32.gmra.mrb[0].mxu0 %v1091
        %v1260 = vpop.f32.mrb[0].mxu0
        %v1261 = vadd.f32 %v1076, %v1260
        %v1262 = vpop.f32.mrb[0].mxu0
        %1263 = vmatprep.mubr.f32.mxu0 0.0
        %1264 = vmatmul.mubr.f32.gmra.mrb[0].mxu0 %v1094
        %v1265 = vpop.f32.mrb[0].mxu0
        %v1266 = vadd.f32 %v1076, %v1265
        %v1267 = vpop.f32.mrb[0].mxu0
        %1268 = vmatprep.mubr.f32.mxu0 0.0
        %1269 = vmatmul.mubr.f32.gmra.mrb[0].mxu0 %v1097
        %v1270 = vpop.f32.mrb[0].mxu0
        %v1271 = vadd.f32 %v1076, %v1270
        %v1272 = vpop.f32.mrb[0].mxu0
        %1273 = vmatprep.mubr.f32.mxu0 0.0
        %1274 = vmatmul.mubr.f32.gmra.mrb[0].mxu0 %v1100
        %v1275 = vpop.f32.mrb[0].mxu0
        %v1276 = vadd.f32 %v1076, %v1275
        %v1277 = vpop.f32.mrb[0].mxu0
        %1278 = vmatprep.mubr.f32.mxu0 0.0
        %1279 = vmatmul.mubr.f32.gmra.mrb[0].mxu0 %v1103
        %v1280 = vpop.f32.mrb[0].mxu0
        %v1281 = vadd.f32 %v1076, %v1280
        %v1282 = vpop.f32.mrb[0].mxu0
        %1283 = vmatprep.mubr.f32.mxu0 0.0
        %1284 = vmatmul.mubr.f32.gmra.mrb[0].mxu0 %v1106
        %v1285 = vpop.f32.mrb[0].mxu0
        %v1286 = vadd.f32 %v1076, %v1285
        %v1287 = vpop.f32.mrb[0].mxu0
        %1288 = vmatprep.mubr.f32.mxu0 0.0
        %1289 = vmatmul.mubr.f32.gmra.mrb[0].mxu0 %v1109
        %v1290 = vpop.f32.mrb[0].mxu0
        %v1291 = vadd.f32 %v1076, %v1290
        %v1292 = vpop.f32.mrb[0].mxu0
        %1293 = vmatprep.mubr.f32.mxu0 0.0
        %1294 = vmatmul.mubr.f32.gmra.mrb[0].mxu0 %v1112
        %v1295 = vpop.f32.mrb[0].mxu0
        %v1296 = vadd.f32 %v1076, %v1295
        %v1297 = vpop.f32.mrb[0].mxu0
        %1298 = vmatprep.mubr.f32.mxu0 0.0
        %1299 = vmatmul.mubr.f32.gmra.mrb[0].mxu0 %v1115
        %v1300 = vpop.f32.mrb[0].mxu0
        %v1301 = vadd.f32 %v1076, %v1300
        %v1302 = vpop.f32.mrb[0].mxu0
        %1303 = vmatprep.mubr.f32.mxu0 0.0
        %1304 = vmatmul.mubr.f32.gmra.mrb[0].mxu0 %v1118
        %v1305 = vpop.f32.mrb[0].mxu0
        %v1306 = vadd.f32 %v1076, %v1305
        %v1307 = vpop.f32.mrb[0].mxu0
        %1308 = vmatprep.mubr.f32.mxu0 0.0
        %1309 = vmatmul.mubr.f32.gmra.mrb[0].mxu0 %v1121
        %v1310 = vpop.f32.mrb[0].mxu0
        %v1311 = vadd.f32 %v1076, %v1310
        %v1312 = vpop.f32.mrb[0].mxu0
        %1313 = vmatprep.mubr.f32.mxu0 0.0
        %1314 = vmatmul.mubr.f32.gmra.mrb[0].mxu0 %v1124
        %v1315 = vpop.f32.mrb[0].mxu0
        %v1316 = vadd.f32 %v1076, %v1315
        %v1317 = vpop.f32.mrb[0].mxu0
        %1318 = vmatprep.mubr.f32.mxu0 0.0
        %1319 = vmatmul.mubr.f32.gmra.mrb[0].mxu0 %v1127
        %v1320 = vpop.f32.mrb[0].mxu0
        %v1321 = vadd.f32 %v1076, %v1320
        %v1322 = vpop.f32.mrb[0].mxu0
        %1323 = vmatprep.mubr.f32.mxu0 0.0
        %1324 = vmatmul.mubr.f32.gmra.mrb[0].mxu0 %v1130
        %v1325 = vpop.f32.mrb[0].mxu0
        %v1326 = vadd.f32 %v1076, %v1325
        %v1327 = vpop.f32.mrb[0].mxu0
        %1328 = vmatprep.mubr.f32.mxu0 0.0
        %1329 = vmatmul.mubr.f32.gmra.mrb[0].mxu0 %v1133
        %v1330 = vpop.f32.mrb[0].mxu0
        %v1331 = vadd.f32 %v1076, %v1330
        %v1332 = vpop.f32.mrb[0].mxu0
        %1333 = vmatprep.mubr.f32.mxu0 0.0
        %1334 = vmatmul.mubr.f32.gmra.mrb[0].mxu0 %v1136
        %v1335 = vpop.f32.mrb[0].mxu0
        %v1336 = vadd.f32 %v1076, %v1335
        %v1337 = vpop.f32.mrb[0].mxu0
        %1338 = vmatprep.mubr.f32.mxu0 0.0
        %1339 = vmatmul.mubr.f32.gmra.mrb[0].mxu0 %v1139
        %v1340 = vpop.f32.mrb[0].mxu0
        %v1341 = vadd.f32 %v1076, %v1340
        %v1342 = vpop.f32.mrb[0].mxu0
        %1343 = vmatprep.mubr.f32.mxu0 0.0
        %1344 = vmatmul.mubr.f32.gmra.mrb[0].mxu0 %v1142
        %v1345 = vpop.f32.mrb[0].mxu0
        %v1346 = vadd.f32 %v1076, %v1345
        %v1347 = vpop.f32.mrb[0].mxu0
        %1348 = vmatprep.mubr.f32.mxu0 0.0
        %1349 = vmatmul.mubr.f32.gmra.mrb[0].mxu0 %v1145
        %v1350 = vpop.f32.mrb[0].mxu0
        %v1351 = vadd.f32 %v1076, %v1350
        %v1352 = vpop.f32.mrb[0].mxu0
        %1353 = vmatprep.mubr.f32.mxu0 0.0
        %1354 = vmatmul.mubr.f32.gmra.mrb[0].mxu0 %v1148
        %v1355 = vpop.f32.mrb[0].mxu0
        %v1356 = vadd.f32 %v1076, %v1355
        %v1357 = vpop.f32.mrb[0].mxu0
        %1358 = vmatprep.mubr.f32.mxu0 0.0
        %1359 = vmatmul.mubr.f32.gmra.mrb[0].mxu0 %v1151
        %v1360 = vpop.f32.mrb[0].mxu0
        %v1361 = vadd.f32 %v1076, %v1360
        %v1362 = vpop.f32.mrb[0].mxu0
        %1363 = vmatprep.mubr.f32.mxu0 0.0
        %1364 = vmatmul.mubr.f32.gmra.mrb[0].mxu0 %v1154
        %v1365 = vpop.f32.mrb[0].mxu0
        %v1366 = vadd.f32 %v1076, %v1365
        %v1367 = vpop.f32.mrb[0].mxu0
        %1368 = vmatprep.mubr.f32.mxu0 0.0
        %1369 = vmatmul.mubr.f32.gmra.mrb[0].mxu0 %v1157
        %v1370 = vpop.f32.mrb[0].mxu0
        %v1371 = vadd.f32 %v1076, %v1370
        %v1372 = vpop.f32.mrb[0].mxu0
        %1373 = vmatprep.mubr.f32.mxu0 0.0
        %1374 = vmatmul.mubr.f32.gmra.mrb[0].mxu0 %v1160
        %v1375 = vpop.f32.mrb[0].mxu0
        %v1376 = vadd.f32 %v1076, %v1375
        %v1377 = vpop.f32.mrb[0].mxu0
        %1378 = vmatprep.mubr.f32.mxu0 0.0
        %1379 = vmatmul.mubr.f32.gmra.mrb[0].mxu0 %v1163
        %v1380 = vpop.f32.mrb[0].mxu0
        %v1381 = vadd.f32 %v1076, %v1380
        %v1382 = vpop.f32.mrb[0].mxu0
        %1383 = vmatprep.mubr.f32.mxu0 0.0
        %1384 = vmatmul.mubr.f32.gmra.mrb[0].mxu0 %v1166
        %v1385 = vpop.f32.mrb[0].mxu0
        %v1386 = vadd.f32 %v1076, %v1385
        %v1387 = vpop.f32.mrb[0].mxu0
        %1388 = vmatprep.mubr.f32.mxu0 0.0
        %1389 = vmatmul.mubr.f32.gmra.mrb[0].mxu0 %v1169
        %v1390 = vpop.f32.mrb[0].mxu0
        %v1391 = vadd.f32 %v1076, %v1390
        %v1392 = vpop.f32.mrb[0].mxu0
        %1393 = vmatprep.mubr.f32.mxu0 0.0
        %1394 = vmatmul.mubr.f32.gmra.mrb[0].mxu0 %v1172
        %v1395 = vpop.f32.mrb[0].mxu0
        %v1396 = vadd.f32 %v1076, %v1395
        %v1397 = vpop.f32.mrb[0].mxu0
        %1398 = vdwg.mxu0
        %vm1399 = vcmp.gt.f32.partialorder %v1241, 0.0
        %vm1400 = vcmp.gt.f32.partialorder %v1246, 0.0
        %vm1401 = vcmp.gt.f32.partialorder %v1251, 0.0
        %vm1402 = vcmp.gt.f32.partialorder %v1256, 0.0
        %vm1403 = vcmp.gt.f32.partialorder %v1261, 0.0
        %vm1404 = vcmp.gt.f32.partialorder %v1266, 0.0
        %vm1405 = vcmp.gt.f32.partialorder %v1271, 0.0
        %vm1406 = vcmp.gt.f32.partialorder %v1276, 0.0
        %vm1407 = vcmp.gt.f32.partialorder %v1281, 0.0
        %vm1408 = vcmp.gt.f32.partialorder %v1286, 0.0
        %vm1409 = vcmp.gt.f32.partialorder %v1291, 0.0
        %vm1410 = vcmp.gt.f32.partialorder %v1296, 0.0
        %vm1411 = vcmp.gt.f32.partialorder %v1301, 0.0
        %vm1412 = vcmp.gt.f32.partialorder %v1306, 0.0
        %vm1413 = vcmp.gt.f32.partialorder %v1311, 0.0
        %vm1414 = vcmp.gt.f32.partialorder %v1316, 0.0
        %vm1415 = vcmp.gt.f32.partialorder %v1321, 0.0
        %vm1416 = vcmp.gt.f32.partialorder %v1326, 0.0
        %vm1417 = vcmp.gt.f32.partialorder %v1331, 0.0
        %vm1418 = vcmp.gt.f32.partialorder %v1336, 0.0
        %vm1419 = vcmp.gt.f32.partialorder %v1341, 0.0
        %vm1420 = vcmp.gt.f32.partialorder %v1346, 0.0
        %vm1421 = vcmp.gt.f32.partialorder %v1351, 0.0
        %vm1422 = vcmp.gt.f32.partialorder %v1356, 0.0
        %vm1423 = vcmp.gt.f32.partialorder %v1361, 0.0
        %vm1424 = vcmp.gt.f32.partialorder %v1366, 0.0
        %vm1425 = vcmp.gt.f32.partialorder %v1371, 0.0
        %vm1426 = vcmp.gt.f32.partialorder %v1376, 0.0
        %vm1427 = vcmp.gt.f32.partialorder %v1381, 0.0
        %vm1428 = vcmp.gt.f32.partialorder %v1386, 0.0
        %vm1429 = vcmp.gt.f32.partialorder %v1391, 0.0
        %vm1430 = vcmp.gt.f32.partialorder %v1396, 0.0
        %v1431 = vmul.f32 %v1241, 0.01
        %v1432 = vmul.f32 %v1246, 0.01
        %v1433 = vmul.f32 %v1251, 0.01
        %v1434 = vmul.f32 %v1256, 0.01
        %v1435 = vmul.f32 %v1261, 0.01
        %v1436 = vmul.f32 %v1266, 0.01
        %v1437 = vmul.f32 %v1271, 0.01
        %v1438 = vmul.f32 %v1276, 0.01
        %v1439 = vmul.f32 %v1281, 0.01
        %v1440 = vmul.f32 %v1286, 0.01
        %v1441 = vmul.f32 %v1291, 0.01
        %v1442 = vmul.f32 %v1296, 0.01
        %v1443 = vmul.f32 %v1301, 0.01
        %v1444 = vmul.f32 %v1306, 0.01
        %v1445 = vmul.f32 %v1311, 0.01
        %v1446 = vmul.f32 %v1316, 0.01
        %v1447 = vmul.f32 %v1321, 0.01
        %v1448 = vmul.f32 %v1326, 0.01
        %v1449 = vmul.f32 %v1331, 0.01
        %v1450 = vmul.f32 %v1336, 0.01
        %v1451 = vmul.f32 %v1341, 0.01
        %v1452 = vmul.f32 %v1346, 0.01
        %v1453 = vmul.f32 %v1351, 0.01
        %v1454 = vmul.f32 %v1356, 0.01
        %v1455 = vmul.f32 %v1361, 0.01
        %v1456 = vmul.f32 %v1366, 0.01
        %v1457 = vmul.f32 %v1371, 0.01
        %v1458 = vmul.f32 %v1376, 0.01
        %v1459 = vmul.f32 %v1381, 0.01
        %v1460 = vmul.f32 %v1386, 0.01
        %v1461 = vmul.f32 %v1391, 0.01
        %v1462 = vmul.f32 %v1396, 0.01
        %v1463 = vsel %vm1399, %v1241, %v1431
        %v1464 = vsel %vm1400, %v1246, %v1432
        %v1465 = vsel %vm1401, %v1251, %v1433
        %v1466 = vsel %vm1402, %v1256, %v1434
        %v1467 = vsel %vm1403, %v1261, %v1435
        %v1468 = vsel %vm1404, %v1266, %v1436
        %v1469 = vsel %vm1405, %v1271, %v1437
        %v1470 = vsel %vm1406, %v1276, %v1438
        %v1471 = vsel %vm1407, %v1281, %v1439
        %v1472 = vsel %vm1408, %v1286, %v1440
        %v1473 = vsel %vm1409, %v1291, %v1441
        %v1474 = vsel %vm1410, %v1296, %v1442
        %v1475 = vsel %vm1411, %v1301, %v1443
        %v1476 = vsel %vm1412, %v1306, %v1444
        %v1477 = vsel %vm1413, %v1311, %v1445
        %v1478 = vsel %vm1414, %v1316, %v1446
        %v1479 = vsel %vm1415, %v1321, %v1447
        %v1480 = vsel %vm1416, %v1326, %v1448
        %v1481 = vsel %vm1417, %v1331, %v1449
        %v1482 = vsel %vm1418, %v1336, %v1450
        %v1483 = vsel %vm1419, %v1341, %v1451
        %v1484 = vsel %vm1420, %v1346, %v1452
        %v1485 = vsel %vm1421, %v1351, %v1453
        %v1486 = vsel %vm1422, %v1356, %v1454
        %v1487 = vsel %vm1423, %v1361, %v1455
        %v1488 = vsel %vm1424, %v1366, %v1456
        %v1489 = vsel %vm1425, %v1371, %v1457
        %v1490 = vsel %vm1426, %v1376, %v1458
        %v1491 = vsel %vm1427, %v1381, %v1459
        %v1492 = vsel %vm1428, %v1386, %v1460
        %v1493 = vsel %vm1429, %v1391, %v1461
        %v1494 = vsel %vm1430, %v1396, %v1462
        %v1495 = vld [vmem:[#allocation5 + $0x18] sm:$0xff]
        %v1496 = vld [vmem:[#allocation5 + $0x20] sm:$0xff]
        %v1497 = vld [vmem:[#allocation5 + $0x50] sm:$0x1]
        %v1498 = vlaneseq
        %v1499 = vshrl.u32 %v1498, 7
        %v1500 = vsub.s32 0, %v1499
        %v1501 = vrot.slane %v1497, %v1500
        %v1503 = vsel %vm1077, %v1463, 0
        %v1506 = vsel %vm1077, %v1464, 0
        %v1509 = vsel %vm1077, %v1465, 0
        %v1512 = vsel %vm1077, %v1466, 0
        %v1515 = vsel %vm1077, %v1467, 0
        %v1518 = vsel %vm1077, %v1468, 0
        %v1521 = vsel %vm1077, %v1469, 0
        %v1524 = vsel %vm1077, %v1470, 0
        %v1527 = vsel %vm1077, %v1471, 0
        %v1530 = vsel %vm1077, %v1472, 0
        %v1533 = vsel %vm1077, %v1473, 0
        %v1536 = vsel %vm1077, %v1474, 0
        %v1539 = vsel %vm1077, %v1475, 0
        %v1542 = vsel %vm1077, %v1476, 0
        %v1545 = vsel %vm1077, %v1477, 0
        %v1548 = vsel %vm1077, %v1478, 0
        %v1551 = vsel %vm1077, %v1479, 0
        %v1554 = vsel %vm1077, %v1480, 0
        %v1557 = vsel %vm1077, %v1481, 0
        %v1560 = vsel %vm1077, %v1482, 0
        %v1563 = vsel %vm1077, %v1483, 0
        %v1566 = vsel %vm1077, %v1484, 0
        %v1569 = vsel %vm1077, %v1485, 0
        %v1572 = vsel %vm1077, %v1486, 0
        %v1575 = vsel %vm1077, %v1487, 0
        %v1578 = vsel %vm1077, %v1488, 0
        %v1581 = vsel %vm1077, %v1489, 0
        %v1584 = vsel %vm1077, %v1490, 0
        %v1587 = vsel %vm1077, %v1491, 0
        %v1590 = vsel %vm1077, %v1492, 0
        %v1593 = vsel %vm1077, %v1493, 0
        %v1596 = vsel %vm1077, %v1494, 0
        %1598 = vmatprep.subr.mxu0 0.0
        %1599 = vmatpush1.msra.mxu0 %v1495
        %1600 = vmatprep.subr.mxu0 0.0
        %1601 = vmatpush1.msra.mxu0 %v1496
        %1602 = vmatprep.subr.mxu0 0.0
        %1603 = vmatpush1.msra.mxu0 0.0
        %1604 = vmatprep.subr.mxu0 0.0
        %1605 = vmatpush1.msra.mxu0 0.0
        %1606 = vmatprep.subr.mxu0 0.0
        %1607 = vmatpush1.msra.mxu0 0.0
        %1608 = vmatprep.subr.mxu0 0.0
        %1609 = vmatpush1.msra.mxu0 0.0
        %1610 = vmatprep.subr.mxu0 0.0
        %1611 = vmatpush1.msra.mxu0 0.0
        %1612 = vmatprep.subr.mxu0 0.0
        %1613 = vmatpush1.msra.mxu0 0.0
        %1614 = vmatprep.subr.mxu0 0.0
        %1615 = vmatpush1.msra.mxu0 0.0
        %1616 = vmatprep.subr.mxu0 0.0
        %1617 = vmatpush1.msra.mxu0 0.0
        %1618 = vmatprep.subr.mxu0 0.0
        %1619 = vmatpush1.msra.mxu0 0.0
        %1620 = vmatprep.subr.mxu0 0.0
        %1621 = vmatpush1.msra.mxu0 0.0
        %1622 = vmatprep.subr.mxu0 0.0
        %1623 = vmatpush1.msra.mxu0 0.0
        %1624 = vmatprep.subr.mxu0 0.0
        %1625 = vmatpush1.msra.mxu0 0.0
        %1626 = vmatprep.subr.mxu0 0.0
        %1627 = vmatpush1.msra.mxu0 0.0
        %1628 = vmatprep.subr.mxu0 0.0
        %1629 = vmatpush1.msra.mxu0 0.0
        %1630 = vmatprep.subr.mxu0 0.0
        %1631 = vmatpush1.msra.mxu0 0.0
        %1632 = vmatprep.subr.mxu0 0.0
        %1633 = vmatpush1.msra.mxu0 0.0
        %1634 = vmatprep.subr.mxu0 0.0
        %1635 = vmatpush1.msra.mxu0 0.0
        %1636 = vmatprep.subr.mxu0 0.0
        %1637 = vmatpush1.msra.mxu0 0.0
        %1638 = vmatprep.subr.mxu0 0.0
        %1639 = vmatpush1.msra.mxu0 0.0
        %1640 = vmatprep.subr.mxu0 0.0
        %1641 = vmatpush1.msra.mxu0 0.0
        %1642 = vmatprep.subr.mxu0 0.0
        %1643 = vmatpush1.msra.mxu0 0.0
        %1644 = vmatprep.subr.mxu0 0.0
        %1645 = vmatpush1.msra.mxu0 0.0
        %1646 = vmatprep.subr.mxu0 0.0
        %1647 = vmatpush1.msra.mxu0 0.0
        %1648 = vmatprep.subr.mxu0 0.0
        %1649 = vmatpush1.msra.mxu0 0.0
        %1650 = vmatprep.subr.mxu0 0.0
        %1651 = vmatpush1.msra.mxu0 0.0
        %1652 = vmatprep.subr.mxu0 0.0
        %1653 = vmatpush1.msra.mxu0 0.0
        %1654 = vmatprep.subr.mxu0 0.0
        %1655 = vmatpush1.msra.mxu0 0.0
        %1656 = vmatprep.subr.mxu0 0.0
        %1657 = vmatpush1.msra.mxu0 0.0
        %1658 = vmatprep.subr.mxu0 0.0
        %1659 = vmatpush1.msra.mxu0 0.0
        %1660 = vmatprep.subr.mxu0 0.0
        %1661 = vmatpush1.msra.mxu0 0.0
        %1662 = vmatprep.mubr.f32.mxu0 0.0
        %1663 = vmatmul.mubr.f32.gmra.mrb[0].mxu0 %v1503
        %v1664 = vpop.f32.mrb[0].mxu0
        %v1665 = vadd.f32 %v1501, %v1664
        %v1666 = vpop.f32.mrb[0].mxu0
        %1667 = vmatprep.mubr.f32.mxu0 0.0
        %1668 = vmatmul.mubr.f32.gmra.mrb[0].mxu0 %v1506
        %v1669 = vpop.f32.mrb[0].mxu0
        %v1670 = vadd.f32 %v1501, %v1669
        %v1671 = vpop.f32.mrb[0].mxu0
        %1672 = vmatprep.mubr.f32.mxu0 0.0
        %1673 = vmatmul.mubr.f32.gmra.mrb[0].mxu0 %v1509
        %v1674 = vpop.f32.mrb[0].mxu0
        %v1675 = vadd.f32 %v1501, %v1674
        %v1676 = vpop.f32.mrb[0].mxu0
        %1677 = vmatprep.mubr.f32.mxu0 0.0
        %1678 = vmatmul.mubr.f32.gmra.mrb[0].mxu0 %v1512
        %v1679 = vpop.f32.mrb[0].mxu0
        %v1680 = vadd.f32 %v1501, %v1679
        %v1681 = vpop.f32.mrb[0].mxu0
        %1682 = vmatprep.mubr.f32.mxu0 0.0
        %1683 = vmatmul.mubr.f32.gmra.mrb[0].mxu0 %v1515
        %v1684 = vpop.f32.mrb[0].mxu0
        %v1685 = vadd.f32 %v1501, %v1684
        %v1686 = vpop.f32.mrb[0].mxu0
        %1687 = vmatprep.mubr.f32.mxu0 0.0
        %1688 = vmatmul.mubr.f32.gmra.mrb[0].mxu0 %v1518
        %v1689 = vpop.f32.mrb[0].mxu0
        %v1690 = vadd.f32 %v1501, %v1689
        %v1691 = vpop.f32.mrb[0].mxu0
        %1692 = vmatprep.mubr.f32.mxu0 0.0
        %1693 = vmatmul.mubr.f32.gmra.mrb[0].mxu0 %v1521
        %v1694 = vpop.f32.mrb[0].mxu0
        %v1695 = vadd.f32 %v1501, %v1694
        %v1696 = vpop.f32.mrb[0].mxu0
        %1697 = vmatprep.mubr.f32.mxu0 0.0
        %1698 = vmatmul.mubr.f32.gmra.mrb[0].mxu0 %v1524
        %v1699 = vpop.f32.mrb[0].mxu0
        %v1700 = vadd.f32 %v1501, %v1699
        %v1701 = vpop.f32.mrb[0].mxu0
        %1702 = vmatprep.mubr.f32.mxu0 0.0
        %1703 = vmatmul.mubr.f32.gmra.mrb[0].mxu0 %v1527
        %v1704 = vpop.f32.mrb[0].mxu0
        %v1705 = vadd.f32 %v1501, %v1704
        %v1706 = vpop.f32.mrb[0].mxu0
        %1707 = vmatprep.mubr.f32.mxu0 0.0
        %1708 = vmatmul.mubr.f32.gmra.mrb[0].mxu0 %v1530
        %v1709 = vpop.f32.mrb[0].mxu0
        %v1710 = vadd.f32 %v1501, %v1709
        %v1711 = vpop.f32.mrb[0].mxu0
        %1712 = vmatprep.mubr.f32.mxu0 0.0
        %1713 = vmatmul.mubr.f32.gmra.mrb[0].mxu0 %v1533
        %v1714 = vpop.f32.mrb[0].mxu0
        %v1715 = vadd.f32 %v1501, %v1714
        %v1716 = vpop.f32.mrb[0].mxu0
        %1717 = vmatprep.mubr.f32.mxu0 0.0
        %1718 = vmatmul.mubr.f32.gmra.mrb[0].mxu0 %v1536
        %v1719 = vpop.f32.mrb[0].mxu0
        %v1720 = vadd.f32 %v1501, %v1719
        %v1721 = vpop.f32.mrb[0].mxu0
        %1722 = vmatprep.mubr.f32.mxu0 0.0
        %1723 = vmatmul.mubr.f32.gmra.mrb[0].mxu0 %v1539
        %v1724 = vpop.f32.mrb[0].mxu0
        %v1725 = vadd.f32 %v1501, %v1724
        %v1726 = vpop.f32.mrb[0].mxu0
        %1727 = vmatprep.mubr.f32.mxu0 0.0
        %1728 = vmatmul.mubr.f32.gmra.mrb[0].mxu0 %v1542
        %v1729 = vpop.f32.mrb[0].mxu0
        %v1730 = vadd.f32 %v1501, %v1729
        %v1731 = vpop.f32.mrb[0].mxu0
        %1732 = vmatprep.mubr.f32.mxu0 0.0
        %1733 = vmatmul.mubr.f32.gmra.mrb[0].mxu0 %v1545
        %v1734 = vpop.f32.mrb[0].mxu0
        %v1735 = vadd.f32 %v1501, %v1734
        %v1736 = vpop.f32.mrb[0].mxu0
        %1737 = vmatprep.mubr.f32.mxu0 0.0
        %1738 = vmatmul.mubr.f32.gmra.mrb[0].mxu0 %v1548
        %v1739 = vpop.f32.mrb[0].mxu0
        %v1740 = vadd.f32 %v1501, %v1739
        %v1741 = vpop.f32.mrb[0].mxu0
        %1742 = vmatprep.mubr.f32.mxu0 0.0
        %1743 = vmatmul.mubr.f32.gmra.mrb[0].mxu0 %v1551
        %v1744 = vpop.f32.mrb[0].mxu0
        %v1745 = vadd.f32 %v1501, %v1744
        %v1746 = vpop.f32.mrb[0].mxu0
        %1747 = vmatprep.mubr.f32.mxu0 0.0
        %1748 = vmatmul.mubr.f32.gmra.mrb[0].mxu0 %v1554
        %v1749 = vpop.f32.mrb[0].mxu0
        %v1750 = vadd.f32 %v1501, %v1749
        %v1751 = vpop.f32.mrb[0].mxu0
        %1752 = vmatprep.mubr.f32.mxu0 0.0
        %1753 = vmatmul.mubr.f32.gmra.mrb[0].mxu0 %v1557
        %v1754 = vpop.f32.mrb[0].mxu0
        %v1755 = vadd.f32 %v1501, %v1754
        %v1756 = vpop.f32.mrb[0].mxu0
        %1757 = vmatprep.mubr.f32.mxu0 0.0
        %1758 = vmatmul.mubr.f32.gmra.mrb[0].mxu0 %v1560
        %v1759 = vpop.f32.mrb[0].mxu0
        %v1760 = vadd.f32 %v1501, %v1759
        %v1761 = vpop.f32.mrb[0].mxu0
        %1762 = vmatprep.mubr.f32.mxu0 0.0
        %1763 = vmatmul.mubr.f32.gmra.mrb[0].mxu0 %v1563
        %v1764 = vpop.f32.mrb[0].mxu0
        %v1765 = vadd.f32 %v1501, %v1764
        %v1766 = vpop.f32.mrb[0].mxu0
        %1767 = vmatprep.mubr.f32.mxu0 0.0
        %1768 = vmatmul.mubr.f32.gmra.mrb[0].mxu0 %v1566
        %v1769 = vpop.f32.mrb[0].mxu0
        %v1770 = vadd.f32 %v1501, %v1769
        %v1771 = vpop.f32.mrb[0].mxu0
        %1772 = vmatprep.mubr.f32.mxu0 0.0
        %1773 = vmatmul.mubr.f32.gmra.mrb[0].mxu0 %v1569
        %v1774 = vpop.f32.mrb[0].mxu0
        %v1775 = vadd.f32 %v1501, %v1774
        %v1776 = vpop.f32.mrb[0].mxu0
        %1777 = vmatprep.mubr.f32.mxu0 0.0
        %1778 = vmatmul.mubr.f32.gmra.mrb[0].mxu0 %v1572
        %v1779 = vpop.f32.mrb[0].mxu0
        %v1780 = vadd.f32 %v1501, %v1779
        %v1781 = vpop.f32.mrb[0].mxu0
        %1782 = vmatprep.mubr.f32.mxu0 0.0
        %1783 = vmatmul.mubr.f32.gmra.mrb[0].mxu0 %v1575
        %v1784 = vpop.f32.mrb[0].mxu0
        %v1785 = vadd.f32 %v1501, %v1784
        %v1786 = vpop.f32.mrb[0].mxu0
        %1787 = vmatprep.mubr.f32.mxu0 0.0
        %1788 = vmatmul.mubr.f32.gmra.mrb[0].mxu0 %v1578
        %v1789 = vpop.f32.mrb[0].mxu0
        %v1790 = vadd.f32 %v1501, %v1789
        %v1791 = vpop.f32.mrb[0].mxu0
        %1792 = vmatprep.mubr.f32.mxu0 0.0
        %1793 = vmatmul.mubr.f32.gmra.mrb[0].mxu0 %v1581
        %v1794 = vpop.f32.mrb[0].mxu0
        %v1795 = vadd.f32 %v1501, %v1794
        %v1796 = vpop.f32.mrb[0].mxu0
        %1797 = vmatprep.mubr.f32.mxu0 0.0
        %1798 = vmatmul.mubr.f32.gmra.mrb[0].mxu0 %v1584
        %v1799 = vpop.f32.mrb[0].mxu0
        %v1800 = vadd.f32 %v1501, %v1799
        %v1801 = vpop.f32.mrb[0].mxu0
        %1802 = vmatprep.mubr.f32.mxu0 0.0
        %1803 = vmatmul.mubr.f32.gmra.mrb[0].mxu0 %v1587
        %v1804 = vpop.f32.mrb[0].mxu0
        %v1805 = vadd.f32 %v1501, %v1804
        %v1806 = vpop.f32.mrb[0].mxu0
        %1807 = vmatprep.mubr.f32.mxu0 0.0
        %1808 = vmatmul.mubr.f32.gmra.mrb[0].mxu0 %v1590
        %v1809 = vpop.f32.mrb[0].mxu0
        %v1810 = vadd.f32 %v1501, %v1809
        %v1811 = vpop.f32.mrb[0].mxu0
        %1812 = vmatprep.mubr.f32.mxu0 0.0
        %1813 = vmatmul.mubr.f32.gmra.mrb[0].mxu0 %v1593
        %v1814 = vpop.f32.mrb[0].mxu0
        %v1815 = vadd.f32 %v1501, %v1814
        %v1816 = vpop.f32.mrb[0].mxu0
        %1817 = vmatprep.mubr.f32.mxu0 0.0
        %1818 = vmatmul.mubr.f32.gmra.mrb[0].mxu0 %v1596
        %v1819 = vpop.f32.mrb[0].mxu0
        %v1820 = vadd.f32 %v1501, %v1819
        %v1821 = vpop.f32.mrb[0].mxu0
        %1822 = vdwg.mxu0
        %vm1823 = vcmp.gt.f32.partialorder %v1665, 0.0
        %vm1824 = vcmp.gt.f32.partialorder %v1670, 0.0
        %vm1825 = vcmp.gt.f32.partialorder %v1675, 0.0
        %vm1826 = vcmp.gt.f32.partialorder %v1680, 0.0
        %vm1827 = vcmp.gt.f32.partialorder %v1685, 0.0
        %vm1828 = vcmp.gt.f32.partialorder %v1690, 0.0
        %vm1829 = vcmp.gt.f32.partialorder %v1695, 0.0
        %vm1830 = vcmp.gt.f32.partialorder %v1700, 0.0
        %vm1831 = vcmp.gt.f32.partialorder %v1705, 0.0
        %vm1832 = vcmp.gt.f32.partialorder %v1710, 0.0
        %vm1833 = vcmp.gt.f32.partialorder %v1715, 0.0
        %vm1834 = vcmp.gt.f32.partialorder %v1720, 0.0
        %vm1835 = vcmp.gt.f32.partialorder %v1725, 0.0
        %vm1836 = vcmp.gt.f32.partialorder %v1730, 0.0
        %vm1837 = vcmp.gt.f32.partialorder %v1735, 0.0
        %vm1838 = vcmp.gt.f32.partialorder %v1740, 0.0
        %vm1839 = vcmp.gt.f32.partialorder %v1745, 0.0
        %vm1840 = vcmp.gt.f32.partialorder %v1750, 0.0
        %vm1841 = vcmp.gt.f32.partialorder %v1755, 0.0
        %vm1842 = vcmp.gt.f32.partialorder %v1760, 0.0
        %vm1843 = vcmp.gt.f32.partialorder %v1765, 0.0
        %vm1844 = vcmp.gt.f32.partialorder %v1770, 0.0
        %vm1845 = vcmp.gt.f32.partialorder %v1775, 0.0
        %vm1846 = vcmp.gt.f32.partialorder %v1780, 0.0
        %vm1847 = vcmp.gt.f32.partialorder %v1785, 0.0
        %vm1848 = vcmp.gt.f32.partialorder %v1790, 0.0
        %vm1849 = vcmp.gt.f32.partialorder %v1795, 0.0
        %vm1850 = vcmp.gt.f32.partialorder %v1800, 0.0
        %vm1851 = vcmp.gt.f32.partialorder %v1805, 0.0
        %vm1852 = vcmp.gt.f32.partialorder %v1810, 0.0
        %vm1853 = vcmp.gt.f32.partialorder %v1815, 0.0
        %vm1854 = vcmp.gt.f32.partialorder %v1820, 0.0
        %v1855 = vmul.f32 %v1665, 0.01
        %v1856 = vmul.f32 %v1670, 0.01
        %v1857 = vmul.f32 %v1675, 0.01
        %v1858 = vmul.f32 %v1680, 0.01
        %v1859 = vmul.f32 %v1685, 0.01
        %v1860 = vmul.f32 %v1690, 0.01
        %v1861 = vmul.f32 %v1695, 0.01
        %v1862 = vmul.f32 %v1700, 0.01
        %v1863 = vmul.f32 %v1705, 0.01
        %v1864 = vmul.f32 %v1710, 0.01
        %v1865 = vmul.f32 %v1715, 0.01
        %v1866 = vmul.f32 %v1720, 0.01
        %v1867 = vmul.f32 %v1725, 0.01
        %v1868 = vmul.f32 %v1730, 0.01
        %v1869 = vmul.f32 %v1735, 0.01
        %v1870 = vmul.f32 %v1740, 0.01
        %v1871 = vmul.f32 %v1745, 0.01
        %v1872 = vmul.f32 %v1750, 0.01
        %v1873 = vmul.f32 %v1755, 0.01
        %v1874 = vmul.f32 %v1760, 0.01
        %v1875 = vmul.f32 %v1765, 0.01
        %v1876 = vmul.f32 %v1770, 0.01
        %v1877 = vmul.f32 %v1775, 0.01
        %v1878 = vmul.f32 %v1780, 0.01
        %v1879 = vmul.f32 %v1785, 0.01
        %v1880 = vmul.f32 %v1790, 0.01
        %v1881 = vmul.f32 %v1795, 0.01
        %v1882 = vmul.f32 %v1800, 0.01
        %v1883 = vmul.f32 %v1805, 0.01
        %v1884 = vmul.f32 %v1810, 0.01
        %v1885 = vmul.f32 %v1815, 0.01
        %v1886 = vmul.f32 %v1820, 0.01
        %v1887 = vsel %vm1823, %v1665, %v1855
        %v1888 = vsel %vm1824, %v1670, %v1856
        %v1889 = vsel %vm1825, %v1675, %v1857
        %v1890 = vsel %vm1826, %v1680, %v1858
        %v1891 = vsel %vm1827, %v1685, %v1859
        %v1892 = vsel %vm1828, %v1690, %v1860
        %v1893 = vsel %vm1829, %v1695, %v1861
        %v1894 = vsel %vm1830, %v1700, %v1862
        %v1895 = vsel %vm1831, %v1705, %v1863
        %v1896 = vsel %vm1832, %v1710, %v1864
        %v1897 = vsel %vm1833, %v1715, %v1865
        %v1898 = vsel %vm1834, %v1720, %v1866
        %v1899 = vsel %vm1835, %v1725, %v1867
        %v1900 = vsel %vm1836, %v1730, %v1868
        %v1901 = vsel %vm1837, %v1735, %v1869
        %v1902 = vsel %vm1838, %v1740, %v1870
        %v1903 = vsel %vm1839, %v1745, %v1871
        %v1904 = vsel %vm1840, %v1750, %v1872
        %v1905 = vsel %vm1841, %v1755, %v1873
        %v1906 = vsel %vm1842, %v1760, %v1874
        %v1907 = vsel %vm1843, %v1765, %v1875
        %v1908 = vsel %vm1844, %v1770, %v1876
        %v1909 = vsel %vm1845, %v1775, %v1877
        %v1910 = vsel %vm1846, %v1780, %v1878
        %v1911 = vsel %vm1847, %v1785, %v1879
        %v1912 = vsel %vm1848, %v1790, %v1880
        %v1913 = vsel %vm1849, %v1795, %v1881
        %v1914 = vsel %vm1850, %v1800, %v1882
        %v1915 = vsel %vm1851, %v1805, %v1883
        %v1916 = vsel %vm1852, %v1810, %v1884
        %v1917 = vsel %vm1853, %v1815, %v1885
        %v1918 = vsel %vm1854, %v1820, %v1886
        %v1919 = vld [vmem:[#allocation5 + $0x28] sm:$0xff]
        %v1920 = vld [vmem:[#allocation5 + $0x58] sm:$0x1]
        %v1921 = vlaneseq
        %v1922 = vshrl.u32 %v1921, 7
        %v1923 = vsub.s32 0, %v1922
        %v1924 = vrot.slane %v1920, %v1923
        %v1926 = vsel %vm652, %v1887, 0
        %v1929 = vsel %vm652, %v1888, 0
        %v1932 = vsel %vm652, %v1889, 0
        %v1935 = vsel %vm652, %v1890, 0
        %v1938 = vsel %vm652, %v1891, 0
        %v1941 = vsel %vm652, %v1892, 0
        %v1944 = vsel %vm652, %v1893, 0
        %v1947 = vsel %vm652, %v1894, 0
        %v1950 = vsel %vm652, %v1895, 0
        %v1953 = vsel %vm652, %v1896, 0
        %v1956 = vsel %vm652, %v1897, 0
        %v1959 = vsel %vm652, %v1898, 0
        %v1962 = vsel %vm652, %v1899, 0
        %v1965 = vsel %vm652, %v1900, 0
        %v1968 = vsel %vm652, %v1901, 0
        %v1971 = vsel %vm652, %v1902, 0
        %v1974 = vsel %vm652, %v1903, 0
        %v1977 = vsel %vm652, %v1904, 0
        %v1980 = vsel %vm652, %v1905, 0
        %v1983 = vsel %vm652, %v1906, 0
        %v1986 = vsel %vm652, %v1907, 0
        %v1989 = vsel %vm652, %v1908, 0
        %v1992 = vsel %vm652, %v1909, 0
        %v1995 = vsel %vm652, %v1910, 0
        %v1998 = vsel %vm652, %v1911, 0
        %v2001 = vsel %vm652, %v1912, 0
        %v2004 = vsel %vm652, %v1913, 0
        %v2007 = vsel %vm652, %v1914, 0
        %v2010 = vsel %vm652, %v1915, 0
        %v2013 = vsel %vm652, %v1916, 0
        %v2016 = vsel %vm652, %v1917, 0
        %v2019 = vsel %vm652, %v1918, 0
        %2021 = vmatprep.subr.mxu0 0.0
        %2022 = vmatpush1.msra.mxu0 %v1919
        %2023 = vmatprep.subr.mxu0 0.0
        %2024 = vmatpush1.msra.mxu0 0.0
        %2025 = vmatprep.subr.mxu0 0.0
        %2026 = vmatpush1.msra.mxu0 0.0
        %2027 = vmatprep.subr.mxu0 0.0
        %2028 = vmatpush1.msra.mxu0 0.0
        %2029 = vmatprep.subr.mxu0 0.0
        %2030 = vmatpush1.msra.mxu0 0.0
        %2031 = vmatprep.subr.mxu0 0.0
        %2032 = vmatpush1.msra.mxu0 0.0
        %2033 = vmatprep.subr.mxu0 0.0
        %2034 = vmatpush1.msra.mxu0 0.0
        %2035 = vmatprep.subr.mxu0 0.0
        %2036 = vmatpush1.msra.mxu0 0.0
        %2037 = vmatprep.subr.mxu0 0.0
        %2038 = vmatpush1.msra.mxu0 0.0
        %2039 = vmatprep.subr.mxu0 0.0
        %2040 = vmatpush1.msra.mxu0 0.0
        %2041 = vmatprep.subr.mxu0 0.0
        %2042 = vmatpush1.msra.mxu0 0.0
        %2043 = vmatprep.subr.mxu0 0.0
        %2044 = vmatpush1.msra.mxu0 0.0
        %2045 = vmatprep.subr.mxu0 0.0
        %2046 = vmatpush1.msra.mxu0 0.0
        %2047 = vmatprep.subr.mxu0 0.0
        %2048 = vmatpush1.msra.mxu0 0.0
        %2049 = vmatprep.subr.mxu0 0.0
        %2050 = vmatpush1.msra.mxu0 0.0
        %2051 = vmatprep.subr.mxu0 0.0
        %2052 = vmatpush1.msra.mxu0 0.0
        %2053 = vmatprep.subr.mxu0 0.0
        %2054 = vmatpush1.msra.mxu0 0.0
        %2055 = vmatprep.subr.mxu0 0.0
        %2056 = vmatpush1.msra.mxu0 0.0
        %2057 = vmatprep.subr.mxu0 0.0
        %2058 = vmatpush1.msra.mxu0 0.0
        %2059 = vmatprep.subr.mxu0 0.0
        %2060 = vmatpush1.msra.mxu0 0.0
        %2061 = vmatprep.subr.mxu0 0.0
        %2062 = vmatpush1.msra.mxu0 0.0
        %2063 = vmatprep.subr.mxu0 0.0
        %2064 = vmatpush1.msra.mxu0 0.0
        %2065 = vmatprep.subr.mxu0 0.0
        %2066 = vmatpush1.msra.mxu0 0.0
        %2067 = vmatprep.subr.mxu0 0.0
        %2068 = vmatpush1.msra.mxu0 0.0
        %2069 = vmatprep.subr.mxu0 0.0
        %2070 = vmatpush1.msra.mxu0 0.0
        %2071 = vmatprep.subr.mxu0 0.0
        %2072 = vmatpush1.msra.mxu0 0.0
        %2073 = vmatprep.subr.mxu0 0.0
        %2074 = vmatpush1.msra.mxu0 0.0
        %2075 = vmatprep.subr.mxu0 0.0
        %2076 = vmatpush1.msra.mxu0 0.0
        %2077 = vmatprep.subr.mxu0 0.0
        %2078 = vmatpush1.msra.mxu0 0.0
        %2079 = vmatprep.subr.mxu0 0.0
        %2080 = vmatpush1.msra.mxu0 0.0
        %2081 = vmatprep.subr.mxu0 0.0
        %2082 = vmatpush1.msra.mxu0 0.0
        %2083 = vmatprep.subr.mxu0 0.0
        %2084 = vmatpush1.msra.mxu0 0.0
        %2085 = vmatprep.mubr.f32.mxu0 0.0
        %2086 = vmatmul.mubr.f32.gmra.mrb[0].mxu0 %v1926
        %v2087 = vpop.f32.mrb[0].mxu0
        %v2088 = vadd.f32 %v1924, %v2087
        %v2089 = vpop.f32.mrb[0].mxu0
        %2090 = vmatprep.mubr.f32.mxu0 0.0
        %2091 = vmatmul.mubr.f32.gmra.mrb[0].mxu0 %v1929
        %v2092 = vpop.f32.mrb[0].mxu0
        %v2093 = vadd.f32 %v1924, %v2092
        %v2094 = vpop.f32.mrb[0].mxu0
        %2095 = vmatprep.mubr.f32.mxu0 0.0
        %2096 = vmatmul.mubr.f32.gmra.mrb[0].mxu0 %v1932
        %v2097 = vpop.f32.mrb[0].mxu0
        %v2098 = vadd.f32 %v1924, %v2097
        %v2099 = vpop.f32.mrb[0].mxu0
        %2100 = vmatprep.mubr.f32.mxu0 0.0
        %2101 = vmatmul.mubr.f32.gmra.mrb[0].mxu0 %v1935
        %v2102 = vpop.f32.mrb[0].mxu0
        %v2103 = vadd.f32 %v1924, %v2102
        %v2104 = vpop.f32.mrb[0].mxu0
        %2105 = vmatprep.mubr.f32.mxu0 0.0
        %2106 = vmatmul.mubr.f32.gmra.mrb[0].mxu0 %v1938
        %v2107 = vpop.f32.mrb[0].mxu0
        %v2108 = vadd.f32 %v1924, %v2107
        %v2109 = vpop.f32.mrb[0].mxu0
        %2110 = vmatprep.mubr.f32.mxu0 0.0
        %2111 = vmatmul.mubr.f32.gmra.mrb[0].mxu0 %v1941
        %v2112 = vpop.f32.mrb[0].mxu0
        %v2113 = vadd.f32 %v1924, %v2112
        %v2114 = vpop.f32.mrb[0].mxu0
        %2115 = vmatprep.mubr.f32.mxu0 0.0
        %2116 = vmatmul.mubr.f32.gmra.mrb[0].mxu0 %v1944
        %v2117 = vpop.f32.mrb[0].mxu0
        %v2118 = vadd.f32 %v1924, %v2117
        %v2119 = vpop.f32.mrb[0].mxu0
        %2120 = vmatprep.mubr.f32.mxu0 0.0
        %2121 = vmatmul.mubr.f32.gmra.mrb[0].mxu0 %v1947
        %v2122 = vpop.f32.mrb[0].mxu0
        %v2123 = vadd.f32 %v1924, %v2122
        %v2124 = vpop.f32.mrb[0].mxu0
        %2125 = vmatprep.mubr.f32.mxu0 0.0
        %2126 = vmatmul.mubr.f32.gmra.mrb[0].mxu0 %v1950
        %v2127 = vpop.f32.mrb[0].mxu0
        %v2128 = vadd.f32 %v1924, %v2127
        %v2129 = vpop.f32.mrb[0].mxu0
        %2130 = vmatprep.mubr.f32.mxu0 0.0
        %2131 = vmatmul.mubr.f32.gmra.mrb[0].mxu0 %v1953
        %v2132 = vpop.f32.mrb[0].mxu0
        %v2133 = vadd.f32 %v1924, %v2132
        %v2134 = vpop.f32.mrb[0].mxu0
        %2135 = vmatprep.mubr.f32.mxu0 0.0
        %2136 = vmatmul.mubr.f32.gmra.mrb[0].mxu0 %v1956
        %v2137 = vpop.f32.mrb[0].mxu0
        %v2138 = vadd.f32 %v1924, %v2137
        %v2139 = vpop.f32.mrb[0].mxu0
        %2140 = vmatprep.mubr.f32.mxu0 0.0
        %2141 = vmatmul.mubr.f32.gmra.mrb[0].mxu0 %v1959
        %v2142 = vpop.f32.mrb[0].mxu0
        %v2143 = vadd.f32 %v1924, %v2142
        %v2144 = vpop.f32.mrb[0].mxu0
        %2145 = vmatprep.mubr.f32.mxu0 0.0
        %2146 = vmatmul.mubr.f32.gmra.mrb[0].mxu0 %v1962
        %v2147 = vpop.f32.mrb[0].mxu0
        %v2148 = vadd.f32 %v1924, %v2147
        %v2149 = vpop.f32.mrb[0].mxu0
        %2150 = vmatprep.mubr.f32.mxu0 0.0
        %2151 = vmatmul.mubr.f32.gmra.mrb[0].mxu0 %v1965
        %v2152 = vpop.f32.mrb[0].mxu0
        %v2153 = vadd.f32 %v1924, %v2152
        %v2154 = vpop.f32.mrb[0].mxu0
        %2155 = vmatprep.mubr.f32.mxu0 0.0
        %2156 = vmatmul.mubr.f32.gmra.mrb[0].mxu0 %v1968
        %v2157 = vpop.f32.mrb[0].mxu0
        %v2158 = vadd.f32 %v1924, %v2157
        %v2159 = vpop.f32.mrb[0].mxu0
        %2160 = vmatprep.mubr.f32.mxu0 0.0
        %2161 = vmatmul.mubr.f32.gmra.mrb[0].mxu0 %v1971
        %v2162 = vpop.f32.mrb[0].mxu0
        %v2163 = vadd.f32 %v1924, %v2162
        %v2164 = vpop.f32.mrb[0].mxu0
        %2165 = vmatprep.mubr.f32.mxu0 0.0
        %2166 = vmatmul.mubr.f32.gmra.mrb[0].mxu0 %v1974
        %v2167 = vpop.f32.mrb[0].mxu0
        %v2168 = vadd.f32 %v1924, %v2167
        %v2169 = vpop.f32.mrb[0].mxu0
        %2170 = vmatprep.mubr.f32.mxu0 0.0
        %2171 = vmatmul.mubr.f32.gmra.mrb[0].mxu0 %v1977
        %v2172 = vpop.f32.mrb[0].mxu0
        %v2173 = vadd.f32 %v1924, %v2172
        %v2174 = vpop.f32.mrb[0].mxu0
        %2175 = vmatprep.mubr.f32.mxu0 0.0
        %2176 = vmatmul.mubr.f32.gmra.mrb[0].mxu0 %v1980
        %v2177 = vpop.f32.mrb[0].mxu0
        %v2178 = vadd.f32 %v1924, %v2177
        %v2179 = vpop.f32.mrb[0].mxu0
        %2180 = vmatprep.mubr.f32.mxu0 0.0
        %2181 = vmatmul.mubr.f32.gmra.mrb[0].mxu0 %v1983
        %v2182 = vpop.f32.mrb[0].mxu0
        %v2183 = vadd.f32 %v1924, %v2182
        %v2184 = vpop.f32.mrb[0].mxu0
        %2185 = vmatprep.mubr.f32.mxu0 0.0
        %2186 = vmatmul.mubr.f32.gmra.mrb[0].mxu0 %v1986
        %v2187 = vpop.f32.mrb[0].mxu0
        %v2188 = vadd.f32 %v1924, %v2187
        %v2189 = vpop.f32.mrb[0].mxu0
        %2190 = vmatprep.mubr.f32.mxu0 0.0
        %2191 = vmatmul.mubr.f32.gmra.mrb[0].mxu0 %v1989
        %v2192 = vpop.f32.mrb[0].mxu0
        %v2193 = vadd.f32 %v1924, %v2192
        %v2194 = vpop.f32.mrb[0].mxu0
        %2195 = vmatprep.mubr.f32.mxu0 0.0
        %2196 = vmatmul.mubr.f32.gmra.mrb[0].mxu0 %v1992
        %v2197 = vpop.f32.mrb[0].mxu0
        %v2198 = vadd.f32 %v1924, %v2197
        %v2199 = vpop.f32.mrb[0].mxu0
        %2200 = vmatprep.mubr.f32.mxu0 0.0
        %2201 = vmatmul.mubr.f32.gmra.mrb[0].mxu0 %v1995
        %v2202 = vpop.f32.mrb[0].mxu0
        %v2203 = vadd.f32 %v1924, %v2202
        %v2204 = vpop.f32.mrb[0].mxu0
        %2205 = vmatprep.mubr.f32.mxu0 0.0
        %2206 = vmatmul.mubr.f32.gmra.mrb[0].mxu0 %v1998
        %v2207 = vpop.f32.mrb[0].mxu0
        %v2208 = vadd.f32 %v1924, %v2207
        %v2209 = vpop.f32.mrb[0].mxu0
        %2210 = vmatprep.mubr.f32.mxu0 0.0
        %2211 = vmatmul.mubr.f32.gmra.mrb[0].mxu0 %v2001
        %v2212 = vpop.f32.mrb[0].mxu0
        %v2213 = vadd.f32 %v1924, %v2212
        %v2214 = vpop.f32.mrb[0].mxu0
        %2215 = vmatprep.mubr.f32.mxu0 0.0
        %2216 = vmatmul.mubr.f32.gmra.mrb[0].mxu0 %v2004
        %v2217 = vpop.f32.mrb[0].mxu0
        %v2218 = vadd.f32 %v1924, %v2217
        %v2219 = vpop.f32.mrb[0].mxu0
        %2220 = vmatprep.mubr.f32.mxu0 0.0
        %2221 = vmatmul.mubr.f32.gmra.mrb[0].mxu0 %v2007
        %v2222 = vpop.f32.mrb[0].mxu0
        %v2223 = vadd.f32 %v1924, %v2222
        %v2224 = vpop.f32.mrb[0].mxu0
        %2225 = vmatprep.mubr.f32.mxu0 0.0
        %2226 = vmatmul.mubr.f32.gmra.mrb[0].mxu0 %v2010
        %v2227 = vpop.f32.mrb[0].mxu0
        %v2228 = vadd.f32 %v1924, %v2227
        %v2229 = vpop.f32.mrb[0].mxu0
        %2230 = vmatprep.mubr.f32.mxu0 0.0
        %2231 = vmatmul.mubr.f32.gmra.mrb[0].mxu0 %v2013
        %v2232 = vpop.f32.mrb[0].mxu0
        %v2233 = vadd.f32 %v1924, %v2232
        %v2234 = vpop.f32.mrb[0].mxu0
        %2235 = vmatprep.mubr.f32.mxu0 0.0
        %2236 = vmatmul.mubr.f32.gmra.mrb[0].mxu0 %v2016
        %v2237 = vpop.f32.mrb[0].mxu0
        %v2238 = vadd.f32 %v1924, %v2237
        %v2239 = vpop.f32.mrb[0].mxu0
        %2240 = vmatprep.mubr.f32.mxu0 0.0
        %2241 = vmatmul.mubr.f32.gmra.mrb[0].mxu0 %v2019
        %v2242 = vpop.f32.mrb[0].mxu0
        %v2243 = vadd.f32 %v1924, %v2242
        %v2244 = vpop.f32.mrb[0].mxu0
        %2245 = vdwg.mxu0
        %vm2246 = vcmp.gt.f32.partialorder %v2088, 0.0
        %vm2247 = vcmp.gt.f32.partialorder %v2093, 0.0
        %vm2248 = vcmp.gt.f32.partialorder %v2098, 0.0
        %vm2249 = vcmp.gt.f32.partialorder %v2103, 0.0
        %vm2250 = vcmp.gt.f32.partialorder %v2108, 0.0
        %vm2251 = vcmp.gt.f32.partialorder %v2113, 0.0
        %vm2252 = vcmp.gt.f32.partialorder %v2118, 0.0
        %vm2253 = vcmp.gt.f32.partialorder %v2123, 0.0
        %vm2254 = vcmp.gt.f32.partialorder %v2128, 0.0
        %vm2255 = vcmp.gt.f32.partialorder %v2133, 0.0
        %vm2256 = vcmp.gt.f32.partialorder %v2138, 0.0
        %vm2257 = vcmp.gt.f32.partialorder %v2143, 0.0
        %vm2258 = vcmp.gt.f32.partialorder %v2148, 0.0
        %vm2259 = vcmp.gt.f32.partialorder %v2153, 0.0
        %vm2260 = vcmp.gt.f32.partialorder %v2158, 0.0
        %vm2261 = vcmp.gt.f32.partialorder %v2163, 0.0
        %vm2262 = vcmp.gt.f32.partialorder %v2168, 0.0
        %vm2263 = vcmp.gt.f32.partialorder %v2173, 0.0
        %vm2264 = vcmp.gt.f32.partialorder %v2178, 0.0
        %vm2265 = vcmp.gt.f32.partialorder %v2183, 0.0
        %vm2266 = vcmp.gt.f32.partialorder %v2188, 0.0
        %vm2267 = vcmp.gt.f32.partialorder %v2193, 0.0
        %vm2268 = vcmp.gt.f32.partialorder %v2198, 0.0
        %vm2269 = vcmp.gt.f32.partialorder %v2203, 0.0
        %vm2270 = vcmp.gt.f32.partialorder %v2208, 0.0
        %vm2271 = vcmp.gt.f32.partialorder %v2213, 0.0
        %vm2272 = vcmp.gt.f32.partialorder %v2218, 0.0
        %vm2273 = vcmp.gt.f32.partialorder %v2223, 0.0
        %vm2274 = vcmp.gt.f32.partialorder %v2228, 0.0
        %vm2275 = vcmp.gt.f32.partialorder %v2233, 0.0
        %vm2276 = vcmp.gt.f32.partialorder %v2238, 0.0
        %vm2277 = vcmp.gt.f32.partialorder %v2243, 0.0
        %v2278 = vmul.f32 %v2088, 0.01
        %v2279 = vmul.f32 %v2093, 0.01
        %v2280 = vmul.f32 %v2098, 0.01
        %v2281 = vmul.f32 %v2103, 0.01
        %v2282 = vmul.f32 %v2108, 0.01
        %v2283 = vmul.f32 %v2113, 0.01
        %v2284 = vmul.f32 %v2118, 0.01
        %v2285 = vmul.f32 %v2123, 0.01
        %v2286 = vmul.f32 %v2128, 0.01
        %v2287 = vmul.f32 %v2133, 0.01
        %v2288 = vmul.f32 %v2138, 0.01
        %v2289 = vmul.f32 %v2143, 0.01
        %v2290 = vmul.f32 %v2148, 0.01
        %v2291 = vmul.f32 %v2153, 0.01
        %v2292 = vmul.f32 %v2158, 0.01
        %v2293 = vmul.f32 %v2163, 0.01
        %v2294 = vmul.f32 %v2168, 0.01
        %v2295 = vmul.f32 %v2173, 0.01
        %v2296 = vmul.f32 %v2178, 0.01
        %v2297 = vmul.f32 %v2183, 0.01
        %v2298 = vmul.f32 %v2188, 0.01
        %v2299 = vmul.f32 %v2193, 0.01
        %v2300 = vmul.f32 %v2198, 0.01
        %v2301 = vmul.f32 %v2203, 0.01
        %v2302 = vmul.f32 %v2208, 0.01
        %v2303 = vmul.f32 %v2213, 0.01
        %v2304 = vmul.f32 %v2218, 0.01
        %v2305 = vmul.f32 %v2223, 0.01
        %v2306 = vmul.f32 %v2228, 0.01
        %v2307 = vmul.f32 %v2233, 0.01
        %v2308 = vmul.f32 %v2238, 0.01
        %v2309 = vmul.f32 %v2243, 0.01
        %v2310 = vsel %vm2246, %v2088, %v2278
        %v2311 = vsel %vm2247, %v2093, %v2279
        %v2312 = vsel %vm2248, %v2098, %v2280
        %v2313 = vsel %vm2249, %v2103, %v2281
        %v2314 = vsel %vm2250, %v2108, %v2282
        %v2315 = vsel %vm2251, %v2113, %v2283
        %v2316 = vsel %vm2252, %v2118, %v2284
        %v2317 = vsel %vm2253, %v2123, %v2285
        %v2318 = vsel %vm2254, %v2128, %v2286
        %v2319 = vsel %vm2255, %v2133, %v2287
        %v2320 = vsel %vm2256, %v2138, %v2288
        %v2321 = vsel %vm2257, %v2143, %v2289
        %v2322 = vsel %vm2258, %v2148, %v2290
        %v2323 = vsel %vm2259, %v2153, %v2291
        %v2324 = vsel %vm2260, %v2158, %v2292
        %v2325 = vsel %vm2261, %v2163, %v2293
        %v2326 = vsel %vm2262, %v2168, %v2294
        %v2327 = vsel %vm2263, %v2173, %v2295
        %v2328 = vsel %vm2264, %v2178, %v2296
        %v2329 = vsel %vm2265, %v2183, %v2297
        %v2330 = vsel %vm2266, %v2188, %v2298
        %v2331 = vsel %vm2267, %v2193, %v2299
        %v2332 = vsel %vm2268, %v2198, %v2300
        %v2333 = vsel %vm2269, %v2203, %v2301
        %v2334 = vsel %vm2270, %v2208, %v2302
        %v2335 = vsel %vm2271, %v2213, %v2303
        %v2336 = vsel %vm2272, %v2218, %v2304
        %v2337 = vsel %vm2273, %v2223, %v2305
        %v2338 = vsel %vm2274, %v2228, %v2306
        %v2339 = vsel %vm2275, %v2233, %v2307
        %v2340 = vsel %vm2276, %v2238, %v2308
        %v2341 = vsel %vm2277, %v2243, %v2309
        %v2342 = vld [vmem:[#allocation5 + $0x38] sm:$0x1]
        %v2343 = vlaneseq
        %v2344 = vshrl.u32 %v2343, 7
        %v2345 = vsub.s32 0, %v2344
        %v2346 = vrot.slane %v2342, %v2345
        %v2347 = vmul.f32 %v2310, %v2346
        %v2348 = vmul.f32 %v2311, %v2346
        %v2349 = vmul.f32 %v2312, %v2346
        %v2350 = vmul.f32 %v2313, %v2346
        %v2351 = vmul.f32 %v2314, %v2346
        %v2352 = vmul.f32 %v2315, %v2346
        %v2353 = vmul.f32 %v2316, %v2346
        %v2354 = vmul.f32 %v2317, %v2346
        %v2355 = vmul.f32 %v2318, %v2346
        %v2356 = vmul.f32 %v2319, %v2346
        %v2357 = vmul.f32 %v2320, %v2346
        %v2358 = vmul.f32 %v2321, %v2346
        %v2359 = vmul.f32 %v2322, %v2346
        %v2360 = vmul.f32 %v2323, %v2346
        %v2361 = vmul.f32 %v2324, %v2346
        %v2362 = vmul.f32 %v2325, %v2346
        %v2363 = vmul.f32 %v2326, %v2346
        %v2364 = vmul.f32 %v2327, %v2346
        %v2365 = vmul.f32 %v2328, %v2346
        %v2366 = vmul.f32 %v2329, %v2346
        %v2367 = vmul.f32 %v2330, %v2346
        %v2368 = vmul.f32 %v2331, %v2346
        %v2369 = vmul.f32 %v2332, %v2346
        %v2370 = vmul.f32 %v2333, %v2346
        %v2371 = vmul.f32 %v2334, %v2346
        %v2372 = vmul.f32 %v2335, %v2346
        %v2373 = vmul.f32 %v2336, %v2346
        %v2374 = vmul.f32 %v2337, %v2346
        %v2375 = vmul.f32 %v2338, %v2346
        %v2376 = vmul.f32 %v2339, %v2346
        %v2377 = vmul.f32 %v2340, %v2346
        %v2378 = vmul.f32 %v2341, %v2346
        %v2379 = vsel %vm652, %v2347, 0.0
        %2380 = vadd.xlane.f32.xlu0 %v2379
        %v2381 = vpop.xlane.xlu0 %2380
        %v2382 = vsel %vm652, %v2348, 0.0
        %2383 = vadd.xlane.f32.xlu0 %v2382
        %v2384 = vpop.xlane.xlu0 %2383
        %v2385 = vsel %vm652, %v2349, 0.0
        %2386 = vadd.xlane.f32.xlu0 %v2385
        %v2387 = vpop.xlane.xlu0 %2386
        %v2388 = vsel %vm652, %v2350, 0.0
        %2389 = vadd.xlane.f32.xlu0 %v2388
        %v2390 = vpop.xlane.xlu0 %2389
        %v2391 = vsel %vm652, %v2351, 0.0
        %2392 = vadd.xlane.f32.xlu0 %v2391
        %v2393 = vpop.xlane.xlu0 %2392
        %v2394 = vsel %vm652, %v2352, 0.0
        %2395 = vadd.xlane.f32.xlu0 %v2394
        %v2396 = vpop.xlane.xlu0 %2395
        %v2397 = vsel %vm652, %v2353, 0.0
        %2398 = vadd.xlane.f32.xlu0 %v2397
        %v2399 = vpop.xlane.xlu0 %2398
        %v2400 = vsel %vm652, %v2354, 0.0
        %2401 = vadd.xlane.f32.xlu0 %v2400
        %v2402 = vpop.xlane.xlu0 %2401
        %v2403 = vsel %vm652, %v2355, 0.0
        %2404 = vadd.xlane.f32.xlu0 %v2403
        %v2405 = vpop.xlane.xlu0 %2404
        %v2406 = vsel %vm652, %v2356, 0.0
        %2407 = vadd.xlane.f32.xlu0 %v2406
        %v2408 = vpop.xlane.xlu0 %2407
        %v2409 = vsel %vm652, %v2357, 0.0
        %2410 = vadd.xlane.f32.xlu0 %v2409
        %v2411 = vpop.xlane.xlu0 %2410
        %v2412 = vsel %vm652, %v2358, 0.0
        %2413 = vadd.xlane.f32.xlu0 %v2412
        %v2414 = vpop.xlane.xlu0 %2413
        %v2415 = vsel %vm652, %v2359, 0.0
        %2416 = vadd.xlane.f32.xlu0 %v2415
        %v2417 = vpop.xlane.xlu0 %2416
        %v2418 = vsel %vm652, %v2360, 0.0
        %2419 = vadd.xlane.f32.xlu0 %v2418
        %v2420 = vpop.xlane.xlu0 %2419
        %v2421 = vsel %vm652, %v2361, 0.0
        %2422 = vadd.xlane.f32.xlu0 %v2421
        %v2423 = vpop.xlane.xlu0 %2422
        %v2424 = vsel %vm652, %v2362, 0.0
        %2425 = vadd.xlane.f32.xlu0 %v2424
        %v2426 = vpop.xlane.xlu0 %2425
        %v2427 = vsel %vm652, %v2363, 0.0
        %2428 = vadd.xlane.f32.xlu0 %v2427
        %v2429 = vpop.xlane.xlu0 %2428
        %v2430 = vsel %vm652, %v2364, 0.0
        %2431 = vadd.xlane.f32.xlu0 %v2430
        %v2432 = vpop.xlane.xlu0 %2431
        %v2433 = vsel %vm652, %v2365, 0.0
        %2434 = vadd.xlane.f32.xlu0 %v2433
        %v2435 = vpop.xlane.xlu0 %2434
        %v2436 = vsel %vm652, %v2366, 0.0
        %2437 = vadd.xlane.f32.xlu0 %v2436
        %v2438 = vpop.xlane.xlu0 %2437
        %v2439 = vsel %vm652, %v2367, 0.0
        %2440 = vadd.xlane.f32.xlu0 %v2439
        %v2441 = vpop.xlane.xlu0 %2440
        %v2442 = vsel %vm652, %v2368, 0.0
        %2443 = vadd.xlane.f32.xlu0 %v2442
        %v2444 = vpop.xlane.xlu0 %2443
        %v2445 = vsel %vm652, %v2369, 0.0
        %2446 = vadd.xlane.f32.xlu0 %v2445
        %v2447 = vpop.xlane.xlu0 %2446
        %v2448 = vsel %vm652, %v2370, 0.0
        %2449 = vadd.xlane.f32.xlu0 %v2448
        %v2450 = vpop.xlane.xlu0 %2449
        %v2451 = vsel %vm652, %v2371, 0.0
        %2452 = vadd.xlane.f32.xlu0 %v2451
        %v2453 = vpop.xlane.xlu0 %2452
        %v2454 = vsel %vm652, %v2372, 0.0
        %2455 = vadd.xlane.f32.xlu0 %v2454
        %v2456 = vpop.xlane.xlu0 %2455
        %v2457 = vsel %vm652, %v2373, 0.0
        %2458 = vadd.xlane.f32.xlu0 %v2457
        %v2459 = vpop.xlane.xlu0 %2458
        %v2460 = vsel %vm652, %v2374, 0.0
        %2461 = vadd.xlane.f32.xlu0 %v2460
        %v2462 = vpop.xlane.xlu0 %2461
        %v2463 = vsel %vm652, %v2375, 0.0
        %2464 = vadd.xlane.f32.xlu0 %v2463
        %v2465 = vpop.xlane.xlu0 %2464
        %v2466 = vsel %vm652, %v2376, 0.0
        %2467 = vadd.xlane.f32.xlu0 %v2466
        %v2468 = vpop.xlane.xlu0 %2467
        %v2469 = vsel %vm652, %v2377, 0.0
        %2470 = vadd.xlane.f32.xlu0 %v2469
        %v2471 = vpop.xlane.xlu0 %2470
        %v2472 = vsel %vm652, %v2378, 0.0
        %2473 = vadd.xlane.f32.xlu0 %v2472
        %v2474 = vpop.xlane.xlu0 %2473
        %v2475 = vld [vmem:[#allocation5 + $0x60] sm:$0x1]
        %s2477 = vtos %v2475
        %v2478 = vstv %s2477
        %v2480 = vadd.f32 %v2381, %v2478
        %v2481 = vadd.f32 %v2384, %v2478
        %v2482 = vadd.f32 %v2387, %v2478
        %v2483 = vadd.f32 %v2390, %v2478
        %v2484 = vadd.f32 %v2393, %v2478
        %v2485 = vadd.f32 %v2396, %v2478
        %v2486 = vadd.f32 %v2399, %v2478
        %v2487 = vadd.f32 %v2402, %v2478
        %v2488 = vadd.f32 %v2405, %v2478
        %v2489 = vadd.f32 %v2408, %v2478
        %v2490 = vadd.f32 %v2411, %v2478
        %v2491 = vadd.f32 %v2414, %v2478
        %v2492 = vadd.f32 %v2417, %v2478
        %v2493 = vadd.f32 %v2420, %v2478
        %v2494 = vadd.f32 %v2423, %v2478
        %v2495 = vadd.f32 %v2426, %v2478
        %v2496 = vadd.f32 %v2429, %v2478
        %v2497 = vadd.f32 %v2432, %v2478
        %v2498 = vadd.f32 %v2435, %v2478
        %v2499 = vadd.f32 %v2438, %v2478
        %v2500 = vadd.f32 %v2441, %v2478
        %v2501 = vadd.f32 %v2444, %v2478
        %v2502 = vadd.f32 %v2447, %v2478
        %v2503 = vadd.f32 %v2450, %v2478
        %v2504 = vadd.f32 %v2453, %v2478
        %v2505 = vadd.f32 %v2456, %v2478
        %v2506 = vadd.f32 %v2459, %v2478
        %v2507 = vadd.f32 %v2462, %v2478
        %v2508 = vadd.f32 %v2465, %v2478
        %v2509 = vadd.f32 %v2468, %v2478
        %v2510 = vadd.f32 %v2471, %v2478
        %v2511 = vadd.f32 %v2474, %v2478
        %v2544 = vlaneseq
        %v2545 = vand.u32 %v2544, 127
        %v2546 = vlaneseq
        %v2547 = vshrl.u32 %v2546, 7
        %v2548 = vsub.s32 %v2545, %v2547
        %v2549 = vrot.slane %v2480, %v2548
        %v2550 = vlaneseq
        %v2551 = vshrl.u32 %v2550, 7
        %v2552 = vsub.s32 %v2545, %v2551
        %v2553 = vrot.slane %v2481, %v2552
        %v2554 = vlaneseq
        %v2555 = vshrl.u32 %v2554, 7
        %v2556 = vsub.s32 %v2545, %v2555
        %v2557 = vrot.slane %v2482, %v2556
        %v2558 = vlaneseq
        %v2559 = vshrl.u32 %v2558, 7
        %v2560 = vsub.s32 %v2545, %v2559
        %v2561 = vrot.slane %v2483, %v2560
        %v2562 = vlaneseq
        %v2563 = vshrl.u32 %v2562, 7
        %v2564 = vsub.s32 %v2545, %v2563
        %v2565 = vrot.slane %v2484, %v2564
        %v2566 = vlaneseq
        %v2567 = vshrl.u32 %v2566, 7
        %v2568 = vsub.s32 %v2545, %v2567
        %v2569 = vrot.slane %v2485, %v2568
        %v2570 = vlaneseq
        %v2571 = vshrl.u32 %v2570, 7
        %v2572 = vsub.s32 %v2545, %v2571
        %v2573 = vrot.slane %v2486, %v2572
        %v2574 = vlaneseq
        %v2575 = vshrl.u32 %v2574, 7
        %v2576 = vsub.s32 %v2545, %v2575
        %v2577 = vrot.slane %v2487, %v2576
        %v2578 = vlaneseq
        %v2579 = vshrl.u32 %v2578, 7
        %v2580 = vsub.s32 %v2545, %v2579
        %v2581 = vrot.slane %v2488, %v2580
        %v2582 = vlaneseq
        %v2583 = vshrl.u32 %v2582, 7
        %v2584 = vsub.s32 %v2545, %v2583
        %v2585 = vrot.slane %v2489, %v2584
        %v2586 = vlaneseq
        %v2587 = vshrl.u32 %v2586, 7
        %v2588 = vsub.s32 %v2545, %v2587
        %v2589 = vrot.slane %v2490, %v2588
        %v2590 = vlaneseq
        %v2591 = vshrl.u32 %v2590, 7
        %v2592 = vsub.s32 %v2545, %v2591
        %v2593 = vrot.slane %v2491, %v2592
        %v2594 = vlaneseq
        %v2595 = vshrl.u32 %v2594, 7
        %v2596 = vsub.s32 %v2545, %v2595
        %v2597 = vrot.slane %v2492, %v2596
        %v2598 = vlaneseq
        %v2599 = vshrl.u32 %v2598, 7
        %v2600 = vsub.s32 %v2545, %v2599
        %v2601 = vrot.slane %v2493, %v2600
        %v2602 = vlaneseq
        %v2603 = vshrl.u32 %v2602, 7
        %v2604 = vsub.s32 %v2545, %v2603
        %v2605 = vrot.slane %v2494, %v2604
        %v2606 = vlaneseq
        %v2607 = vshrl.u32 %v2606, 7
        %v2608 = vsub.s32 %v2545, %v2607
        %v2609 = vrot.slane %v2495, %v2608
        %v2610 = vlaneseq
        %v2611 = vshrl.u32 %v2610, 7
        %v2612 = vsub.s32 %v2545, %v2611
        %v2613 = vrot.slane %v2496, %v2612
        %v2614 = vlaneseq
        %v2615 = vshrl.u32 %v2614, 7
        %v2616 = vsub.s32 %v2545, %v2615
        %v2617 = vrot.slane %v2497, %v2616
        %v2618 = vlaneseq
        %v2619 = vshrl.u32 %v2618, 7
        %v2620 = vsub.s32 %v2545, %v2619
        %v2621 = vrot.slane %v2498, %v2620
        %v2622 = vlaneseq
        %v2623 = vshrl.u32 %v2622, 7
        %v2624 = vsub.s32 %v2545, %v2623
        %v2625 = vrot.slane %v2499, %v2624
        %v2626 = vlaneseq
        %v2627 = vshrl.u32 %v2626, 7
        %v2628 = vsub.s32 %v2545, %v2627
        %v2629 = vrot.slane %v2500, %v2628
        %v2630 = vlaneseq
        %v2631 = vshrl.u32 %v2630, 7
        %v2632 = vsub.s32 %v2545, %v2631
        %v2633 = vrot.slane %v2501, %v2632
        %v2634 = vlaneseq
        %v2635 = vshrl.u32 %v2634, 7
        %v2636 = vsub.s32 %v2545, %v2635
        %v2637 = vrot.slane %v2502, %v2636
        %v2638 = vlaneseq
        %v2639 = vshrl.u32 %v2638, 7
        %v2640 = vsub.s32 %v2545, %v2639
        %v2641 = vrot.slane %v2503, %v2640
        %v2642 = vlaneseq
        %v2643 = vshrl.u32 %v2642, 7
        %v2644 = vsub.s32 %v2545, %v2643
        %v2645 = vrot.slane %v2504, %v2644
        %v2646 = vlaneseq
        %v2647 = vshrl.u32 %v2646, 7
        %v2648 = vsub.s32 %v2545, %v2647
        %v2649 = vrot.slane %v2505, %v2648
        %v2650 = vlaneseq
        %v2651 = vshrl.u32 %v2650, 7
        %v2652 = vsub.s32 %v2545, %v2651
        %v2653 = vrot.slane %v2506, %v2652
        %v2654 = vlaneseq
        %v2655 = vshrl.u32 %v2654, 7
        %v2656 = vsub.s32 %v2545, %v2655
        %v2657 = vrot.slane %v2507, %v2656
        %v2658 = vlaneseq
        %v2659 = vshrl.u32 %v2658, 7
        %v2660 = vsub.s32 %v2545, %v2659
        %v2661 = vrot.slane %v2508, %v2660
        %v2662 = vlaneseq
        %v2663 = vshrl.u32 %v2662, 7
        %v2664 = vsub.s32 %v2545, %v2663
        %v2665 = vrot.slane %v2509, %v2664
        %v2666 = vlaneseq
        %v2667 = vshrl.u32 %v2666, 7
        %v2668 = vsub.s32 %v2545, %v2667
        %v2669 = vrot.slane %v2510, %v2668
        %v2670 = vlaneseq
        %v2671 = vshrl.u32 %v2670, 7
        %v2672 = vsub.s32 %v2545, %v2671
        %v2673 = vrot.slane %v2511, %v2672
        %vm2674 = vcmask 1041409
        %v2675 = vsel %vm2674, %v2553, %v2549
        %vm2676 = vcmask 1042434
        %v2677 = vsel %vm2676, %v2557, %v2675
        %vm2678 = vcmask 1043459
        %v2679 = vsel %vm2678, %v2561, %v2677
        %vm2680 = vcmask 1044484
        %v2681 = vsel %vm2680, %v2565, %v2679
        %vm2682 = vcmask 1045509
        %v2683 = vsel %vm2682, %v2569, %v2681
        %vm2684 = vcmask 1046534
        %v2685 = vsel %vm2684, %v2573, %v2683
        %vm2686 = vcmask 1047559
        %v2687 = vsel %vm2686, %v2577, %v2685
        %v2688 = vsel %vm2674, %v2585, %v2581
        %v2689 = vsel %vm2676, %v2589, %v2688
        %v2690 = vsel %vm2678, %v2593, %v2689
        %v2691 = vsel %vm2680, %v2597, %v2690
        %v2692 = vsel %vm2682, %v2601, %v2691
        %v2693 = vsel %vm2684, %v2605, %v2692
        %v2694 = vsel %vm2686, %v2609, %v2693
        %v2695 = vsel %vm2674, %v2617, %v2613
        %v2696 = vsel %vm2676, %v2621, %v2695
        %v2697 = vsel %vm2678, %v2625, %v2696
        %v2698 = vsel %vm2680, %v2629, %v2697
        %v2699 = vsel %vm2682, %v2633, %v2698
        %v2700 = vsel %vm2684, %v2637, %v2699
        %v2701 = vsel %vm2686, %v2641, %v2700
        %v2702 = vsel %vm2674, %v2649, %v2645
        %v2703 = vsel %vm2676, %v2653, %v2702
        %v2704 = vsel %vm2678, %v2657, %v2703
        %v2705 = vsel %vm2680, %v2661, %v2704
        %v2706 = vsel %vm2682, %v2665, %v2705
        %v2707 = vsel %vm2684, %v2669, %v2706
        %v2708 = vsel %vm2686, %v2673, %v2707
        %v2713 = vsel %vm652, %v2687, -inf
        %2714 = vmax.xlane.f32.xlu0 %v2713
        %v2715 = vpop.xlane.xlu0 %2714
        %v2716 = vsel %vm652, %v2694, -inf
        %2717 = vmax.xlane.f32.xlu0 %v2716
        %v2718 = vpop.xlane.xlu0 %2717
        %v2719 = vsel %vm652, %v2701, -inf
        %2720 = vmax.xlane.f32.xlu0 %v2719
        %v2721 = vpop.xlane.xlu0 %2720
        %v2722 = vsel %vm652, %v2708, -inf
        %2723 = vmax.xlane.f32.xlu0 %v2722
        %v2724 = vpop.xlane.xlu0 %2723
        %v2729 = vlaneseq
        %v2730 = vshrl.u32 %v2729, 7
        %v2731 = vsub.s32 0, %v2730
        %v2732 = vrot.slane %v2715, %v2731
        %v2733 = vlaneseq
        %v2734 = vshrl.u32 %v2733, 7
        %v2735 = vsub.s32 1, %v2734
        %v2736 = vrot.slane %v2715, %v2735
        %v2737 = vlaneseq
        %v2738 = vshrl.u32 %v2737, 7
        %v2739 = vsub.s32 2, %v2738
        %v2740 = vrot.slane %v2715, %v2739
        %v2741 = vlaneseq
        %v2742 = vshrl.u32 %v2741, 7
        %v2743 = vsub.s32 3, %v2742
        %v2744 = vrot.slane %v2715, %v2743
        %v2745 = vlaneseq
        %v2746 = vshrl.u32 %v2745, 7
        %v2747 = vsub.s32 4, %v2746
        %v2748 = vrot.slane %v2715, %v2747
        %v2749 = vlaneseq
        %v2750 = vshrl.u32 %v2749, 7
        %v2751 = vsub.s32 5, %v2750
        %v2752 = vrot.slane %v2715, %v2751
        %v2753 = vlaneseq
        %v2754 = vshrl.u32 %v2753, 7
        %v2755 = vsub.s32 6, %v2754
        %v2756 = vrot.slane %v2715, %v2755
        %v2757 = vlaneseq
        %v2758 = vshrl.u32 %v2757, 7
        %v2759 = vsub.s32 7, %v2758
        %v2760 = vrot.slane %v2715, %v2759
        %v2761 = vlaneseq
        %v2762 = vshrl.u32 %v2761, 7
        %v2763 = vsub.s32 0, %v2762
        %v2764 = vrot.slane %v2718, %v2763
        %v2765 = vlaneseq
        %v2766 = vshrl.u32 %v2765, 7
        %v2767 = vsub.s32 1, %v2766
        %v2768 = vrot.slane %v2718, %v2767
        %v2769 = vlaneseq
        %v2770 = vshrl.u32 %v2769, 7
        %v2771 = vsub.s32 2, %v2770
        %v2772 = vrot.slane %v2718, %v2771
        %v2773 = vlaneseq
        %v2774 = vshrl.u32 %v2773, 7
        %v2775 = vsub.s32 3, %v2774
        %v2776 = vrot.slane %v2718, %v2775
        %v2777 = vlaneseq
        %v2778 = vshrl.u32 %v2777, 7
        %v2779 = vsub.s32 4, %v2778
        %v2780 = vrot.slane %v2718, %v2779
        %v2781 = vlaneseq
        %v2782 = vshrl.u32 %v2781, 7
        %v2783 = vsub.s32 5, %v2782
        %v2784 = vrot.slane %v2718, %v2783
        %v2785 = vlaneseq
        %v2786 = vshrl.u32 %v2785, 7
        %v2787 = vsub.s32 6, %v2786
        %v2788 = vrot.slane %v2718, %v2787
        %v2789 = vlaneseq
        %v2790 = vshrl.u32 %v2789, 7
        %v2791 = vsub.s32 7, %v2790
        %v2792 = vrot.slane %v2718, %v2791
        %v2793 = vlaneseq
        %v2794 = vshrl.u32 %v2793, 7
        %v2795 = vsub.s32 0, %v2794
        %v2796 = vrot.slane %v2721, %v2795
        %v2797 = vlaneseq
        %v2798 = vshrl.u32 %v2797, 7
        %v2799 = vsub.s32 1, %v2798
        %v2800 = vrot.slane %v2721, %v2799
        %v2801 = vlaneseq
        %v2802 = vshrl.u32 %v2801, 7
        %v2803 = vsub.s32 2, %v2802
        %v2804 = vrot.slane %v2721, %v2803
        %v2805 = vlaneseq
        %v2806 = vshrl.u32 %v2805, 7
        %v2807 = vsub.s32 3, %v2806
        %v2808 = vrot.slane %v2721, %v2807
        %v2809 = vlaneseq
        %v2810 = vshrl.u32 %v2809, 7
        %v2811 = vsub.s32 4, %v2810
        %v2812 = vrot.slane %v2721, %v2811
        %v2813 = vlaneseq
        %v2814 = vshrl.u32 %v2813, 7
        %v2815 = vsub.s32 5, %v2814
        %v2816 = vrot.slane %v2721, %v2815
        %v2817 = vlaneseq
        %v2818 = vshrl.u32 %v2817, 7
        %v2819 = vsub.s32 6, %v2818
        %v2820 = vrot.slane %v2721, %v2819
        %v2821 = vlaneseq
        %v2822 = vshrl.u32 %v2821, 7
        %v2823 = vsub.s32 7, %v2822
        %v2824 = vrot.slane %v2721, %v2823
        %v2825 = vlaneseq
        %v2826 = vshrl.u32 %v2825, 7
        %v2827 = vsub.s32 0, %v2826
        %v2828 = vrot.slane %v2724, %v2827
        %v2829 = vlaneseq
        %v2830 = vshrl.u32 %v2829, 7
        %v2831 = vsub.s32 1, %v2830
        %v2832 = vrot.slane %v2724, %v2831
        %v2833 = vlaneseq
        %v2834 = vshrl.u32 %v2833, 7
        %v2835 = vsub.s32 2, %v2834
        %v2836 = vrot.slane %v2724, %v2835
        %v2837 = vlaneseq
        %v2838 = vshrl.u32 %v2837, 7
        %v2839 = vsub.s32 3, %v2838
        %v2840 = vrot.slane %v2724, %v2839
        %v2841 = vlaneseq
        %v2842 = vshrl.u32 %v2841, 7
        %v2843 = vsub.s32 4, %v2842
        %v2844 = vrot.slane %v2724, %v2843
        %v2845 = vlaneseq
        %v2846 = vshrl.u32 %v2845, 7
        %v2847 = vsub.s32 5, %v2846
        %v2848 = vrot.slane %v2724, %v2847
        %v2849 = vlaneseq
        %v2850 = vshrl.u32 %v2849, 7
        %v2851 = vsub.s32 6, %v2850
        %v2852 = vrot.slane %v2724, %v2851
        %v2853 = vlaneseq
        %v2854 = vshrl.u32 %v2853, 7
        %v2855 = vsub.s32 7, %v2854
        %v2856 = vrot.slane %v2724, %v2855
        %v2889 = vsub.f32 %v2480, %v2732
        %v2890 = vsub.f32 %v2481, %v2736
        %v2891 = vsub.f32 %v2482, %v2740
        %v2892 = vsub.f32 %v2483, %v2744
        %v2893 = vsub.f32 %v2484, %v2748
        %v2894 = vsub.f32 %v2485, %v2752
        %v2895 = vsub.f32 %v2486, %v2756
        %v2896 = vsub.f32 %v2487, %v2760
        %v2897 = vsub.f32 %v2488, %v2764
        %v2898 = vsub.f32 %v2489, %v2768
        %v2899 = vsub.f32 %v2490, %v2772
        %v2900 = vsub.f32 %v2491, %v2776
        %v2901 = vsub.f32 %v2492, %v2780
        %v2902 = vsub.f32 %v2493, %v2784
        %v2903 = vsub.f32 %v2494, %v2788
        %v2904 = vsub.f32 %v2495, %v2792
        %v2905 = vsub.f32 %v2496, %v2796
        %v2906 = vsub.f32 %v2497, %v2800
        %v2907 = vsub.f32 %v2498, %v2804
        %v2908 = vsub.f32 %v2499, %v2808
        %v2909 = vsub.f32 %v2500, %v2812
        %v2910 = vsub.f32 %v2501, %v2816
        %v2911 = vsub.f32 %v2502, %v2820
        %v2912 = vsub.f32 %v2503, %v2824
        %v2913 = vsub.f32 %v2504, %v2828
        %v2914 = vsub.f32 %v2505, %v2832
        %v2915 = vsub.f32 %v2506, %v2836
        %v2916 = vsub.f32 %v2507, %v2840
        %v2917 = vsub.f32 %v2508, %v2844
        %v2918 = vsub.f32 %v2509, %v2848
        %v2919 = vsub.f32 %v2510, %v2852
        %v2920 = vsub.f32 %v2511, %v2856
        %v2921 = vmul.f32 %v2889, 1.442695
        %v2922 = vpow.pop %v2921
        %v2923 = vmul.f32 %v2890, 1.442695
        %v2924 = vpow.pop %v2923
        %v2925 = vmul.f32 %v2891, 1.442695
        %v2926 = vpow.pop %v2925
        %v2927 = vmul.f32 %v2892, 1.442695
        %v2928 = vpow.pop %v2927
        %v2929 = vmul.f32 %v2893, 1.442695
        %v2930 = vpow.pop %v2929
        %v2931 = vmul.f32 %v2894, 1.442695
        %v2932 = vpow.pop %v2931
        %v2933 = vmul.f32 %v2895, 1.442695
        %v2934 = vpow.pop %v2933
        %v2935 = vmul.f32 %v2896, 1.442695
        %v2936 = vpow.pop %v2935
        %v2937 = vmul.f32 %v2897, 1.442695
        %v2938 = vpow.pop %v2937
        %v2939 = vmul.f32 %v2898, 1.442695
        %v2940 = vpow.pop %v2939
        %v2941 = vmul.f32 %v2899, 1.442695
        %v2942 = vpow.pop %v2941
        %v2943 = vmul.f32 %v2900, 1.442695
        %v2944 = vpow.pop %v2943
        %v2945 = vmul.f32 %v2901, 1.442695
        %v2946 = vpow.pop %v2945
        %v2947 = vmul.f32 %v2902, 1.442695
        %v2948 = vpow.pop %v2947
        %v2949 = vmul.f32 %v2903, 1.442695
        %v2950 = vpow.pop %v2949
        %v2951 = vmul.f32 %v2904, 1.442695
        %v2952 = vpow.pop %v2951
        %v2953 = vmul.f32 %v2905, 1.442695
        %v2954 = vpow.pop %v2953
        %v2955 = vmul.f32 %v2906, 1.442695
        %v2956 = vpow.pop %v2955
        %v2957 = vmul.f32 %v2907, 1.442695
        %v2958 = vpow.pop %v2957
        %v2959 = vmul.f32 %v2908, 1.442695
        %v2960 = vpow.pop %v2959
        %v2961 = vmul.f32 %v2909, 1.442695
        %v2962 = vpow.pop %v2961
        %v2963 = vmul.f32 %v2910, 1.442695
        %v2964 = vpow.pop %v2963
        %v2965 = vmul.f32 %v2911, 1.442695
        %v2966 = vpow.pop %v2965
        %v2967 = vmul.f32 %v2912, 1.442695
        %v2968 = vpow.pop %v2967
        %v2969 = vmul.f32 %v2913, 1.442695
        %v2970 = vpow.pop %v2969
        %v2971 = vmul.f32 %v2914, 1.442695
        %v2972 = vpow.pop %v2971
        %v2973 = vmul.f32 %v2915, 1.442695
        %v2974 = vpow.pop %v2973
        %v2975 = vmul.f32 %v2916, 1.442695
        %v2976 = vpow.pop %v2975
        %v2977 = vmul.f32 %v2917, 1.442695
        %v2978 = vpow.pop %v2977
        %v2979 = vmul.f32 %v2918, 1.442695
        %v2980 = vpow.pop %v2979
        %v2981 = vmul.f32 %v2919, 1.442695
        %v2982 = vpow.pop %v2981
        %v2983 = vmul.f32 %v2920, 1.442695
        %v2984 = vpow.pop %v2983
        %3017 = vset.pattern.permute.xlu0 0
        %3018 = vperm.xlu0 %3017, %v2922
        %v3019 = vpop.permute.xlu0 %3018
        %3020 = vset.pattern.permute.xlu0 0
        %3021 = vperm.xlu0 %3020, %v2924
        %v3022 = vpop.permute.xlu0 %3021
        %3023 = vset.pattern.permute.xlu0 0
        %3024 = vperm.xlu0 %3023, %v2926
        %v3025 = vpop.permute.xlu0 %3024
        %3026 = vset.pattern.permute.xlu0 0
        %3027 = vperm.xlu0 %3026, %v2928
        %v3028 = vpop.permute.xlu0 %3027
        %3029 = vset.pattern.permute.xlu0 0
        %3030 = vperm.xlu0 %3029, %v2930
        %v3031 = vpop.permute.xlu0 %3030
        %3032 = vset.pattern.permute.xlu0 0
        %3033 = vperm.xlu0 %3032, %v2932
        %v3034 = vpop.permute.xlu0 %3033
        %3035 = vset.pattern.permute.xlu0 0
        %3036 = vperm.xlu0 %3035, %v2934
        %v3037 = vpop.permute.xlu0 %3036
        %3038 = vset.pattern.permute.xlu0 0
        %3039 = vperm.xlu0 %3038, %v2936
        %v3040 = vpop.permute.xlu0 %3039
        %3041 = vset.pattern.permute.xlu0 0
        %3042 = vperm.xlu0 %3041, %v2938
        %v3043 = vpop.permute.xlu0 %3042
        %3044 = vset.pattern.permute.xlu0 0
        %3045 = vperm.xlu0 %3044, %v2940
        %v3046 = vpop.permute.xlu0 %3045
        %3047 = vset.pattern.permute.xlu0 0
        %3048 = vperm.xlu0 %3047, %v2942
        %v3049 = vpop.permute.xlu0 %3048
        %3050 = vset.pattern.permute.xlu0 0
        %3051 = vperm.xlu0 %3050, %v2944
        %v3052 = vpop.permute.xlu0 %3051
        %3053 = vset.pattern.permute.xlu0 0
        %3054 = vperm.xlu0 %3053, %v2946
        %v3055 = vpop.permute.xlu0 %3054
        %3056 = vset.pattern.permute.xlu0 0
        %3057 = vperm.xlu0 %3056, %v2948
        %v3058 = vpop.permute.xlu0 %3057
        %3059 = vset.pattern.permute.xlu0 0
        %3060 = vperm.xlu0 %3059, %v2950
        %v3061 = vpop.permute.xlu0 %3060
        %3062 = vset.pattern.permute.xlu0 0
        %3063 = vperm.xlu0 %3062, %v2952
        %v3064 = vpop.permute.xlu0 %3063
        %3065 = vset.pattern.permute.xlu0 0
        %3066 = vperm.xlu0 %3065, %v2954
        %v3067 = vpop.permute.xlu0 %3066
        %3068 = vset.pattern.permute.xlu0 0
        %3069 = vperm.xlu0 %3068, %v2956
        %v3070 = vpop.permute.xlu0 %3069
        %3071 = vset.pattern.permute.xlu0 0
        %3072 = vperm.xlu0 %3071, %v2958
        %v3073 = vpop.permute.xlu0 %3072
        %3074 = vset.pattern.permute.xlu0 0
        %3075 = vperm.xlu0 %3074, %v2960
        %v3076 = vpop.permute.xlu0 %3075
        %3077 = vset.pattern.permute.xlu0 0
        %3078 = vperm.xlu0 %3077, %v2962
        %v3079 = vpop.permute.xlu0 %3078
        %3080 = vset.pattern.permute.xlu0 0
        %3081 = vperm.xlu0 %3080, %v2964
        %v3082 = vpop.permute.xlu0 %3081
        %3083 = vset.pattern.permute.xlu0 0
        %3084 = vperm.xlu0 %3083, %v2966
        %v3085 = vpop.permute.xlu0 %3084
        %3086 = vset.pattern.permute.xlu0 0
        %3087 = vperm.xlu0 %3086, %v2968
        %v3088 = vpop.permute.xlu0 %3087
        %3089 = vset.pattern.permute.xlu0 0
        %3090 = vperm.xlu0 %3089, %v2970
        %v3091 = vpop.permute.xlu0 %3090
        %3092 = vset.pattern.permute.xlu0 0
        %3093 = vperm.xlu0 %3092, %v2972
        %v3094 = vpop.permute.xlu0 %3093
        %3095 = vset.pattern.permute.xlu0 0
        %3096 = vperm.xlu0 %3095, %v2974
        %v3097 = vpop.permute.xlu0 %3096
        %3098 = vset.pattern.permute.xlu0 0
        %3099 = vperm.xlu0 %3098, %v2976
        %v3100 = vpop.permute.xlu0 %3099
        %3101 = vset.pattern.permute.xlu0 0
        %3102 = vperm.xlu0 %3101, %v2978
        %v3103 = vpop.permute.xlu0 %3102
        %3104 = vset.pattern.permute.xlu0 0
        %3105 = vperm.xlu0 %3104, %v2980
        %v3106 = vpop.permute.xlu0 %3105
        %3107 = vset.pattern.permute.xlu0 0
        %3108 = vperm.xlu0 %3107, %v2982
        %v3109 = vpop.permute.xlu0 %3108
        %3110 = vset.pattern.permute.xlu0 0
        %3111 = vperm.xlu0 %3110, %v2984
        %v3112 = vpop.permute.xlu0 %3111
        %v3113 = vlaneseq
        %v3114 = vshrl.u32 %v3113, 7
        %v3115 = vsub.s32 %v2545, %v3114
        %v3116 = vrot.slane %v3019, %v3115
        %v3117 = vlaneseq
        %v3118 = vshrl.u32 %v3117, 7
        %v3119 = vsub.s32 %v2545, %v3118
        %v3120 = vrot.slane %v3022, %v3119
        %v3121 = vlaneseq
        %v3122 = vshrl.u32 %v3121, 7
        %v3123 = vsub.s32 %v2545, %v3122
        %v3124 = vrot.slane %v3025, %v3123
        %v3125 = vlaneseq
        %v3126 = vshrl.u32 %v3125, 7
        %v3127 = vsub.s32 %v2545, %v3126
        %v3128 = vrot.slane %v3028, %v3127
        %v3129 = vlaneseq
        %v3130 = vshrl.u32 %v3129, 7
        %v3131 = vsub.s32 %v2545, %v3130
        %v3132 = vrot.slane %v3031, %v3131
        %v3133 = vlaneseq
        %v3134 = vshrl.u32 %v3133, 7
        %v3135 = vsub.s32 %v2545, %v3134
        %v3136 = vrot.slane %v3034, %v3135
        %v3137 = vlaneseq
        %v3138 = vshrl.u32 %v3137, 7
        %v3139 = vsub.s32 %v2545, %v3138
        %v3140 = vrot.slane %v3037, %v3139
        %v3141 = vlaneseq
        %v3142 = vshrl.u32 %v3141, 7
        %v3143 = vsub.s32 %v2545, %v3142
        %v3144 = vrot.slane %v3040, %v3143
        %v3145 = vlaneseq
        %v3146 = vshrl.u32 %v3145, 7
        %v3147 = vsub.s32 %v2545, %v3146
        %v3148 = vrot.slane %v3043, %v3147
        %v3149 = vlaneseq
        %v3150 = vshrl.u32 %v3149, 7
        %v3151 = vsub.s32 %v2545, %v3150
        %v3152 = vrot.slane %v3046, %v3151
        %v3153 = vlaneseq
        %v3154 = vshrl.u32 %v3153, 7
        %v3155 = vsub.s32 %v2545, %v3154
        %v3156 = vrot.slane %v3049, %v3155
        %v3157 = vlaneseq
        %v3158 = vshrl.u32 %v3157, 7
        %v3159 = vsub.s32 %v2545, %v3158
        %v3160 = vrot.slane %v3052, %v3159
        %v3161 = vlaneseq
        %v3162 = vshrl.u32 %v3161, 7
        %v3163 = vsub.s32 %v2545, %v3162
        %v3164 = vrot.slane %v3055, %v3163
        %v3165 = vlaneseq
        %v3166 = vshrl.u32 %v3165, 7
        %v3167 = vsub.s32 %v2545, %v3166
        %v3168 = vrot.slane %v3058, %v3167
        %v3169 = vlaneseq
        %v3170 = vshrl.u32 %v3169, 7
        %v3171 = vsub.s32 %v2545, %v3170
        %v3172 = vrot.slane %v3061, %v3171
        %v3173 = vlaneseq
        %v3174 = vshrl.u32 %v3173, 7
        %v3175 = vsub.s32 %v2545, %v3174
        %v3176 = vrot.slane %v3064, %v3175
        %v3177 = vlaneseq
        %v3178 = vshrl.u32 %v3177, 7
        %v3179 = vsub.s32 %v2545, %v3178
        %v3180 = vrot.slane %v3067, %v3179
        %v3181 = vlaneseq
        %v3182 = vshrl.u32 %v3181, 7
        %v3183 = vsub.s32 %v2545, %v3182
        %v3184 = vrot.slane %v3070, %v3183
        %v3185 = vlaneseq
        %v3186 = vshrl.u32 %v3185, 7
        %v3187 = vsub.s32 %v2545, %v3186
        %v3188 = vrot.slane %v3073, %v3187
        %v3189 = vlaneseq
        %v3190 = vshrl.u32 %v3189, 7
        %v3191 = vsub.s32 %v2545, %v3190
        %v3192 = vrot.slane %v3076, %v3191
        %v3193 = vlaneseq
        %v3194 = vshrl.u32 %v3193, 7
        %v3195 = vsub.s32 %v2545, %v3194
        %v3196 = vrot.slane %v3079, %v3195
        %v3197 = vlaneseq
        %v3198 = vshrl.u32 %v3197, 7
        %v3199 = vsub.s32 %v2545, %v3198
        %v3200 = vrot.slane %v3082, %v3199
        %v3201 = vlaneseq
        %v3202 = vshrl.u32 %v3201, 7
        %v3203 = vsub.s32 %v2545, %v3202
        %v3204 = vrot.slane %v3085, %v3203
        %v3205 = vlaneseq
        %v3206 = vshrl.u32 %v3205, 7
        %v3207 = vsub.s32 %v2545, %v3206
        %v3208 = vrot.slane %v3088, %v3207
        %v3209 = vlaneseq
        %v3210 = vshrl.u32 %v3209, 7
        %v3211 = vsub.s32 %v2545, %v3210
        %v3212 = vrot.slane %v3091, %v3211
        %v3213 = vlaneseq
        %v3214 = vshrl.u32 %v3213, 7
        %v3215 = vsub.s32 %v2545, %v3214
        %v3216 = vrot.slane %v3094, %v3215
        %v3217 = vlaneseq
        %v3218 = vshrl.u32 %v3217, 7
        %v3219 = vsub.s32 %v2545, %v3218
        %v3220 = vrot.slane %v3097, %v3219
        %v3221 = vlaneseq
        %v3222 = vshrl.u32 %v3221, 7
        %v3223 = vsub.s32 %v2545, %v3222
        %v3224 = vrot.slane %v3100, %v3223
        %v3225 = vlaneseq
        %v3226 = vshrl.u32 %v3225, 7
        %v3227 = vsub.s32 %v2545, %v3226
        %v3228 = vrot.slane %v3103, %v3227
        %v3229 = vlaneseq
        %v3230 = vshrl.u32 %v3229, 7
        %v3231 = vsub.s32 %v2545, %v3230
        %v3232 = vrot.slane %v3106, %v3231
        %v3233 = vlaneseq
        %v3234 = vshrl.u32 %v3233, 7
        %v3235 = vsub.s32 %v2545, %v3234
        %v3236 = vrot.slane %v3109, %v3235
        %v3237 = vlaneseq
        %v3238 = vshrl.u32 %v3237, 7
        %v3239 = vsub.s32 %v2545, %v3238
        %v3240 = vrot.slane %v3112, %v3239
        %v3241 = vsel %vm2674, %v3120, %v3116
        %v3242 = vsel %vm2676, %v3124, %v3241
        %v3243 = vsel %vm2678, %v3128, %v3242
        %v3244 = vsel %vm2680, %v3132, %v3243
        %v3245 = vsel %vm2682, %v3136, %v3244
        %v3246 = vsel %vm2684, %v3140, %v3245
        %v3247 = vsel %vm2686, %v3144, %v3246
        %v3248 = vsel %vm2674, %v3152, %v3148
        %v3249 = vsel %vm2676, %v3156, %v3248
        %v3250 = vsel %vm2678, %v3160, %v3249
        %v3251 = vsel %vm2680, %v3164, %v3250
        %v3252 = vsel %vm2682, %v3168, %v3251
        %v3253 = vsel %vm2684, %v3172, %v3252
        %v3254 = vsel %vm2686, %v3176, %v3253
        %v3255 = vsel %vm2674, %v3184, %v3180
        %v3256 = vsel %vm2676, %v3188, %v3255
        %v3257 = vsel %vm2678, %v3192, %v3256
        %v3258 = vsel %vm2680, %v3196, %v3257
        %v3259 = vsel %vm2682, %v3200, %v3258
        %v3260 = vsel %vm2684, %v3204, %v3259
        %v3261 = vsel %vm2686, %v3208, %v3260
        %v3262 = vsel %vm2674, %v3216, %v3212
        %v3263 = vsel %vm2676, %v3220, %v3262
        %v3264 = vsel %vm2678, %v3224, %v3263
        %v3265 = vsel %vm2680, %v3228, %v3264
        %v3266 = vsel %vm2682, %v3232, %v3265
        %v3267 = vsel %vm2684, %v3236, %v3266
        %v3268 = vsel %vm2686, %v3240, %v3267
        %v3273 = vsel %vm652, %v3247, 0.0
        %3274 = vadd.xlane.f32.xlu0 %v3273
        %v3275 = vpop.xlane.xlu0 %3274
        %v3276 = vsel %vm652, %v3254, 0.0
        %3277 = vadd.xlane.f32.xlu0 %v3276
        %v3278 = vpop.xlane.xlu0 %3277
        %v3279 = vsel %vm652, %v3261, 0.0
        %3280 = vadd.xlane.f32.xlu0 %v3279
        %v3281 = vpop.xlane.xlu0 %3280
        %v3282 = vsel %vm652, %v3268, 0.0
        %3283 = vadd.xlane.f32.xlu0 %v3282
        %v3284 = vpop.xlane.xlu0 %3283
        %v3285 = vrcp.pop %v3275
        %v3286 = vrcp.pop %v3278
        %v3287 = vrcp.pop %v3281
        %v3288 = vrcp.pop %v3284
        %v3293 = vlaneseq
        %v3294 = vshrl.u32 %v3293, 7
        %v3295 = vsub.s32 0, %v3294
        %v3296 = vrot.slane %v3285, %v3295
        %v3297 = vlaneseq
        %v3298 = vshrl.u32 %v3297, 7
        %v3299 = vsub.s32 1, %v3298
        %v3300 = vrot.slane %v3285, %v3299
        %v3301 = vlaneseq
        %v3302 = vshrl.u32 %v3301, 7
        %v3303 = vsub.s32 2, %v3302
        %v3304 = vrot.slane %v3285, %v3303
        %v3305 = vlaneseq
        %v3306 = vshrl.u32 %v3305, 7
        %v3307 = vsub.s32 3, %v3306
        %v3308 = vrot.slane %v3285, %v3307
        %v3309 = vlaneseq
        %v3310 = vshrl.u32 %v3309, 7
        %v3311 = vsub.s32 4, %v3310
        %v3312 = vrot.slane %v3285, %v3311
        %v3313 = vlaneseq
        %v3314 = vshrl.u32 %v3313, 7
        %v3315 = vsub.s32 5, %v3314
        %v3316 = vrot.slane %v3285, %v3315
        %v3317 = vlaneseq
        %v3318 = vshrl.u32 %v3317, 7
        %v3319 = vsub.s32 6, %v3318
        %v3320 = vrot.slane %v3285, %v3319
        %v3321 = vlaneseq
        %v3322 = vshrl.u32 %v3321, 7
        %v3323 = vsub.s32 7, %v3322
        %v3324 = vrot.slane %v3285, %v3323
        %v3325 = vlaneseq
        %v3326 = vshrl.u32 %v3325, 7
        %v3327 = vsub.s32 0, %v3326
        %v3328 = vrot.slane %v3286, %v3327
        %v3329 = vlaneseq
        %v3330 = vshrl.u32 %v3329, 7
        %v3331 = vsub.s32 1, %v3330
        %v3332 = vrot.slane %v3286, %v3331
        %v3333 = vlaneseq
        %v3334 = vshrl.u32 %v3333, 7
        %v3335 = vsub.s32 2, %v3334
        %v3336 = vrot.slane %v3286, %v3335
        %v3337 = vlaneseq
        %v3338 = vshrl.u32 %v3337, 7
        %v3339 = vsub.s32 3, %v3338
        %v3340 = vrot.slane %v3286, %v3339
        %v3341 = vlaneseq
        %v3342 = vshrl.u32 %v3341, 7
        %v3343 = vsub.s32 4, %v3342
        %v3344 = vrot.slane %v3286, %v3343
        %v3345 = vlaneseq
        %v3346 = vshrl.u32 %v3345, 7
        %v3347 = vsub.s32 5, %v3346
        %v3348 = vrot.slane %v3286, %v3347
        %v3349 = vlaneseq
        %v3350 = vshrl.u32 %v3349, 7
        %v3351 = vsub.s32 6, %v3350
        %v3352 = vrot.slane %v3286, %v3351
        %v3353 = vlaneseq
        %v3354 = vshrl.u32 %v3353, 7
        %v3355 = vsub.s32 7, %v3354
        %v3356 = vrot.slane %v3286, %v3355
        %v3357 = vlaneseq
        %v3358 = vshrl.u32 %v3357, 7
        %v3359 = vsub.s32 0, %v3358
        %v3360 = vrot.slane %v3287, %v3359
        %v3361 = vlaneseq
        %v3362 = vshrl.u32 %v3361, 7
        %v3363 = vsub.s32 1, %v3362
        %v3364 = vrot.slane %v3287, %v3363
        %v3365 = vlaneseq
        %v3366 = vshrl.u32 %v3365, 7
        %v3367 = vsub.s32 2, %v3366
        %v3368 = vrot.slane %v3287, %v3367
        %v3369 = vlaneseq
        %v3370 = vshrl.u32 %v3369, 7
        %v3371 = vsub.s32 3, %v3370
        %v3372 = vrot.slane %v3287, %v3371
        %v3373 = vlaneseq
        %v3374 = vshrl.u32 %v3373, 7
        %v3375 = vsub.s32 4, %v3374
        %v3376 = vrot.slane %v3287, %v3375
        %v3377 = vlaneseq
        %v3378 = vshrl.u32 %v3377, 7
        %v3379 = vsub.s32 5, %v3378
        %v3380 = vrot.slane %v3287, %v3379
        %v3381 = vlaneseq
        %v3382 = vshrl.u32 %v3381, 7
        %v3383 = vsub.s32 6, %v3382
        %v3384 = vrot.slane %v3287, %v3383
        %v3385 = vlaneseq
        %v3386 = vshrl.u32 %v3385, 7
        %v3387 = vsub.s32 7, %v3386
        %v3388 = vrot.slane %v3287, %v3387
        %v3389 = vlaneseq
        %v3390 = vshrl.u32 %v3389, 7
        %v3391 = vsub.s32 0, %v3390
        %v3392 = vrot.slane %v3288, %v3391
        %v3393 = vlaneseq
        %v3394 = vshrl.u32 %v3393, 7
        %v3395 = vsub.s32 1, %v3394
        %v3396 = vrot.slane %v3288, %v3395
        %v3397 = vlaneseq
        %v3398 = vshrl.u32 %v3397, 7
        %v3399 = vsub.s32 2, %v3398
        %v3400 = vrot.slane %v3288, %v3399
        %v3401 = vlaneseq
        %v3402 = vshrl.u32 %v3401, 7
        %v3403 = vsub.s32 3, %v3402
        %v3404 = vrot.slane %v3288, %v3403
        %v3405 = vlaneseq
        %v3406 = vshrl.u32 %v3405, 7
        %v3407 = vsub.s32 4, %v3406
        %v3408 = vrot.slane %v3288, %v3407
        %v3409 = vlaneseq
        %v3410 = vshrl.u32 %v3409, 7
        %v3411 = vsub.s32 5, %v3410
        %v3412 = vrot.slane %v3288, %v3411
        %v3413 = vlaneseq
        %v3414 = vshrl.u32 %v3413, 7
        %v3415 = vsub.s32 6, %v3414
        %v3416 = vrot.slane %v3288, %v3415
        %v3417 = vlaneseq
        %v3418 = vshrl.u32 %v3417, 7
        %v3419 = vsub.s32 7, %v3418
        %v3420 = vrot.slane %v3288, %v3419
        %v3453 = vmul.f32 %v2922, %v3296
        %v3454 = vmul.f32 %v2924, %v3300
        %v3455 = vmul.f32 %v2926, %v3304
        %v3456 = vmul.f32 %v2928, %v3308
        %v3457 = vmul.f32 %v2930, %v3312
        %v3458 = vmul.f32 %v2932, %v3316
        %v3459 = vmul.f32 %v2934, %v3320
        %v3460 = vmul.f32 %v2936, %v3324
        %v3461 = vmul.f32 %v2938, %v3328
        %v3462 = vmul.f32 %v2940, %v3332
        %v3463 = vmul.f32 %v2942, %v3336
        %v3464 = vmul.f32 %v2944, %v3340
        %v3465 = vmul.f32 %v2946, %v3344
        %v3466 = vmul.f32 %v2948, %v3348
        %v3467 = vmul.f32 %v2950, %v3352
        %v3468 = vmul.f32 %v2952, %v3356
        %v3469 = vmul.f32 %v2954, %v3360
        %v3470 = vmul.f32 %v2956, %v3364
        %v3471 = vmul.f32 %v2958, %v3368
        %v3472 = vmul.f32 %v2960, %v3372
        %v3473 = vmul.f32 %v2962, %v3376
        %v3474 = vmul.f32 %v2964, %v3380
        %v3475 = vmul.f32 %v2966, %v3384
        %v3476 = vmul.f32 %v2968, %v3388
        %v3477 = vmul.f32 %v2970, %v3392
        %v3478 = vmul.f32 %v2972, %v3396
        %v3479 = vmul.f32 %v2974, %v3400
        %v3480 = vmul.f32 %v2976, %v3404
        %v3481 = vmul.f32 %v2978, %v3408
        %v3482 = vmul.f32 %v2980, %v3412
        %v3483 = vmul.f32 %v2982, %v3416
        %v3484 = vmul.f32 %v2984, %v3420
        %3517 = vset.pattern.permute.xlu0 0
        %3518 = vperm.xlu0 %3517, %v3453
        %v3519 = vpop.permute.xlu0 %3518
        %3520 = vset.pattern.permute.xlu0 0
        %3521 = vperm.xlu0 %3520, %v3454
        %v3522 = vpop.permute.xlu0 %3521
        %3523 = vset.pattern.permute.xlu0 0
        %3524 = vperm.xlu0 %3523, %v3455
        %v3525 = vpop.permute.xlu0 %3524
        %3526 = vset.pattern.permute.xlu0 0
        %3527 = vperm.xlu0 %3526, %v3456
        %v3528 = vpop.permute.xlu0 %3527
        %3529 = vset.pattern.permute.xlu0 0
        %3530 = vperm.xlu0 %3529, %v3457
        %v3531 = vpop.permute.xlu0 %3530
        %3532 = vset.pattern.permute.xlu0 0
        %3533 = vperm.xlu0 %3532, %v3458
        %v3534 = vpop.permute.xlu0 %3533
        %3535 = vset.pattern.permute.xlu0 0
        %3536 = vperm.xlu0 %3535, %v3459
        %v3537 = vpop.permute.xlu0 %3536
        %3538 = vset.pattern.permute.xlu0 0
        %3539 = vperm.xlu0 %3538, %v3460
        %v3540 = vpop.permute.xlu0 %3539
        %3541 = vset.pattern.permute.xlu0 0
        %3542 = vperm.xlu0 %3541, %v3461
        %v3543 = vpop.permute.xlu0 %3542
        %3544 = vset.pattern.permute.xlu0 0
        %3545 = vperm.xlu0 %3544, %v3462
        %v3546 = vpop.permute.xlu0 %3545
        %3547 = vset.pattern.permute.xlu0 0
        %3548 = vperm.xlu0 %3547, %v3463
        %v3549 = vpop.permute.xlu0 %3548
        %3550 = vset.pattern.permute.xlu0 0
        %3551 = vperm.xlu0 %3550, %v3464
        %v3552 = vpop.permute.xlu0 %3551
        %3553 = vset.pattern.permute.xlu0 0
        %3554 = vperm.xlu0 %3553, %v3465
        %v3555 = vpop.permute.xlu0 %3554
        %3556 = vset.pattern.permute.xlu0 0
        %3557 = vperm.xlu0 %3556, %v3466
        %v3558 = vpop.permute.xlu0 %3557
        %3559 = vset.pattern.permute.xlu0 0
        %3560 = vperm.xlu0 %3559, %v3467
        %v3561 = vpop.permute.xlu0 %3560
        %3562 = vset.pattern.permute.xlu0 0
        %3563 = vperm.xlu0 %3562, %v3468
        %v3564 = vpop.permute.xlu0 %3563
        %3565 = vset.pattern.permute.xlu0 0
        %3566 = vperm.xlu0 %3565, %v3469
        %v3567 = vpop.permute.xlu0 %3566
        %3568 = vset.pattern.permute.xlu0 0
        %3569 = vperm.xlu0 %3568, %v3470
        %v3570 = vpop.permute.xlu0 %3569
        %3571 = vset.pattern.permute.xlu0 0
        %3572 = vperm.xlu0 %3571, %v3471
        %v3573 = vpop.permute.xlu0 %3572
        %3574 = vset.pattern.permute.xlu0 0
        %3575 = vperm.xlu0 %3574, %v3472
        %v3576 = vpop.permute.xlu0 %3575
        %3577 = vset.pattern.permute.xlu0 0
        %3578 = vperm.xlu0 %3577, %v3473
        %v3579 = vpop.permute.xlu0 %3578
        %3580 = vset.pattern.permute.xlu0 0
        %3581 = vperm.xlu0 %3580, %v3474
        %v3582 = vpop.permute.xlu0 %3581
        %3583 = vset.pattern.permute.xlu0 0
        %3584 = vperm.xlu0 %3583, %v3475
        %v3585 = vpop.permute.xlu0 %3584
        %3586 = vset.pattern.permute.xlu0 0
        %3587 = vperm.xlu0 %3586, %v3476
        %v3588 = vpop.permute.xlu0 %3587
        %3589 = vset.pattern.permute.xlu0 0
        %3590 = vperm.xlu0 %3589, %v3477
        %v3591 = vpop.permute.xlu0 %3590
        %3592 = vset.pattern.permute.xlu0 0
        %3593 = vperm.xlu0 %3592, %v3478
        %v3594 = vpop.permute.xlu0 %3593
        %3595 = vset.pattern.permute.xlu0 0
        %3596 = vperm.xlu0 %3595, %v3479
        %v3597 = vpop.permute.xlu0 %3596
        %3598 = vset.pattern.permute.xlu0 0
        %3599 = vperm.xlu0 %3598, %v3480
        %v3600 = vpop.permute.xlu0 %3599
        %3601 = vset.pattern.permute.xlu0 0
        %3602 = vperm.xlu0 %3601, %v3481
        %v3603 = vpop.permute.xlu0 %3602
        %3604 = vset.pattern.permute.xlu0 0
        %3605 = vperm.xlu0 %3604, %v3482
        %v3606 = vpop.permute.xlu0 %3605
        %3607 = vset.pattern.permute.xlu0 0
        %3608 = vperm.xlu0 %3607, %v3483
        %v3609 = vpop.permute.xlu0 %3608
        %3610 = vset.pattern.permute.xlu0 0
        %3611 = vperm.xlu0 %3610, %v3484
        %v3612 = vpop.permute.xlu0 %3611
        %v3613 = vlaneseq
        %v3614 = vshrl.u32 %v3613, 7
        %v3615 = vsub.s32 %v2545, %v3614
        %v3616 = vrot.slane %v3519, %v3615
        %v3617 = vlaneseq
        %v3618 = vshrl.u32 %v3617, 7
        %v3619 = vsub.s32 %v2545, %v3618
        %v3620 = vrot.slane %v3522, %v3619
        %v3621 = vlaneseq
        %v3622 = vshrl.u32 %v3621, 7
        %v3623 = vsub.s32 %v2545, %v3622
        %v3624 = vrot.slane %v3525, %v3623
        %v3625 = vlaneseq
        %v3626 = vshrl.u32 %v3625, 7
        %v3627 = vsub.s32 %v2545, %v3626
        %v3628 = vrot.slane %v3528, %v3627
        %v3629 = vlaneseq
        %v3630 = vshrl.u32 %v3629, 7
        %v3631 = vsub.s32 %v2545, %v3630
        %v3632 = vrot.slane %v3531, %v3631
        %v3633 = vlaneseq
        %v3634 = vshrl.u32 %v3633, 7
        %v3635 = vsub.s32 %v2545, %v3634
        %v3636 = vrot.slane %v3534, %v3635
        %v3637 = vlaneseq
        %v3638 = vshrl.u32 %v3637, 7
        %v3639 = vsub.s32 %v2545, %v3638
        %v3640 = vrot.slane %v3537, %v3639
        %v3641 = vlaneseq
        %v3642 = vshrl.u32 %v3641, 7
        %v3643 = vsub.s32 %v2545, %v3642
        %v3644 = vrot.slane %v3540, %v3643
        %v3645 = vlaneseq
        %v3646 = vshrl.u32 %v3645, 7
        %v3647 = vsub.s32 %v2545, %v3646
        %v3648 = vrot.slane %v3543, %v3647
        %v3649 = vlaneseq
        %v3650 = vshrl.u32 %v3649, 7
        %v3651 = vsub.s32 %v2545, %v3650
        %v3652 = vrot.slane %v3546, %v3651
        %v3653 = vlaneseq
        %v3654 = vshrl.u32 %v3653, 7
        %v3655 = vsub.s32 %v2545, %v3654
        %v3656 = vrot.slane %v3549, %v3655
        %v3657 = vlaneseq
        %v3658 = vshrl.u32 %v3657, 7
        %v3659 = vsub.s32 %v2545, %v3658
        %v3660 = vrot.slane %v3552, %v3659
        %v3661 = vlaneseq
        %v3662 = vshrl.u32 %v3661, 7
        %v3663 = vsub.s32 %v2545, %v3662
        %v3664 = vrot.slane %v3555, %v3663
        %v3665 = vlaneseq
        %v3666 = vshrl.u32 %v3665, 7
        %v3667 = vsub.s32 %v2545, %v3666
        %v3668 = vrot.slane %v3558, %v3667
        %v3669 = vlaneseq
        %v3670 = vshrl.u32 %v3669, 7
        %v3671 = vsub.s32 %v2545, %v3670
        %v3672 = vrot.slane %v3561, %v3671
        %v3673 = vlaneseq
        %v3674 = vshrl.u32 %v3673, 7
        %v3675 = vsub.s32 %v2545, %v3674
        %v3676 = vrot.slane %v3564, %v3675
        %v3677 = vlaneseq
        %v3678 = vshrl.u32 %v3677, 7
        %v3679 = vsub.s32 %v2545, %v3678
        %v3680 = vrot.slane %v3567, %v3679
        %v3681 = vlaneseq
        %v3682 = vshrl.u32 %v3681, 7
        %v3683 = vsub.s32 %v2545, %v3682
        %v3684 = vrot.slane %v3570, %v3683
        %v3685 = vlaneseq
        %v3686 = vshrl.u32 %v3685, 7
        %v3687 = vsub.s32 %v2545, %v3686
        %v3688 = vrot.slane %v3573, %v3687
        %v3689 = vlaneseq
        %v3690 = vshrl.u32 %v3689, 7
        %v3691 = vsub.s32 %v2545, %v3690
        %v3692 = vrot.slane %v3576, %v3691
        %v3693 = vlaneseq
        %v3694 = vshrl.u32 %v3693, 7
        %v3695 = vsub.s32 %v2545, %v3694
        %v3696 = vrot.slane %v3579, %v3695
        %v3697 = vlaneseq
        %v3698 = vshrl.u32 %v3697, 7
        %v3699 = vsub.s32 %v2545, %v3698
        %v3700 = vrot.slane %v3582, %v3699
        %v3701 = vlaneseq
        %v3702 = vshrl.u32 %v3701, 7
        %v3703 = vsub.s32 %v2545, %v3702
        %v3704 = vrot.slane %v3585, %v3703
        %v3705 = vlaneseq
        %v3706 = vshrl.u32 %v3705, 7
        %v3707 = vsub.s32 %v2545, %v3706
        %v3708 = vrot.slane %v3588, %v3707
        %v3709 = vlaneseq
        %v3710 = vshrl.u32 %v3709, 7
        %v3711 = vsub.s32 %v2545, %v3710
        %v3712 = vrot.slane %v3591, %v3711
        %v3713 = vlaneseq
        %v3714 = vshrl.u32 %v3713, 7
        %v3715 = vsub.s32 %v2545, %v3714
        %v3716 = vrot.slane %v3594, %v3715
        %v3717 = vlaneseq
        %v3718 = vshrl.u32 %v3717, 7
        %v3719 = vsub.s32 %v2545, %v3718
        %v3720 = vrot.slane %v3597, %v3719
        %v3721 = vlaneseq
        %v3722 = vshrl.u32 %v3721, 7
        %v3723 = vsub.s32 %v2545, %v3722
        %v3724 = vrot.slane %v3600, %v3723
        %v3725 = vlaneseq
        %v3726 = vshrl.u32 %v3725, 7
        %v3727 = vsub.s32 %v2545, %v3726
        %v3728 = vrot.slane %v3603, %v3727
        %v3729 = vlaneseq
        %v3730 = vshrl.u32 %v3729, 7
        %v3731 = vsub.s32 %v2545, %v3730
        %v3732 = vrot.slane %v3606, %v3731
        %v3733 = vlaneseq
        %v3734 = vshrl.u32 %v3733, 7
        %v3735 = vsub.s32 %v2545, %v3734
        %v3736 = vrot.slane %v3609, %v3735
        %v3737 = vlaneseq
        %v3738 = vshrl.u32 %v3737, 7
        %v3739 = vsub.s32 %v2545, %v3738
        %v3740 = vrot.slane %v3612, %v3739
        %v3741 = vsel %vm2674, %v3620, %v3616
        %v3742 = vsel %vm2676, %v3624, %v3741
        %v3743 = vsel %vm2678, %v3628, %v3742
        %v3744 = vsel %vm2680, %v3632, %v3743
        %v3745 = vsel %vm2682, %v3636, %v3744
        %v3746 = vsel %vm2684, %v3640, %v3745
        %v3747 = vsel %vm2686, %v3644, %v3746
        %v3748 = vsel %vm2674, %v3652, %v3648
        %v3749 = vsel %vm2676, %v3656, %v3748
        %v3750 = vsel %vm2678, %v3660, %v3749
        %v3751 = vsel %vm2680, %v3664, %v3750
        %v3752 = vsel %vm2682, %v3668, %v3751
        %v3753 = vsel %vm2684, %v3672, %v3752
        %v3754 = vsel %vm2686, %v3676, %v3753
        %v3755 = vsel %vm2674, %v3684, %v3680
        %v3756 = vsel %vm2676, %v3688, %v3755
        %v3757 = vsel %vm2678, %v3692, %v3756
        %v3758 = vsel %vm2680, %v3696, %v3757
        %v3759 = vsel %vm2682, %v3700, %v3758
        %v3760 = vsel %vm2684, %v3704, %v3759
        %v3761 = vsel %vm2686, %v3708, %v3760
        %v3762 = vsel %vm2674, %v3716, %v3712
        %v3763 = vsel %vm2676, %v3720, %v3762
        %v3764 = vsel %vm2678, %v3724, %v3763
        %v3765 = vsel %vm2680, %v3728, %v3764
        %v3766 = vsel %vm2682, %v3732, %v3765
        %v3767 = vsel %vm2684, %v3736, %v3766
        %v3768 = vsel %vm2686, %v3740, %v3767
        %3773 = vst.msk [vmem:[%s214] sm:$0xff] %vm652, %v3747
        %3774 = vst.msk [vmem:[%s214 + $0x8] sm:$0xff] %vm652, %v3754
        %3775 = vst.msk [vmem:[%s214 + $0x10] sm:$0xff] %vm652, %v3761
        %3776 = vst.msk [vmem:[%s214 + $0x18] sm:$0xff] %vm652, %v3768
        %v3777 = vsel %vm652, %v3747, 0
        %3779 = vmatprep.subr.mxu0 0.0
        %3780 = vmatpush1.msra.mxu0 %v218
        %3781 = vmatprep.subr.mxu0 0.0
        %3782 = vmatpush1.msra.mxu0 0.0
        %3783 = vmatprep.subr.mxu0 0.0
        %3784 = vmatpush1.msra.mxu0 0.0
        %3785 = vmatprep.subr.mxu0 0.0
        %3786 = vmatpush1.msra.mxu0 0.0
        %3787 = vmatprep.subr.mxu0 0.0
        %3788 = vmatpush1.msra.mxu0 0.0
        %3789 = vmatprep.subr.mxu0 0.0
        %3790 = vmatpush1.msra.mxu0 0.0
        %3791 = vmatprep.subr.mxu0 0.0
        %3792 = vmatpush1.msra.mxu0 0.0
        %3793 = vmatprep.subr.mxu0 0.0
        %3794 = vmatpush1.msra.mxu0 0.0
        %3795 = vmatprep.subr.mxu0 0.0
        %3796 = vmatpush1.msra.mxu0 0.0
        %3797 = vmatprep.subr.mxu0 0.0
        %3798 = vmatpush1.msra.mxu0 0.0
        %3799 = vmatprep.subr.mxu0 0.0
        %3800 = vmatpush1.msra.mxu0 0.0
        %3801 = vmatprep.subr.mxu0 0.0
        %3802 = vmatpush1.msra.mxu0 0.0
        %3803 = vmatprep.subr.mxu0 0.0
        %3804 = vmatpush1.msra.mxu0 0.0
        %3805 = vmatprep.subr.mxu0 0.0
        %3806 = vmatpush1.msra.mxu0 0.0
        %3807 = vmatprep.subr.mxu0 0.0
        %3808 = vmatpush1.msra.mxu0 0.0
        %3809 = vmatprep.subr.mxu0 0.0
        %3810 = vmatpush1.msra.mxu0 0.0
        %3811 = vmatprep.subr.mxu0 0.0
        %3812 = vmatpush1.msra.mxu0 0.0
        %3813 = vmatprep.subr.mxu0 0.0
        %3814 = vmatpush1.msra.mxu0 0.0
        %3815 = vmatprep.subr.mxu0 0.0
        %3816 = vmatpush1.msra.mxu0 0.0
        %3817 = vmatprep.subr.mxu0 0.0
        %3818 = vmatpush1.msra.mxu0 0.0
        %3819 = vmatprep.subr.mxu0 0.0
        %3820 = vmatpush1.msra.mxu0 0.0
        %3821 = vmatprep.subr.mxu0 0.0
        %3822 = vmatpush1.msra.mxu0 0.0
        %3823 = vmatprep.subr.mxu0 0.0
        %3824 = vmatpush1.msra.mxu0 0.0
        %3825 = vmatprep.subr.mxu0 0.0
        %3826 = vmatpush1.msra.mxu0 0.0
        %3827 = vmatprep.subr.mxu0 0.0
        %3828 = vmatpush1.msra.mxu0 0.0
        %3829 = vmatprep.subr.mxu0 0.0
        %3830 = vmatpush1.msra.mxu0 0.0
        %3831 = vmatprep.subr.mxu0 0.0
        %3832 = vmatpush1.msra.mxu0 0.0
        %3833 = vmatprep.subr.mxu0 0.0
        %3834 = vmatpush1.msra.mxu0 0.0
        %3835 = vmatprep.subr.mxu0 0.0
        %3836 = vmatpush1.msra.mxu0 0.0
        %3837 = vmatprep.subr.mxu0 0.0
        %3838 = vmatpush1.msra.mxu0 0.0
        %3839 = vmatprep.subr.mxu0 0.0
        %3840 = vmatpush1.msra.mxu0 0.0
        %3841 = vmatprep.subr.mxu0 0.0
        %3842 = vmatpush1.msra.mxu0 0.0
        %3843 = vmatprep.mubr.f32.mxu0 0.0
        %3844 = vmatmul.mubr.f32.gmra.mrb[0].mxu0 %v3777
        %v3845 = vpop.f32.mrb[0].mxu0
        %v3846 = vadd.f32 0.0, %v3845
        %v3847 = vpop.f32.mrb[0].mxu0
        %3848 = vdwg.mxu0
        %v3849 = vsel %vm652, %v3754, 0
        %3851 = vmatprep.subr.mxu0 0.0
        %3852 = vmatpush1.msra.mxu0 %v219
        %3853 = vmatprep.subr.mxu0 0.0
        %3854 = vmatpush1.msra.mxu0 0.0
        %3855 = vmatprep.subr.mxu0 0.0
        %3856 = vmatpush1.msra.mxu0 0.0
        %3857 = vmatprep.subr.mxu0 0.0
        %3858 = vmatpush1.msra.mxu0 0.0
        %3859 = vmatprep.subr.mxu0 0.0
        %3860 = vmatpush1.msra.mxu0 0.0
        %3861 = vmatprep.subr.mxu0 0.0
        %3862 = vmatpush1.msra.mxu0 0.0
        %3863 = vmatprep.subr.mxu0 0.0
        %3864 = vmatpush1.msra.mxu0 0.0
        %3865 = vmatprep.subr.mxu0 0.0
        %3866 = vmatpush1.msra.mxu0 0.0
        %3867 = vmatprep.subr.mxu0 0.0
        %3868 = vmatpush1.msra.mxu0 0.0
        %3869 = vmatprep.subr.mxu0 0.0
        %3870 = vmatpush1.msra.mxu0 0.0
        %3871 = vmatprep.subr.mxu0 0.0
        %3872 = vmatpush1.msra.mxu0 0.0
        %3873 = vmatprep.subr.mxu0 0.0
        %3874 = vmatpush1.msra.mxu0 0.0
        %3875 = vmatprep.subr.mxu0 0.0
        %3876 = vmatpush1.msra.mxu0 0.0
        %3877 = vmatprep.subr.mxu0 0.0
        %3878 = vmatpush1.msra.mxu0 0.0
        %3879 = vmatprep.subr.mxu0 0.0
        %3880 = vmatpush1.msra.mxu0 0.0
        %3881 = vmatprep.subr.mxu0 0.0
        %3882 = vmatpush1.msra.mxu0 0.0
        %3883 = vmatprep.subr.mxu0 0.0
        %3884 = vmatpush1.msra.mxu0 0.0
        %3885 = vmatprep.subr.mxu0 0.0
        %3886 = vmatpush1.msra.mxu0 0.0
        %3887 = vmatprep.subr.mxu0 0.0
        %3888 = vmatpush1.msra.mxu0 0.0
        %3889 = vmatprep.subr.mxu0 0.0
        %3890 = vmatpush1.msra.mxu0 0.0
        %3891 = vmatprep.subr.mxu0 0.0
        %3892 = vmatpush1.msra.mxu0 0.0
        %3893 = vmatprep.subr.mxu0 0.0
        %3894 = vmatpush1.msra.mxu0 0.0
        %3895 = vmatprep.subr.mxu0 0.0
        %3896 = vmatpush1.msra.mxu0 0.0
        %3897 = vmatprep.subr.mxu0 0.0
        %3898 = vmatpush1.msra.mxu0 0.0
        %3899 = vmatprep.subr.mxu0 0.0
        %3900 = vmatpush1.msra.mxu0 0.0
        %3901 = vmatprep.subr.mxu0 0.0
        %3902 = vmatpush1.msra.mxu0 0.0
        %3903 = vmatprep.subr.mxu0 0.0
        %3904 = vmatpush1.msra.mxu0 0.0
        %3905 = vmatprep.subr.mxu0 0.0
        %3906 = vmatpush1.msra.mxu0 0.0
        %3907 = vmatprep.subr.mxu0 0.0
        %3908 = vmatpush1.msra.mxu0 0.0
        %3909 = vmatprep.subr.mxu0 0.0
        %3910 = vmatpush1.msra.mxu0 0.0
        %3911 = vmatprep.subr.mxu0 0.0
        %3912 = vmatpush1.msra.mxu0 0.0
        %3913 = vmatprep.subr.mxu0 0.0
        %3914 = vmatpush1.msra.mxu0 0.0
        %3915 = vmatprep.mubr.f32.mxu0 0.0
        %3916 = vmatmul.mubr.f32.gmra.mrb[0].mxu0 %v3849
        %v3917 = vpop.f32.mrb[0].mxu0
        %v3918 = vadd.f32 0.0, %v3917
        %v3919 = vpop.f32.mrb[0].mxu0
        %3920 = vdwg.mxu0
        %v3921 = vsel %vm652, %v3761, 0
        %3923 = vmatprep.subr.mxu0 0.0
        %3924 = vmatpush1.msra.mxu0 %v220
        %3925 = vmatprep.subr.mxu0 0.0
        %3926 = vmatpush1.msra.mxu0 0.0
        %3927 = vmatprep.subr.mxu0 0.0
        %3928 = vmatpush1.msra.mxu0 0.0
        %3929 = vmatprep.subr.mxu0 0.0
        %3930 = vmatpush1.msra.mxu0 0.0
        %3931 = vmatprep.subr.mxu0 0.0
        %3932 = vmatpush1.msra.mxu0 0.0
        %3933 = vmatprep.subr.mxu0 0.0
        %3934 = vmatpush1.msra.mxu0 0.0
        %3935 = vmatprep.subr.mxu0 0.0
        %3936 = vmatpush1.msra.mxu0 0.0
        %3937 = vmatprep.subr.mxu0 0.0
        %3938 = vmatpush1.msra.mxu0 0.0
        %3939 = vmatprep.subr.mxu0 0.0
        %3940 = vmatpush1.msra.mxu0 0.0
        %3941 = vmatprep.subr.mxu0 0.0
        %3942 = vmatpush1.msra.mxu0 0.0
        %3943 = vmatprep.subr.mxu0 0.0
        %3944 = vmatpush1.msra.mxu0 0.0
        %3945 = vmatprep.subr.mxu0 0.0
        %3946 = vmatpush1.msra.mxu0 0.0
        %3947 = vmatprep.subr.mxu0 0.0
        %3948 = vmatpush1.msra.mxu0 0.0
        %3949 = vmatprep.subr.mxu0 0.0
        %3950 = vmatpush1.msra.mxu0 0.0
        %3951 = vmatprep.subr.mxu0 0.0
        %3952 = vmatpush1.msra.mxu0 0.0
        %3953 = vmatprep.subr.mxu0 0.0
        %3954 = vmatpush1.msra.mxu0 0.0
        %3955 = vmatprep.subr.mxu0 0.0
        %3956 = vmatpush1.msra.mxu0 0.0
        %3957 = vmatprep.subr.mxu0 0.0
        %3958 = vmatpush1.msra.mxu0 0.0
        %3959 = vmatprep.subr.mxu0 0.0
        %3960 = vmatpush1.msra.mxu0 0.0
        %3961 = vmatprep.subr.mxu0 0.0
        %3962 = vmatpush1.msra.mxu0 0.0
        %3963 = vmatprep.subr.mxu0 0.0
        %3964 = vmatpush1.msra.mxu0 0.0
        %3965 = vmatprep.subr.mxu0 0.0
        %3966 = vmatpush1.msra.mxu0 0.0
        %3967 = vmatprep.subr.mxu0 0.0
        %3968 = vmatpush1.msra.mxu0 0.0
        %3969 = vmatprep.subr.mxu0 0.0
        %3970 = vmatpush1.msra.mxu0 0.0
        %3971 = vmatprep.subr.mxu0 0.0
        %3972 = vmatpush1.msra.mxu0 0.0
        %3973 = vmatprep.subr.mxu0 0.0
        %3974 = vmatpush1.msra.mxu0 0.0
        %3975 = vmatprep.subr.mxu0 0.0
        %3976 = vmatpush1.msra.mxu0 0.0
        %3977 = vmatprep.subr.mxu0 0.0
        %3978 = vmatpush1.msra.mxu0 0.0
        %3979 = vmatprep.subr.mxu0 0.0
        %3980 = vmatpush1.msra.mxu0 0.0
        %3981 = vmatprep.subr.mxu0 0.0
        %3982 = vmatpush1.msra.mxu0 0.0
        %3983 = vmatprep.subr.mxu0 0.0
        %3984 = vmatpush1.msra.mxu0 0.0
        %3985 = vmatprep.subr.mxu0 0.0
        %3986 = vmatpush1.msra.mxu0 0.0
        %3987 = vmatprep.mubr.f32.mxu0 0.0
        %3988 = vmatmul.mubr.f32.gmra.mrb[0].mxu0 %v3921
        %v3989 = vpop.f32.mrb[0].mxu0
        %v3990 = vadd.f32 0.0, %v3989
        %v3991 = vpop.f32.mrb[0].mxu0
        %3992 = vdwg.mxu0
        %v3993 = vsel %vm652, %v3768, 0
        %3995 = vmatprep.subr.mxu0 0.0
        %3996 = vmatpush1.msra.mxu0 %v221
        %3997 = vmatprep.subr.mxu0 0.0
        %3998 = vmatpush1.msra.mxu0 0.0
        %3999 = vmatprep.subr.mxu0 0.0
        %4000 = vmatpush1.msra.mxu0 0.0
        %4001 = vmatprep.subr.mxu0 0.0
        %4002 = vmatpush1.msra.mxu0 0.0
        %4003 = vmatprep.subr.mxu0 0.0
        %4004 = vmatpush1.msra.mxu0 0.0
        %4005 = vmatprep.subr.mxu0 0.0
        %4006 = vmatpush1.msra.mxu0 0.0
        %4007 = vmatprep.subr.mxu0 0.0
        %4008 = vmatpush1.msra.mxu0 0.0
        %4009 = vmatprep.subr.mxu0 0.0
        %4010 = vmatpush1.msra.mxu0 0.0
        %4011 = vmatprep.subr.mxu0 0.0
        %4012 = vmatpush1.msra.mxu0 0.0
        %4013 = vmatprep.subr.mxu0 0.0
        %4014 = vmatpush1.msra.mxu0 0.0
        %4015 = vmatprep.subr.mxu0 0.0
        %4016 = vmatpush1.msra.mxu0 0.0
        %4017 = vmatprep.subr.mxu0 0.0
        %4018 = vmatpush1.msra.mxu0 0.0
        %4019 = vmatprep.subr.mxu0 0.0
        %4020 = vmatpush1.msra.mxu0 0.0
        %4021 = vmatprep.subr.mxu0 0.0
        %4022 = vmatpush1.msra.mxu0 0.0
        %4023 = vmatprep.subr.mxu0 0.0
        %4024 = vmatpush1.msra.mxu0 0.0
        %4025 = vmatprep.subr.mxu0 0.0
        %4026 = vmatpush1.msra.mxu0 0.0
        %4027 = vmatprep.subr.mxu0 0.0
        %4028 = vmatpush1.msra.mxu0 0.0
        %4029 = vmatprep.subr.mxu0 0.0
        %4030 = vmatpush1.msra.mxu0 0.0
        %4031 = vmatprep.subr.mxu0 0.0
        %4032 = vmatpush1.msra.mxu0 0.0
        %4033 = vmatprep.subr.mxu0 0.0
        %4034 = vmatpush1.msra.mxu0 0.0
        %4035 = vmatprep.subr.mxu0 0.0
        %4036 = vmatpush1.msra.mxu0 0.0
        %4037 = vmatprep.subr.mxu0 0.0
        %4038 = vmatpush1.msra.mxu0 0.0
        %4039 = vmatprep.subr.mxu0 0.0
        %4040 = vmatpush1.msra.mxu0 0.0
        %4041 = vmatprep.subr.mxu0 0.0
        %4042 = vmatpush1.msra.mxu0 0.0
        %4043 = vmatprep.subr.mxu0 0.0
        %4044 = vmatpush1.msra.mxu0 0.0
        %4045 = vmatprep.subr.mxu0 0.0
        %4046 = vmatpush1.msra.mxu0 0.0
        %4047 = vmatprep.subr.mxu0 0.0
        %4048 = vmatpush1.msra.mxu0 0.0
        %4049 = vmatprep.subr.mxu0 0.0
        %4050 = vmatpush1.msra.mxu0 0.0
        %4051 = vmatprep.subr.mxu0 0.0
        %4052 = vmatpush1.msra.mxu0 0.0
        %4053 = vmatprep.subr.mxu0 0.0
        %4054 = vmatpush1.msra.mxu0 0.0
        %4055 = vmatprep.subr.mxu0 0.0
        %4056 = vmatpush1.msra.mxu0 0.0
        %4057 = vmatprep.subr.mxu0 0.0
        %4058 = vmatpush1.msra.mxu0 0.0
        %4059 = vmatprep.mubr.f32.mxu0 0.0
        %4060 = vmatmul.mubr.f32.gmra.mrb[0].mxu0 %v3993
        %v4061 = vpop.f32.mrb[0].mxu0
        %v4062 = vadd.f32 0.0, %v4061
        %v4063 = vpop.f32.mrb[0].mxu0
        %4064 = vdwg.mxu0
        %v4065 = vld [vmem:[#allocation5 + $0x30] sm:$0xff]
        %v4066 = vld [vmem:[#allocation5 + $0x68] sm:$0x1]
        %v4067 = vlaneseq
        %v4068 = vshrl.u32 %v4067, 7
        %v4069 = vsub.s32 0, %v4068
        %v4070 = vrot.slane %v4066, %v4069
        %v4072 = vsel %vm652, %v3846, 0
        %v4075 = vsel %vm652, %v3918, 0
        %v4078 = vsel %vm652, %v3990, 0
        %v4081 = vsel %vm652, %v4062, 0
        %4083 = vmatprep.subr.mxu0 0.0
        %4084 = vmatpush1.msra.mxu0 %v4065
        %4085 = vmatprep.subr.mxu0 0.0
        %4086 = vmatpush1.msra.mxu0 0.0
        %4087 = vmatprep.subr.mxu0 0.0
        %4088 = vmatpush1.msra.mxu0 0.0
        %4089 = vmatprep.subr.mxu0 0.0
        %4090 = vmatpush1.msra.mxu0 0.0
        %4091 = vmatprep.subr.mxu0 0.0
        %4092 = vmatpush1.msra.mxu0 0.0
        %4093 = vmatprep.subr.mxu0 0.0
        %4094 = vmatpush1.msra.mxu0 0.0
        %4095 = vmatprep.subr.mxu0 0.0
        %4096 = vmatpush1.msra.mxu0 0.0
        %4097 = vmatprep.subr.mxu0 0.0
        %4098 = vmatpush1.msra.mxu0 0.0
        %4099 = vmatprep.subr.mxu0 0.0
        %4100 = vmatpush1.msra.mxu0 0.0
        %4101 = vmatprep.subr.mxu0 0.0
        %4102 = vmatpush1.msra.mxu0 0.0
        %4103 = vmatprep.subr.mxu0 0.0
        %4104 = vmatpush1.msra.mxu0 0.0
        %4105 = vmatprep.subr.mxu0 0.0
        %4106 = vmatpush1.msra.mxu0 0.0
        %4107 = vmatprep.subr.mxu0 0.0
        %4108 = vmatpush1.msra.mxu0 0.0
        %4109 = vmatprep.subr.mxu0 0.0
        %4110 = vmatpush1.msra.mxu0 0.0
        %4111 = vmatprep.subr.mxu0 0.0
        %4112 = vmatpush1.msra.mxu0 0.0
        %4113 = vmatprep.subr.mxu0 0.0
        %4114 = vmatpush1.msra.mxu0 0.0
        %4115 = vmatprep.subr.mxu0 0.0
        %4116 = vmatpush1.msra.mxu0 0.0
        %4117 = vmatprep.subr.mxu0 0.0
        %4118 = vmatpush1.msra.mxu0 0.0
        %4119 = vmatprep.subr.mxu0 0.0
        %4120 = vmatpush1.msra.mxu0 0.0
        %4121 = vmatprep.subr.mxu0 0.0
        %4122 = vmatpush1.msra.mxu0 0.0
        %4123 = vmatprep.subr.mxu0 0.0
        %4124 = vmatpush1.msra.mxu0 0.0
        %4125 = vmatprep.subr.mxu0 0.0
        %4126 = vmatpush1.msra.mxu0 0.0
        %4127 = vmatprep.subr.mxu0 0.0
        %4128 = vmatpush1.msra.mxu0 0.0
        %4129 = vmatprep.subr.mxu0 0.0
        %4130 = vmatpush1.msra.mxu0 0.0
        %4131 = vmatprep.subr.mxu0 0.0
        %4132 = vmatpush1.msra.mxu0 0.0
        %4133 = vmatprep.subr.mxu0 0.0
        %4134 = vmatpush1.msra.mxu0 0.0
        %4135 = vmatprep.subr.mxu0 0.0
        %4136 = vmatpush1.msra.mxu0 0.0
        %4137 = vmatprep.subr.mxu0 0.0
        %4138 = vmatpush1.msra.mxu0 0.0
        %4139 = vmatprep.subr.mxu0 0.0
        %4140 = vmatpush1.msra.mxu0 0.0
        %4141 = vmatprep.subr.mxu0 0.0
        %4142 = vmatpush1.msra.mxu0 0.0
        %4143 = vmatprep.subr.mxu0 0.0
        %4144 = vmatpush1.msra.mxu0 0.0
        %4145 = vmatprep.subr.mxu0 0.0
        %4146 = vmatpush1.msra.mxu0 0.0
        %4147 = vmatprep.mubr.f32.mxu0 0.0
        %4148 = vmatmul.mubr.f32.gmra.mrb[0].mxu0 %v4072
        %v4149 = vpop.f32.mrb[0].mxu0
        %v4150 = vadd.f32 %v4070, %v4149
        %v4151 = vpop.f32.mrb[0].mxu0
        %4152 = vmatprep.mubr.f32.mxu0 0.0
        %4153 = vmatmul.mubr.f32.gmra.mrb[0].mxu0 %v4075
        %v4154 = vpop.f32.mrb[0].mxu0
        %v4155 = vadd.f32 %v4070, %v4154
        %v4156 = vpop.f32.mrb[0].mxu0
        %4157 = vmatprep.mubr.f32.mxu0 0.0
        %4158 = vmatmul.mubr.f32.gmra.mrb[0].mxu0 %v4078
        %v4159 = vpop.f32.mrb[0].mxu0
        %v4160 = vadd.f32 %v4070, %v4159
        %v4161 = vpop.f32.mrb[0].mxu0
        %4162 = vmatprep.mubr.f32.mxu0 0.0
        %4163 = vmatmul.mubr.f32.gmra.mrb[0].mxu0 %v4081
        %v4164 = vpop.f32.mrb[0].mxu0
        %v4165 = vadd.f32 %v4070, %v4164
        %v4166 = vpop.f32.mrb[0].mxu0
        %4167 = vdwg.mxu0
        %4168 = vst.msk [vmem:[%s207] sm:$0xff] %vm652, %v4150
        %4169 = vst.msk [vmem:[%s207 + $0x8] sm:$0xff] %vm652, %v4155
        %4170 = vst.msk [vmem:[%s207 + $0x10] sm:$0xff] %vm652, %v4160
        %4171 = vst.msk [vmem:[%s207 + $0x18] sm:$0xff] %vm652, %v4165
        %s4172 = sand.u32 %s80, 1
        %s4173 = scalar_lea.sflag [#allocation4], %s4172
        %s4174 = sand.u32 %s80, 1
        %s4175 = smul.addr %s4174, 32
        %s4176 = scalar_lea.vmem [#allocation7], %s4175
        %s4177 = sand.u32 %s106, 1
        %s4178 = scalar_lea.sflag [#allocation9], %s4177
        %s4179 = sand.u32 %s106, 1
        %s4180 = smul.addr %s4179, 32
        %s4181 = scalar_lea.vmem [#allocation8], %s4180
        // Predicated region
        $region37: #{tpu_custom_call.1} parent=27 // pred_check
          %p4182 = pneg %p90
        $region38: #{tpu_custom_call.1} parent=27 // pred_check_branch
          %4184 = sbr.rel (%p4182) target = $region40
        $region39: #{tpu_custom_call.1} parent=27 // pred_region
          %s4185 = smul.u32 4, %s25
          %s4187 = ssub.s32 512, 512
          %4188 = vsyncadd %s4173, %s4187
          %s4189 = smul.addr %s4185, 128
          %s4190 = scalar_lea.hbm %s2, %s4189
          %s4191 = sshll.u32 %s4176, 4
          %s4192 = int_to_ptr.vmem [resolvable:$true] %s4191
          %4197 = dma.vmem_to_hbm [thread:$0]  %s4192, 512, %s4190, %s4173, 128, 128, 8
        $region40: #{tpu_custom_call.1} parent=27 // pred_fallthru
          _
        // Predicated region
        $region41: #{tpu_custom_call.1} parent=27 // pred_check
          %p4198 = pneg %p116
        $region42: #{tpu_custom_call.1} parent=27 // pred_check_branch
          %4200 = sbr.rel (%p4198) target = $region44
        $region43: #{tpu_custom_call.1} parent=27 // pred_region
          %s4201 = smul.u32 4, %s25
          %s4203 = ssub.s32 512, 512
          %4204 = vsyncadd %s4178, %s4203
          %s4205 = smul.addr %s4201, 128
          %s4206 = scalar_lea.hbm %s3, %s4205
          %s4207 = sshll.u32 %s4181, 4
          %s4208 = int_to_ptr.vmem [resolvable:$true] %s4207
          %4213 = dma.vmem_to_hbm [thread:$0]  %s4208, 512, %s4206, %s4178, 128, 128, 8
        $region44: #{tpu_custom_call.1} parent=27 // pred_fallthru
          _
      $region28: #{tpu_custom_call.1} parent=5 // pred_fallthru
        _
      %p4214 = scmp.le.s32.totalorder 2, %s20
      // Predicated region
      $region45: #{tpu_custom_call.1} parent=5 // pred_check
        %p4215 = pneg %p4214
      $region46: #{tpu_custom_call.1} parent=5 // pred_check_branch
        %4217 = sbr.rel (%p4215) target = $region48
      $region47: #{tpu_custom_call.1} parent=5 // pred_region
        %s4218 = ssub.s32 %s20, 2
        // Predicated region
        $region49: #{tpu_custom_call.1} parent=47 // pred_check
          %p4219 = pneg %p96
        $region50: #{tpu_custom_call.1} parent=47 // pred_check_branch
          %4221 = sbr.rel (%p4219) target = $region52
        $region51: #{tpu_custom_call.1} parent=47 // pred_region
          %s4222 = sand.u32 %s81, 1
          %s4223 = scalar_lea.sflag [#allocation4], %s4222
          %s4224 = sand.u32 %s81, 1
          %s4225 = smul.addr %s4224, 32
          %s4226 = scalar_lea.vmem [#allocation7], %s4225
          %4227 = dma.done %s4223, 512
        $region52: #{tpu_custom_call.1} parent=47 // pred_fallthru
          _
        // Predicated region
        $region53: #{tpu_custom_call.1} parent=47 // pred_check
          %p4228 = pneg %p122
        $region54: #{tpu_custom_call.1} parent=47 // pred_check_branch
          %4230 = sbr.rel (%p4228) target = $region56
        $region55: #{tpu_custom_call.1} parent=47 // pred_region
          %s4231 = sand.u32 %s107, 1
          %s4232 = scalar_lea.sflag [#allocation9], %s4231
          %s4233 = sand.u32 %s107, 1
          %s4234 = smul.addr %s4233, 32
          %s4235 = scalar_lea.vmem [#allocation8], %s4234
          %4236 = dma.done %s4232, 512
        $region56: #{tpu_custom_call.1} parent=47 // pred_fallthru
          _
      $region48: #{tpu_custom_call.1} parent=5 // pred_fallthru
        _
    $region6: #{tpu_custom_call.1} parent=1 // loop_footer
      %s24 = sadd.s32 1, %s20
    $region7: #{tpu_custom_call.1} parent=1 // loop_footer_branch
      %19 = sbr.rel target = $region3
    $region8: #{tpu_custom_call.1} parent=1 // loop_exit
      _
    %4237 = vsyncpa [#allocation3], 1
    %s4238 = scalar_lea.sflag [#allocation3], 1
    %4239 = vsyncpa %s4238, 1
    %4240 = vsyncpa [#allocation6], 1
    %4241 = vsyncpa [#allocation4], 1
    %s4242 = scalar_lea.sflag [#allocation4], 1
    %4243 = vsyncpa %s4242, 1
    %4244 = vsyncpa [#allocation9], 1
    %s4245 = scalar_lea.sflag [#allocation9], 1
    %4246 = vsyncpa %s4245, 1

</llo_original>
